<compile_context>
chip_gen: v7x
topology: tpu7x:2x2x1
jax: 0.10.0
libtpu: 0.0.40
codegen_flags: <defaults>
</compile_context>

<pallas_src>
import jax
import jax.numpy as jnp
import numpy as np
from jax.experimental import pallas as pl
from jax.experimental.pallas import tpu as pltpu

# ----------------------------- small config ---------------------------------
VOCAB_SIZE = 65
VOCAB_PAD = 128          # lm_head output / token table padded to 128 lanes
N_EMBD = 64              # n_embd
BLOCK_SIZE = 16          # block_size (max context)
N_HEAD = 4               # n_head
N_LAYER = 2              # n_layer
HEAD_SIZE = N_EMBD // N_HEAD
LN_EPS = 1e-5

B = 2                    # batch
T = BLOCK_SIZE           # sequence length used in the example


# ------------------------------ kernel ---------------------------------------
def _layernorm(x, gamma, beta):
    # x: (N, C) f32, gamma/beta: (1, C) f32 -- statistics kept in f32.
    mu = jnp.mean(x, axis=-1, keepdims=True)
    var = jnp.mean((x - mu) ** 2, axis=-1, keepdims=True)
    return (x - mu) * jax.lax.rsqrt(var + LN_EPS) * gamma + beta


def fused_gpt_kernel(idx_ref, tok_ref, pos_ref,
                     ln1g_ref, ln1b_ref, wqkv_ref, wo_ref, bo_ref,
                     ln2g_ref, ln2b_ref, w1_ref, b1_ref, w2_ref, b2_ref,
                     lnfg_ref, lnfb_ref, wlm_ref, blm_ref,
                     o_ref):
    """Entire GPT forward (embeddings -> blocks -> ln_f -> lm_head), one call."""
    bt = idx_ref.shape[0]                         # B*T
    t, c = pos_ref.shape
    batch = bt // t
    n_layer = wqkv_ref.shape[0]
    n_head = N_HEAD
    dh = wqkv_ref.shape[1] // (3 * n_head)
    hdh = n_head * dh

    # ---------- fused embedding: one-hot(idx) @ tok_table + pos (f32 exact) ----
    cols = jax.lax.broadcasted_iota(jnp.int32, (bt, tok_ref.shape[0]), 1)
    onehot = (idx_ref[...] == cols).astype(jnp.float32)             # (BT, VOCAB_PAD)
    tok = jnp.dot(onehot, tok_ref[...],
                  preferred_element_type=jnp.float32)               # (BT, C)
    x = (tok.reshape(batch, t, c) + pos_ref[...][None]).reshape(bt, c)   # residual f32

    # ---------- block-diagonal causal bias over the whole (BT, BT) slab --------
    r = jax.lax.broadcasted_iota(jnp.int32, (bt, bt), 0)
    q_col = jax.lax.broadcasted_iota(jnp.int32, (bt, bt), 1)
    log2_t = t.bit_length() - 1
    if (1 << log2_t) == t:                        # avoid vector integer division
        blk_r, blk_c = r >> log2_t, q_col >> log2_t
    else:
        blk_r, blk_c = r // t, q_col // t
    keep = jnp.logical_and(r >= q_col, blk_r == blk_c)
    bias = jnp.where(keep, 0.0, -1e30).astype(jnp.float32)          # (BT, BT) f32

    for l in range(n_layer):                      # static unroll over layers
        # ---------- multi-head causal self-attention on ln1(x) ----------
        xn = _layernorm(x, ln1g_ref[l], ln1b_ref[l])                # (BT, C) f32
        xnb = xn.astype(jnp.bfloat16)

        # Single QKV matmul, transposed activations: (3*H*Dh, C) x (BT, C)^T.
        qkvT = jax.lax.dot_general(
            wqkv_ref[l], xnb, (((1,), (1,)), ((), ())),
            preferred_element_type=jnp.float32)                     # (3*H*Dh, BT) f32
        qkvT = qkvT.reshape(3, n_head, dh, bt)                      # free (major split)
        q = jnp.swapaxes(qkvT[0], 1, 2).astype(jnp.bfloat16)        # (H, BT, Dh)
        kT = qkvT[1].astype(jnp.bfloat16)                           # (H, Dh, BT)
        vT = qkvT[2].astype(jnp.bfloat16)                           # (H, Dh, BT)

        # Whole-batch scores (scale already folded into the Q weights).
        s = jax.lax.dot_general(
            q, kT, (((2,), (1,)), ((0,), (0,))),
            preferred_element_type=jnp.float32)                     # (H, BT, BT) f32
        s = s + bias                                                # block-diag causal
        s = s - jnp.max(s, axis=-1, keepdims=True)
        p = jnp.exp(s)
        p = p * pl.reciprocal(jnp.sum(p, axis=-1, keepdims=True), approx=True)

        # PV (flash-class contraction) -> transposed heads output.
        outT = jax.lax.dot_general(
            vT, p.astype(jnp.bfloat16), (((2,), (2,)), ((0,), (0,))),
            preferred_element_type=jnp.float32)                     # (H, Dh, BT) f32
        # Concat-over-heads is just a (free) leading-axis merge; one small
        # transpose puts it in (BT, H*Dh) so the head sum is folded into the
        # single K = H*Dh output-projection contraction on the MXU.
        out = jnp.transpose(outT.reshape(hdh, bt)).astype(jnp.bfloat16)  # (BT, H*Dh)
        sa = jnp.dot(out, wo_ref[l], preferred_element_type=jnp.float32)  # (BT, C)
        x = x + sa + bo_ref[l]                                      # residual 1

        # ---------- feed-forward on ln2(x), whole-batch slab ----------
        xn2 = _layernorm(x, ln2g_ref[l], ln2b_ref[l])
        hdn = jnp.dot(xn2.astype(jnp.bfloat16), w1_ref[l],
                      preferred_element_type=jnp.float32) + b1_ref[l]
        hdn = jnp.maximum(hdn, 0.0)                                 # ReLU
        ff = jnp.dot(hdn.astype(jnp.bfloat16), w2_ref[l],
                     preferred_element_type=jnp.float32) + b2_ref[l]
        x = x + ff                                                  # residual 2

    # ---------- final LayerNorm + lm_head (lane-padded to VOCAB_PAD) ----------
    xnf = _layernorm(x, lnfg_ref[...], lnfb_ref[...])
    o_ref[...] = jnp.dot(xnf.astype(jnp.bfloat16), wlm_ref[...],
                         preferred_element_type=jnp.float32) + blm_ref[...]


# ------------------------------ wrapper ---------------------------------------
_VMEM_SPEC = pl.BlockSpec(memory_space=pltpu.MemorySpace.VMEM)


@jax.jit
def gpt_forward(idx, packed):
    """idx: (B, T) int32 tokens -> logits (B, T, VOCAB_SIZE) float32."""
    b, t = idx.shape
    idx_col = idx.reshape(b * t, 1).astype(jnp.int32)        # (BT, 1) for in-kernel gather
    pos = packed["pos_table"][:t]                             # (T, C) f32

    args = (idx_col, packed["tok_pad"], pos,
            packed["ln1g"], packed["ln1b"], packed["wqkv"], packed["wo"],
            packed["bo"], packed["ln2g"], packed["ln2b"], packed["w1"],
            packed["b1"], packed["w2"], packed["b2"],
            packed["lnfg"], packed["lnfb"], packed["wlm"], packed["blm"])

    logits_pad = pl.pallas_call(
        fused_gpt_kernel,
        out_shape=jax.ShapeDtypeStruct((b * t, VOCAB_PAD), jnp.float32),
        in_specs=[_VMEM_SPEC] * len(args),
        out_specs=_VMEM_SPEC,
    )(*args)
    return logits_pad.reshape(b, t, VOCAB_PAD)[:, :, :VOCAB_SIZE]


# ------------------------- deterministic parameters --------------------------
def init_params(key):
    """Natural (PyTorch-like, per-layer, f32) parameters; used by the reference."""
    ks = jax.random.split(key, 4 + N_LAYER * 8)
    kit = iter(ks)

    def normal(k, shape):
        return (0.02 * jax.random.normal(k, shape)).astype(jnp.float32)

    params = {
        "tok_table": normal(next(kit), (VOCAB_SIZE, N_EMBD)),
        "pos_table": normal(next(kit), (BLOCK_SIZE, N_EMBD)),
    }
    blocks = []
    for _ in range(N_LAYER):
        ln1g = jnp.ones((1, N_EMBD), jnp.float32)
        ln1b = jnp.zeros((1, N_EMBD), jnp.float32)
        wq = normal(next(kit), (N_EMBD, N_HEAD * HEAD_SIZE))
        wk = normal(next(kit), (N_EMBD, N_HEAD * HEAD_SIZE))
        wv = normal(next(kit), (N_EMBD, N_HEAD * HEAD_SIZE))
        wo = normal(next(kit), (N_HEAD * HEAD_SIZE, N_EMBD))
        bo = jnp.zeros((1, N_EMBD), jnp.float32)
        ln2g = jnp.ones((1, N_EMBD), jnp.float32)
        ln2b = jnp.zeros((1, N_EMBD), jnp.float32)
        w1 = normal(next(kit), (N_EMBD, 4 * N_EMBD))
        b1 = jnp.zeros((1, 4 * N_EMBD), jnp.float32)
        w2 = normal(next(kit), (4 * N_EMBD, N_EMBD))
        b2 = jnp.zeros((1, N_EMBD), jnp.float32)
        blocks.append((ln1g, ln1b, wq, wk, wv, wo, bo,
                       ln2g, ln2b, w1, b1, w2, b2))
    params["blocks"] = blocks

    lnfg = jnp.ones((1, N_EMBD), jnp.float32)
    lnfb = jnp.zeros((1, N_EMBD), jnp.float32)
    wlm = normal(next(kit), (N_EMBD, VOCAB_SIZE))
    blm = jnp.zeros((1, VOCAB_SIZE), jnp.float32)
    params["head"] = (lnfg, lnfb, wlm, blm)
    return params


def pack_params(params):
    """Re-pack natural parameters into the stacked / transposed / lane-padded /
    bf16 layout consumed by the fused kernel (done once, outside the kernel)."""
    blocks = params["blocks"]
    scale = HEAD_SIZE ** -0.5

    def stack(i, dtype=jnp.float32):
        return jnp.stack([blk[i] for blk in blocks]).astype(dtype)

    # Q/K/V weights as one (3*H*Dh, C) matrix per layer: features live on the
    # sublane-major axis so the q/k/v and per-head splits in the kernel are
    # free views.  The 1/sqrt(Dh) attention scale is folded into the Q rows.
    wqkv = jnp.stack([
        jnp.concatenate([blk[2].T * scale, blk[3].T, blk[4].T], axis=0)
        for blk in blocks]).astype(jnp.bfloat16)                    # (L, 3*H*Dh, C)
    wo = stack(5, jnp.bfloat16)                                     # (L, H*Dh, C)

    tok_pad = jnp.zeros((VOCAB_PAD, N_EMBD), jnp.float32)
    tok_pad = tok_pad.at[:VOCAB_SIZE].set(params["tok_table"])      # f32 (exact gather)

    lnfg, lnfb, wlm, blm = params["head"]
    wlm_pad = jnp.zeros((N_EMBD, VOCAB_PAD), jnp.float32)
    wlm_pad = wlm_pad.at[:, :VOCAB_SIZE].set(wlm).astype(jnp.bfloat16)
    blm_pad = jnp.zeros((1, VOCAB_PAD), jnp.float32).at[:, :VOCAB_SIZE].set(blm)

    return dict(
        tok_pad=tok_pad, pos_table=params["pos_table"],
        ln1g=stack(0), ln1b=stack(1), wqkv=wqkv, wo=wo, bo=stack(6),
        ln2g=stack(7), ln2b=stack(8),
        w1=stack(9, jnp.bfloat16), b1=stack(10),
        w2=stack(11, jnp.bfloat16), b2=stack(12),
        lnfg=lnfg, lnfb=lnfb, wlm=wlm_pad, blm=blm_pad)


# --------------------------- pure-JAX reference ------------------------------
def _ref_forward(idx, params):
    def ln(x, g, b):
        mu = x.mean(-1, keepdims=True)
        var = ((x - mu) ** 2).mean(-1, keepdims=True)
        return (x - mu) / jnp.sqrt(var + LN_EPS) * g[0] + b[0]

    b, t = idx.shape
    x = params["tok_table"][idx] + params["pos_table"][:t][None]
    mask = jnp.tril(jnp.ones((t, t), bool))
    for (ln1g, ln1b, wq, wk, wv, wo, bo, ln2g, ln2b, w1, b1, w2, b2) in params["blocks"]:
        xn = ln(x, ln1g, ln1b)
        q, k, v = xn @ wq, xn @ wk, xn @ wv
        outs = []
        for h in range(N_HEAD):
            lo, hi = h * HEAD_SIZE, (h + 1) * HEAD_SIZE
            s = (q[..., lo:hi] @ jnp.swapaxes(k[..., lo:hi], -1, -2)) * HEAD_SIZE ** -0.5
            s = jnp.where(mask, s, -jnp.inf)
            p = jax.nn.softmax(s, axis=-1)
            outs.append(p @ v[..., lo:hi])
        x = x + (jnp.concatenate(outs, -1) @ wo + bo[0])
        xn2 = ln(x, ln2g, ln2b)
        x = x + (jnp.maximum(xn2 @ w1 + b1[0], 0.0) @ w2 + b2[0])
    lnfg, lnfb, wlm, blm = params["head"]
    return ln(x, lnfg, lnfb) @ wlm + blm[0]


# ------------------------------- main ----------------------------------------
if __name__ == "__main__":
    key = jax.random.PRNGKey(0)
    pkey, ikey = jax.random.split(key)
    params = init_params(pkey)
    packed = pack_params(params)
    idx = jax.random.randint(ikey, (B, T), 0, VOCAB_SIZE, dtype=jnp.int32)

    logits = jax.block_until_ready(gpt_forward(idx, packed))
    assert logits.shape == (B, T, VOCAB_SIZE)

    ref = jax.block_until_ready(_ref_forward(idx, params))
    # bf16 matmul operands + approx-reciprocal softmax (f32 accumulation & f32
    # LayerNorm stats) -> slightly looser tolerance than a pure-f32 version.
    np.testing.assert_allclose(np.asarray(logits), np.asarray(ref),
                               rtol=2e-2, atol=2e-2)
    print("KERNEL_OK")
</pallas_src>

<mosaic_0001>
module attributes {stable_mosaic.version = 11 : i64} {
  func.func @fused_gpt_kernel(%arg0: memref<32x1xi32, #tpu.memory_space<vmem>>, %arg1: memref<128x64xf32, #tpu.memory_space<vmem>>, %arg2: memref<16x64xf32, #tpu.memory_space<vmem>>, %arg3: memref<2x1x64xf32, #tpu.memory_space<vmem>>, %arg4: memref<2x1x64xf32, #tpu.memory_space<vmem>>, %arg5: memref<2x192x64xbf16, #tpu.memory_space<vmem>>, %arg6: memref<2x64x64xbf16, #tpu.memory_space<vmem>>, %arg7: memref<2x1x64xf32, #tpu.memory_space<vmem>>, %arg8: memref<2x1x64xf32, #tpu.memory_space<vmem>>, %arg9: memref<2x1x64xf32, #tpu.memory_space<vmem>>, %arg10: memref<2x64x256xbf16, #tpu.memory_space<vmem>>, %arg11: memref<2x1x256xf32, #tpu.memory_space<vmem>>, %arg12: memref<2x256x64xbf16, #tpu.memory_space<vmem>>, %arg13: memref<2x1x64xf32, #tpu.memory_space<vmem>>, %arg14: memref<1x64xf32, #tpu.memory_space<vmem>>, %arg15: memref<1x64xf32, #tpu.memory_space<vmem>>, %arg16: memref<64x128xbf16, #tpu.memory_space<vmem>>, %arg17: memref<1x128xf32, #tpu.memory_space<vmem>>, %arg18: memref<32x128xf32, #tpu.memory_space<vmem>>) attributes {dimension_semantics = [], scalar_prefetch = 0 : i64, scratch_operands = 0 : i64, tpu.core_type = #tpu.core_type<tc>} {
    %0 = tpu.iota {dimensions = array<i32: 1>} : vector<32x128xi32>
    %c0 = arith.constant 0 : index
    %c0_0 = arith.constant 0 : index
    %1 = vector.load %arg0[%c0, %c0_0] : memref<32x1xi32, #tpu.memory_space<vmem>>, vector<32x1xi32>
    %2 = vector.broadcast %1 : vector<32x1xi32> to vector<32x128xi32>
    %3 = arith.cmpi eq, %2, %0 : vector<32x128xi32>
    %4 = arith.extui %3 : vector<32x128xi1> to vector<32x128xi32>
    %5 = arith.sitofp %4 : vector<32x128xi32> to vector<32x128xf32>
    %c0_1 = arith.constant 0 : index
    %c0_2 = arith.constant 0 : index
    %6 = vector.load %arg1[%c0_1, %c0_2] : memref<128x64xf32, #tpu.memory_space<vmem>>, vector<128x64xf32>
    %cst = arith.constant dense<0.000000e+00> : vector<32x64xf32>
    %7 = tpu.matmul %5, %6, %cst {dimension_numbers = #tpu.dot_dimension_numbers<[1], [0], [0], [1], [0, 0, 1, 1], [], []>} : vector<32x128xf32>, vector<128x64xf32>, vector<32x64xf32> -> vector<32x64xf32>
    %8 = vector.shape_cast %7 : vector<32x64xf32> to vector<2x16x64xf32>
    %c0_3 = arith.constant 0 : index
    %c0_4 = arith.constant 0 : index
    %9 = vector.load %arg2[%c0_3, %c0_4] : memref<16x64xf32, #tpu.memory_space<vmem>>, vector<16x64xf32>
    %10 = vector.shape_cast %9 : vector<16x64xf32> to vector<1x16x64xf32>
    %11 = vector.broadcast %10 : vector<1x16x64xf32> to vector<2x16x64xf32>
    %12 = arith.addf %8, %11 : vector<2x16x64xf32>
    %13 = vector.shape_cast %12 : vector<2x16x64xf32> to vector<32x64xf32>
    %14 = tpu.iota {dimensions = array<i32: 0>} : vector<32x32xi32>
    %15 = tpu.iota {dimensions = array<i32: 1>} : vector<32x32xi32>
    %c4_i32 = arith.constant 4 : i32
    %16 = vector.broadcast %c4_i32 : i32 to vector<32x32xi32>
    %17 = arith.shrsi %14, %16 : vector<32x32xi32>
    %c4_i32_5 = arith.constant 4 : i32
    %18 = vector.broadcast %c4_i32_5 : i32 to vector<32x32xi32>
    %19 = arith.shrsi %15, %18 : vector<32x32xi32>
    %20 = arith.cmpi sge, %14, %15 : vector<32x32xi32>
    %21 = arith.cmpi eq, %17, %19 : vector<32x32xi32>
    %22 = arith.andi %20, %21 : vector<32x32xi1>
    %cst_6 = arith.constant 0.000000e+00 : f32
    %cst_7 = arith.constant -1.000000e+30 : f32
    %23 = vector.broadcast %cst_6 : f32 to vector<32x32xf32>
    %24 = vector.broadcast %cst_7 : f32 to vector<32x32xf32>
    %25 = arith.select %22, %23, %24 : vector<32x32xi1>, vector<32x32xf32>
    %c0_8 = arith.constant 0 : index
    %c0_9 = arith.constant 0 : index
    %c0_10 = arith.constant 0 : index
    %26 = vector.load %arg3[%c0_8, %c0_9, %c0_10] : memref<2x1x64xf32, #tpu.memory_space<vmem>>, vector<1x1x64xf32>
    %27 = vector.shape_cast %26 : vector<1x1x64xf32> to vector<1x64xf32>
    %c0_11 = arith.constant 0 : index
    %c0_12 = arith.constant 0 : index
    %c0_13 = arith.constant 0 : index
    %28 = vector.load %arg4[%c0_11, %c0_12, %c0_13] : memref<2x1x64xf32, #tpu.memory_space<vmem>>, vector<1x1x64xf32>
    %29 = vector.shape_cast %28 : vector<1x1x64xf32> to vector<1x64xf32>
    %cst_14 = arith.constant dense<0.000000e+00> : vector<32xf32>
    %30 = vector.multi_reduction <add>, %13, %cst_14 [1] : vector<32x64xf32> to vector<32xf32>
    %31 = vector.shape_cast %30 : vector<32xf32> to vector<32x1xf32>
    %cst_15 = arith.constant 6.400000e+01 : f32
    %32 = vector.broadcast %cst_15 : f32 to vector<32x1xf32>
    %33 = arith.divf %31, %32 : vector<32x1xf32>
    %34 = vector.broadcast %33 : vector<32x1xf32> to vector<32x64xf32>
    %35 = arith.subf %13, %34 : vector<32x64xf32>
    %36 = arith.mulf %35, %35 : vector<32x64xf32>
    %cst_16 = arith.constant dense<0.000000e+00> : vector<32xf32>
    %37 = vector.multi_reduction <add>, %36, %cst_16 [1] : vector<32x64xf32> to vector<32xf32>
    %38 = vector.shape_cast %37 : vector<32xf32> to vector<32x1xf32>
    %cst_17 = arith.constant 6.400000e+01 : f32
    %39 = vector.broadcast %cst_17 : f32 to vector<32x1xf32>
    %40 = arith.divf %38, %39 : vector<32x1xf32>
    %41 = vector.broadcast %33 : vector<32x1xf32> to vector<32x64xf32>
    %42 = arith.subf %13, %41 : vector<32x64xf32>
    %cst_18 = arith.constant 9.99999974E-6 : f32
    %43 = vector.broadcast %cst_18 : f32 to vector<32x1xf32>
    %44 = arith.addf %40, %43 : vector<32x1xf32>
    %45 = math.rsqrt %44 : vector<32x1xf32>
    %46 = vector.broadcast %45 : vector<32x1xf32> to vector<32x64xf32>
    %47 = arith.mulf %42, %46 : vector<32x64xf32>
    %48 = vector.broadcast %27 : vector<1x64xf32> to vector<32x64xf32>
    %49 = arith.mulf %47, %48 : vector<32x64xf32>
    %50 = vector.broadcast %29 : vector<1x64xf32> to vector<32x64xf32>
    %51 = arith.addf %49, %50 : vector<32x64xf32>
    %52 = arith.truncf %51 : vector<32x64xf32> to vector<32x64xbf16>
    %c0_19 = arith.constant 0 : index
    %c0_20 = arith.constant 0 : index
    %c0_21 = arith.constant 0 : index
    %53 = vector.load %arg5[%c0_19, %c0_20, %c0_21] : memref<2x192x64xbf16, #tpu.memory_space<vmem>>, vector<1x192x64xbf16>
    %54 = vector.shape_cast %53 : vector<1x192x64xbf16> to vector<192x64xbf16>
    %cst_22 = arith.constant dense<0.000000e+00> : vector<192x32xf32>
    %55 = tpu.matmul %54, %52, %cst_22 {dimension_numbers = #tpu.dot_dimension_numbers<[1], [1], [0], [0], [0, 0, 1, 0], [], []>} : vector<192x64xbf16>, vector<32x64xbf16>, vector<192x32xf32> -> vector<192x32xf32>
    %56 = vector.shape_cast %55 : vector<192x32xf32> to vector<3x4x16x32xf32>
    %57 = vector.extract_strided_slice %56 {offsets = [0, 0, 0, 0], sizes = [1, 4, 16, 32], strides = [1, 1, 1, 1]} : vector<3x4x16x32xf32> to vector<1x4x16x32xf32>
    %58 = vector.shape_cast %57 : vector<1x4x16x32xf32> to vector<4x16x32xf32>
    %59 = tpu.transpose %58, [0, 2, 1] : vector<4x16x32xf32> -> vector<4x32x16xf32>
    %60 = arith.truncf %59 : vector<4x32x16xf32> to vector<4x32x16xbf16>
    %61 = vector.extract_strided_slice %56 {offsets = [1, 0, 0, 0], sizes = [1, 4, 16, 32], strides = [1, 1, 1, 1]} : vector<3x4x16x32xf32> to vector<1x4x16x32xf32>
    %62 = vector.shape_cast %61 : vector<1x4x16x32xf32> to vector<4x16x32xf32>
    %63 = arith.truncf %62 : vector<4x16x32xf32> to vector<4x16x32xbf16>
    %64 = vector.extract_strided_slice %56 {offsets = [2, 0, 0, 0], sizes = [1, 4, 16, 32], strides = [1, 1, 1, 1]} : vector<3x4x16x32xf32> to vector<1x4x16x32xf32>
    %65 = vector.shape_cast %64 : vector<1x4x16x32xf32> to vector<4x16x32xf32>
    %66 = arith.truncf %65 : vector<4x16x32xf32> to vector<4x16x32xbf16>
    %cst_23 = arith.constant dense<0.000000e+00> : vector<4x32x32xf32>
    %67 = tpu.matmul %60, %63, %cst_23 {dimension_numbers = #tpu.dot_dimension_numbers<[2], [1], [1], [2], [0, 0, 0, 1, 1, 2], [0], [0]>} : vector<4x32x16xbf16>, vector<4x16x32xbf16>, vector<4x32x32xf32> -> vector<4x32x32xf32>
    %68 = vector.shape_cast %25 : vector<32x32xf32> to vector<1x32x32xf32>
    %69 = vector.broadcast %68 : vector<1x32x32xf32> to vector<4x32x32xf32>
    %70 = arith.addf %67, %69 : vector<4x32x32xf32>
    %cst_24 = arith.constant dense<0xFF800000> : vector<4x32xf32>
    %71 = vector.multi_reduction <maximumf>, %70, %cst_24 [2] : vector<4x32x32xf32> to vector<4x32xf32>
    %72 = vector.shape_cast %71 : vector<4x32xf32> to vector<4x32x1xf32>
    %73 = vector.broadcast %72 : vector<4x32x1xf32> to vector<4x32x32xf32>
    %74 = arith.subf %70, %73 : vector<4x32x32xf32>
    %75 = math.exp %74 : vector<4x32x32xf32>
    %cst_25 = arith.constant dense<0.000000e+00> : vector<4x32xf32>
    %76 = vector.multi_reduction <add>, %75, %cst_25 [2] : vector<4x32x32xf32> to vector<4x32xf32>
    %77 = vector.shape_cast %76 : vector<4x32xf32> to vector<4x32x1xf32>
    %78 = tpu.reciprocal %77 {approx = true} : vector<4x32x1xf32> -> vector<4x32x1xf32>
    %79 = vector.broadcast %78 : vector<4x32x1xf32> to vector<4x32x32xf32>
    %80 = arith.mulf %75, %79 : vector<4x32x32xf32>
    %81 = arith.truncf %80 : vector<4x32x32xf32> to vector<4x32x32xbf16>
    %cst_26 = arith.constant dense<0.000000e+00> : vector<4x16x32xf32>
    %82 = tpu.matmul %66, %81, %cst_26 {dimension_numbers = #tpu.dot_dimension_numbers<[2], [2], [1], [1], [0, 0, 0, 1, 1, 1], [0], [0]>} : vector<4x16x32xbf16>, vector<4x32x32xbf16>, vector<4x16x32xf32> -> vector<4x16x32xf32>
    %83 = vector.shape_cast %82 : vector<4x16x32xf32> to vector<64x32xf32>
    %84 = tpu.transpose %83, [1, 0] : vector<64x32xf32> -> vector<32x64xf32>
    %85 = arith.truncf %84 : vector<32x64xf32> to vector<32x64xbf16>
    %c0_27 = arith.constant 0 : index
    %c0_28 = arith.constant 0 : index
    %c0_29 = arith.constant 0 : index
    %86 = vector.load %arg6[%c0_27, %c0_28, %c0_29] : memref<2x64x64xbf16, #tpu.memory_space<vmem>>, vector<1x64x64xbf16>
    %87 = vector.shape_cast %86 : vector<1x64x64xbf16> to vector<64x64xbf16>
    %cst_30 = arith.constant dense<0.000000e+00> : vector<32x64xf32>
    %88 = tpu.matmul %85, %87, %cst_30 {dimension_numbers = #tpu.dot_dimension_numbers<[1], [0], [0], [1], [0, 0, 1, 1], [], []>} : vector<32x64xbf16>, vector<64x64xbf16>, vector<32x64xf32> -> vector<32x64xf32>
    %89 = arith.addf %13, %88 : vector<32x64xf32>
    %c0_31 = arith.constant 0 : index
    %c0_32 = arith.constant 0 : index
    %c0_33 = arith.constant 0 : index
    %90 = vector.load %arg7[%c0_31, %c0_32, %c0_33] : memref<2x1x64xf32, #tpu.memory_space<vmem>>, vector<1x1x64xf32>
    %91 = vector.shape_cast %90 : vector<1x1x64xf32> to vector<1x64xf32>
    %92 = vector.broadcast %91 : vector<1x64xf32> to vector<32x64xf32>
    %93 = arith.addf %89, %92 : vector<32x64xf32>
    %c0_34 = arith.constant 0 : index
    %c0_35 = arith.constant 0 : index
    %c0_36 = arith.constant 0 : index
    %94 = vector.load %arg8[%c0_34, %c0_35, %c0_36] : memref<2x1x64xf32, #tpu.memory_space<vmem>>, vector<1x1x64xf32>
    %95 = vector.shape_cast %94 : vector<1x1x64xf32> to vector<1x64xf32>
    %c0_37 = arith.constant 0 : index
    %c0_38 = arith.constant 0 : index
    %c0_39 = arith.constant 0 : index
    %96 = vector.load %arg9[%c0_37, %c0_38, %c0_39] : memref<2x1x64xf32, #tpu.memory_space<vmem>>, vector<1x1x64xf32>
    %97 = vector.shape_cast %96 : vector<1x1x64xf32> to vector<1x64xf32>
    %cst_40 = arith.constant dense<0.000000e+00> : vector<32xf32>
    %98 = vector.multi_reduction <add>, %93, %cst_40 [1] : vector<32x64xf32> to vector<32xf32>
    %99 = vector.shape_cast %98 : vector<32xf32> to vector<32x1xf32>
    %cst_41 = arith.constant 6.400000e+01 : f32
    %100 = vector.broadcast %cst_41 : f32 to vector<32x1xf32>
    %101 = arith.divf %99, %100 : vector<32x1xf32>
    %102 = vector.broadcast %101 : vector<32x1xf32> to vector<32x64xf32>
    %103 = arith.subf %93, %102 : vector<32x64xf32>
    %104 = arith.mulf %103, %103 : vector<32x64xf32>
    %cst_42 = arith.constant dense<0.000000e+00> : vector<32xf32>
    %105 = vector.multi_reduction <add>, %104, %cst_42 [1] : vector<32x64xf32> to vector<32xf32>
    %106 = vector.shape_cast %105 : vector<32xf32> to vector<32x1xf32>
    %cst_43 = arith.constant 6.400000e+01 : f32
    %107 = vector.broadcast %cst_43 : f32 to vector<32x1xf32>
    %108 = arith.divf %106, %107 : vector<32x1xf32>
    %109 = vector.broadcast %101 : vector<32x1xf32> to vector<32x64xf32>
    %110 = arith.subf %93, %109 : vector<32x64xf32>
    %cst_44 = arith.constant 9.99999974E-6 : f32
    %111 = vector.broadcast %cst_44 : f32 to vector<32x1xf32>
    %112 = arith.addf %108, %111 : vector<32x1xf32>
    %113 = math.rsqrt %112 : vector<32x1xf32>
    %114 = vector.broadcast %113 : vector<32x1xf32> to vector<32x64xf32>
    %115 = arith.mulf %110, %114 : vector<32x64xf32>
    %116 = vector.broadcast %95 : vector<1x64xf32> to vector<32x64xf32>
    %117 = arith.mulf %115, %116 : vector<32x64xf32>
    %118 = vector.broadcast %97 : vector<1x64xf32> to vector<32x64xf32>
    %119 = arith.addf %117, %118 : vector<32x64xf32>
    %120 = arith.truncf %119 : vector<32x64xf32> to vector<32x64xbf16>
    %c0_45 = arith.constant 0 : index
    %c0_46 = arith.constant 0 : index
    %c0_47 = arith.constant 0 : index
    %121 = vector.load %arg10[%c0_45, %c0_46, %c0_47] : memref<2x64x256xbf16, #tpu.memory_space<vmem>>, vector<1x64x256xbf16>
    %122 = vector.shape_cast %121 : vector<1x64x256xbf16> to vector<64x256xbf16>
    %cst_48 = arith.constant dense<0.000000e+00> : vector<32x256xf32>
    %123 = tpu.matmul %120, %122, %cst_48 {dimension_numbers = #tpu.dot_dimension_numbers<[1], [0], [0], [1], [0, 0, 1, 1], [], []>} : vector<32x64xbf16>, vector<64x256xbf16>, vector<32x256xf32> -> vector<32x256xf32>
    %c0_49 = arith.constant 0 : index
    %c0_50 = arith.constant 0 : index
    %c0_51 = arith.constant 0 : index
    %124 = vector.load %arg11[%c0_49, %c0_50, %c0_51] : memref<2x1x256xf32, #tpu.memory_space<vmem>>, vector<1x1x256xf32>
    %125 = vector.shape_cast %124 : vector<1x1x256xf32> to vector<1x256xf32>
    %126 = vector.broadcast %125 : vector<1x256xf32> to vector<32x256xf32>
    %127 = arith.addf %123, %126 : vector<32x256xf32>
    %cst_52 = arith.constant 0.000000e+00 : f32
    %128 = vector.broadcast %cst_52 : f32 to vector<32x256xf32>
    %129 = arith.maximumf %127, %128 : vector<32x256xf32>
    %130 = arith.truncf %129 : vector<32x256xf32> to vector<32x256xbf16>
    %c0_53 = arith.constant 0 : index
    %c0_54 = arith.constant 0 : index
    %c0_55 = arith.constant 0 : index
    %131 = vector.load %arg12[%c0_53, %c0_54, %c0_55] : memref<2x256x64xbf16, #tpu.memory_space<vmem>>, vector<1x256x64xbf16>
    %132 = vector.shape_cast %131 : vector<1x256x64xbf16> to vector<256x64xbf16>
    %cst_56 = arith.constant dense<0.000000e+00> : vector<32x64xf32>
    %133 = tpu.matmul %130, %132, %cst_56 {dimension_numbers = #tpu.dot_dimension_numbers<[1], [0], [0], [1], [0, 0, 1, 1], [], []>} : vector<32x256xbf16>, vector<256x64xbf16>, vector<32x64xf32> -> vector<32x64xf32>
    %c0_57 = arith.constant 0 : index
    %c0_58 = arith.constant 0 : index
    %c0_59 = arith.constant 0 : index
    %134 = vector.load %arg13[%c0_57, %c0_58, %c0_59] : memref<2x1x64xf32, #tpu.memory_space<vmem>>, vector<1x1x64xf32>
    %135 = vector.shape_cast %134 : vector<1x1x64xf32> to vector<1x64xf32>
    %136 = vector.broadcast %135 : vector<1x64xf32> to vector<32x64xf32>
    %137 = arith.addf %133, %136 : vector<32x64xf32>
    %138 = arith.addf %93, %137 : vector<32x64xf32>
    %c1 = arith.constant 1 : index
    %c0_60 = arith.constant 0 : index
    %c0_61 = arith.constant 0 : index
    %139 = vector.load %arg3[%c1, %c0_60, %c0_61] : memref<2x1x64xf32, #tpu.memory_space<vmem>>, vector<1x1x64xf32>
    %140 = vector.shape_cast %139 : vector<1x1x64xf32> to vector<1x64xf32>
    %c1_62 = arith.constant 1 : index
    %c0_63 = arith.constant 0 : index
    %c0_64 = arith.constant 0 : index
    %141 = vector.load %arg4[%c1_62, %c0_63, %c0_64] : memref<2x1x64xf32, #tpu.memory_space<vmem>>, vector<1x1x64xf32>
    %142 = vector.shape_cast %141 : vector<1x1x64xf32> to vector<1x64xf32>
    %cst_65 = arith.constant dense<0.000000e+00> : vector<32xf32>
    %143 = vector.multi_reduction <add>, %138, %cst_65 [1] : vector<32x64xf32> to vector<32xf32>
    %144 = vector.shape_cast %143 : vector<32xf32> to vector<32x1xf32>
    %cst_66 = arith.constant 6.400000e+01 : f32
    %145 = vector.broadcast %cst_66 : f32 to vector<32x1xf32>
    %146 = arith.divf %144, %145 : vector<32x1xf32>
    %147 = vector.broadcast %146 : vector<32x1xf32> to vector<32x64xf32>
    %148 = arith.subf %138, %147 : vector<32x64xf32>
    %149 = arith.mulf %148, %148 : vector<32x64xf32>
    %cst_67 = arith.constant dense<0.000000e+00> : vector<32xf32>
    %150 = vector.multi_reduction <add>, %149, %cst_67 [1] : vector<32x64xf32> to vector<32xf32>
    %151 = vector.shape_cast %150 : vector<32xf32> to vector<32x1xf32>
    %cst_68 = arith.constant 6.400000e+01 : f32
    %152 = vector.broadcast %cst_68 : f32 to vector<32x1xf32>
    %153 = arith.divf %151, %152 : vector<32x1xf32>
    %154 = vector.broadcast %146 : vector<32x1xf32> to vector<32x64xf32>
    %155 = arith.subf %138, %154 : vector<32x64xf32>
    %cst_69 = arith.constant 9.99999974E-6 : f32
    %156 = vector.broadcast %cst_69 : f32 to vector<32x1xf32>
    %157 = arith.addf %153, %156 : vector<32x1xf32>
    %158 = math.rsqrt %157 : vector<32x1xf32>
    %159 = vector.broadcast %158 : vector<32x1xf32> to vector<32x64xf32>
    %160 = arith.mulf %155, %159 : vector<32x64xf32>
    %161 = vector.broadcast %140 : vector<1x64xf32> to vector<32x64xf32>
    %162 = arith.mulf %160, %161 : vector<32x64xf32>
    %163 = vector.broadcast %142 : vector<1x64xf32> to vector<32x64xf32>
    %164 = arith.addf %162, %163 : vector<32x64xf32>
    %165 = arith.truncf %164 : vector<32x64xf32> to vector<32x64xbf16>
    %c1_70 = arith.constant 1 : index
    %c0_71 = arith.constant 0 : index
    %c0_72 = arith.constant 0 : index
    %166 = vector.load %arg5[%c1_70, %c0_71, %c0_72] : memref<2x192x64xbf16, #tpu.memory_space<vmem>>, vector<1x192x64xbf16>
    %167 = vector.shape_cast %166 : vector<1x192x64xbf16> to vector<192x64xbf16>
    %cst_73 = arith.constant dense<0.000000e+00> : vector<192x32xf32>
    %168 = tpu.matmul %167, %165, %cst_73 {dimension_numbers = #tpu.dot_dimension_numbers<[1], [1], [0], [0], [0, 0, 1, 0], [], []>} : vector<192x64xbf16>, vector<32x64xbf16>, vector<192x32xf32> -> vector<192x32xf32>
    %169 = vector.shape_cast %168 : vector<192x32xf32> to vector<3x4x16x32xf32>
    %170 = vector.extract_strided_slice %169 {offsets = [0, 0, 0, 0], sizes = [1, 4, 16, 32], strides = [1, 1, 1, 1]} : vector<3x4x16x32xf32> to vector<1x4x16x32xf32>
    %171 = vector.shape_cast %170 : vector<1x4x16x32xf32> to vector<4x16x32xf32>
    %172 = tpu.transpose %171, [0, 2, 1] : vector<4x16x32xf32> -> vector<4x32x16xf32>
    %173 = arith.truncf %172 : vector<4x32x16xf32> to vector<4x32x16xbf16>
    %174 = vector.extract_strided_slice %169 {offsets = [1, 0, 0, 0], sizes = [1, 4, 16, 32], strides = [1, 1, 1, 1]} : vector<3x4x16x32xf32> to vector<1x4x16x32xf32>
    %175 = vector.shape_cast %174 : vector<1x4x16x32xf32> to vector<4x16x32xf32>
    %176 = arith.truncf %175 : vector<4x16x32xf32> to vector<4x16x32xbf16>
    %177 = vector.extract_strided_slice %169 {offsets = [2, 0, 0, 0], sizes = [1, 4, 16, 32], strides = [1, 1, 1, 1]} : vector<3x4x16x32xf32> to vector<1x4x16x32xf32>
    %178 = vector.shape_cast %177 : vector<1x4x16x32xf32> to vector<4x16x32xf32>
    %179 = arith.truncf %178 : vector<4x16x32xf32> to vector<4x16x32xbf16>
    %cst_74 = arith.constant dense<0.000000e+00> : vector<4x32x32xf32>
    %180 = tpu.matmul %173, %176, %cst_74 {dimension_numbers = #tpu.dot_dimension_numbers<[2], [1], [1], [2], [0, 0, 0, 1, 1, 2], [0], [0]>} : vector<4x32x16xbf16>, vector<4x16x32xbf16>, vector<4x32x32xf32> -> vector<4x32x32xf32>
    %181 = vector.shape_cast %25 : vector<32x32xf32> to vector<1x32x32xf32>
    %182 = vector.broadcast %181 : vector<1x32x32xf32> to vector<4x32x32xf32>
    %183 = arith.addf %180, %182 : vector<4x32x32xf32>
    %cst_75 = arith.constant dense<0xFF800000> : vector<4x32xf32>
    %184 = vector.multi_reduction <maximumf>, %183, %cst_75 [2] : vector<4x32x32xf32> to vector<4x32xf32>
    %185 = vector.shape_cast %184 : vector<4x32xf32> to vector<4x32x1xf32>
    %186 = vector.broadcast %185 : vector<4x32x1xf32> to vector<4x32x32xf32>
    %187 = arith.subf %183, %186 : vector<4x32x32xf32>
    %188 = math.exp %187 : vector<4x32x32xf32>
    %cst_76 = arith.constant dense<0.000000e+00> : vector<4x32xf32>
    %189 = vector.multi_reduction <add>, %188, %cst_76 [2] : vector<4x32x32xf32> to vector<4x32xf32>
    %190 = vector.shape_cast %189 : vector<4x32xf32> to vector<4x32x1xf32>
    %191 = tpu.reciprocal %190 {approx = true} : vector<4x32x1xf32> -> vector<4x32x1xf32>
    %192 = vector.broadcast %191 : vector<4x32x1xf32> to vector<4x32x32xf32>
    %193 = arith.mulf %188, %192 : vector<4x32x32xf32>
    %194 = arith.truncf %193 : vector<4x32x32xf32> to vector<4x32x32xbf16>
    %cst_77 = arith.constant dense<0.000000e+00> : vector<4x16x32xf32>
    %195 = tpu.matmul %179, %194, %cst_77 {dimension_numbers = #tpu.dot_dimension_numbers<[2], [2], [1], [1], [0, 0, 0, 1, 1, 1], [0], [0]>} : vector<4x16x32xbf16>, vector<4x32x32xbf16>, vector<4x16x32xf32> -> vector<4x16x32xf32>
    %196 = vector.shape_cast %195 : vector<4x16x32xf32> to vector<64x32xf32>
    %197 = tpu.transpose %196, [1, 0] : vector<64x32xf32> -> vector<32x64xf32>
    %198 = arith.truncf %197 : vector<32x64xf32> to vector<32x64xbf16>
    %c1_78 = arith.constant 1 : index
    %c0_79 = arith.constant 0 : index
    %c0_80 = arith.constant 0 : index
    %199 = vector.load %arg6[%c1_78, %c0_79, %c0_80] : memref<2x64x64xbf16, #tpu.memory_space<vmem>>, vector<1x64x64xbf16>
    %200 = vector.shape_cast %199 : vector<1x64x64xbf16> to vector<64x64xbf16>
    %cst_81 = arith.constant dense<0.000000e+00> : vector<32x64xf32>
    %201 = tpu.matmul %198, %200, %cst_81 {dimension_numbers = #tpu.dot_dimension_numbers<[1], [0], [0], [1], [0, 0, 1, 1], [], []>} : vector<32x64xbf16>, vector<64x64xbf16>, vector<32x64xf32> -> vector<32x64xf32>
    %202 = arith.addf %138, %201 : vector<32x64xf32>
    %c1_82 = arith.constant 1 : index
    %c0_83 = arith.constant 0 : index
    %c0_84 = arith.constant 0 : index
    %203 = vector.load %arg7[%c1_82, %c0_83, %c0_84] : memref<2x1x64xf32, #tpu.memory_space<vmem>>, vector<1x1x64xf32>
    %204 = vector.shape_cast %203 : vector<1x1x64xf32> to vector<1x64xf32>
    %205 = vector.broadcast %204 : vector<1x64xf32> to vector<32x64xf32>
    %206 = arith.addf %202, %205 : vector<32x64xf32>
    %c1_85 = arith.constant 1 : index
    %c0_86 = arith.constant 0 : index
    %c0_87 = arith.constant 0 : index
    %207 = vector.load %arg8[%c1_85, %c0_86, %c0_87] : memref<2x1x64xf32, #tpu.memory_space<vmem>>, vector<1x1x64xf32>
    %208 = vector.shape_cast %207 : vector<1x1x64xf32> to vector<1x64xf32>
    %c1_88 = arith.constant 1 : index
    %c0_89 = arith.constant 0 : index
    %c0_90 = arith.constant 0 : index
    %209 = vector.load %arg9[%c1_88, %c0_89, %c0_90] : memref<2x1x64xf32, #tpu.memory_space<vmem>>, vector<1x1x64xf32>
    %210 = vector.shape_cast %209 : vector<1x1x64xf32> to vector<1x64xf32>
    %cst_91 = arith.constant dense<0.000000e+00> : vector<32xf32>
    %211 = vector.multi_reduction <add>, %206, %cst_91 [1] : vector<32x64xf32> to vector<32xf32>
    %212 = vector.shape_cast %211 : vector<32xf32> to vector<32x1xf32>
    %cst_92 = arith.constant 6.400000e+01 : f32
    %213 = vector.broadcast %cst_92 : f32 to vector<32x1xf32>
    %214 = arith.divf %212, %213 : vector<32x1xf32>
    %215 = vector.broadcast %214 : vector<32x1xf32> to vector<32x64xf32>
    %216 = arith.subf %206, %215 : vector<32x64xf32>
    %217 = arith.mulf %216, %216 : vector<32x64xf32>
    %cst_93 = arith.constant dense<0.000000e+00> : vector<32xf32>
    %218 = vector.multi_reduction <add>, %217, %cst_93 [1] : vector<32x64xf32> to vector<32xf32>
    %219 = vector.shape_cast %218 : vector<32xf32> to vector<32x1xf32>
    %cst_94 = arith.constant 6.400000e+01 : f32
    %220 = vector.broadcast %cst_94 : f32 to vector<32x1xf32>
    %221 = arith.divf %219, %220 : vector<32x1xf32>
    %222 = vector.broadcast %214 : vector<32x1xf32> to vector<32x64xf32>
    %223 = arith.subf %206, %222 : vector<32x64xf32>
    %cst_95 = arith.constant 9.99999974E-6 : f32
    %224 = vector.broadcast %cst_95 : f32 to vector<32x1xf32>
    %225 = arith.addf %221, %224 : vector<32x1xf32>
    %226 = math.rsqrt %225 : vector<32x1xf32>
    %227 = vector.broadcast %226 : vector<32x1xf32> to vector<32x64xf32>
    %228 = arith.mulf %223, %227 : vector<32x64xf32>
    %229 = vector.broadcast %208 : vector<1x64xf32> to vector<32x64xf32>
    %230 = arith.mulf %228, %229 : vector<32x64xf32>
    %231 = vector.broadcast %210 : vector<1x64xf32> to vector<32x64xf32>
    %232 = arith.addf %230, %231 : vector<32x64xf32>
    %233 = arith.truncf %232 : vector<32x64xf32> to vector<32x64xbf16>
    %c1_96 = arith.constant 1 : index
    %c0_97 = arith.constant 0 : index
    %c0_98 = arith.constant 0 : index
    %234 = vector.load %arg10[%c1_96, %c0_97, %c0_98] : memref<2x64x256xbf16, #tpu.memory_space<vmem>>, vector<1x64x256xbf16>
    %235 = vector.shape_cast %234 : vector<1x64x256xbf16> to vector<64x256xbf16>
    %cst_99 = arith.constant dense<0.000000e+00> : vector<32x256xf32>
    %236 = tpu.matmul %233, %235, %cst_99 {dimension_numbers = #tpu.dot_dimension_numbers<[1], [0], [0], [1], [0, 0, 1, 1], [], []>} : vector<32x64xbf16>, vector<64x256xbf16>, vector<32x256xf32> -> vector<32x256xf32>
    %c1_100 = arith.constant 1 : index
    %c0_101 = arith.constant 0 : index
    %c0_102 = arith.constant 0 : index
    %237 = vector.load %arg11[%c1_100, %c0_101, %c0_102] : memref<2x1x256xf32, #tpu.memory_space<vmem>>, vector<1x1x256xf32>
    %238 = vector.shape_cast %237 : vector<1x1x256xf32> to vector<1x256xf32>
    %239 = vector.broadcast %238 : vector<1x256xf32> to vector<32x256xf32>
    %240 = arith.addf %236, %239 : vector<32x256xf32>
    %cst_103 = arith.constant 0.000000e+00 : f32
    %241 = vector.broadcast %cst_103 : f32 to vector<32x256xf32>
    %242 = arith.maximumf %240, %241 : vector<32x256xf32>
    %243 = arith.truncf %242 : vector<32x256xf32> to vector<32x256xbf16>
    %c1_104 = arith.constant 1 : index
    %c0_105 = arith.constant 0 : index
    %c0_106 = arith.constant 0 : index
    %244 = vector.load %arg12[%c1_104, %c0_105, %c0_106] : memref<2x256x64xbf16, #tpu.memory_space<vmem>>, vector<1x256x64xbf16>
    %245 = vector.shape_cast %244 : vector<1x256x64xbf16> to vector<256x64xbf16>
    %cst_107 = arith.constant dense<0.000000e+00> : vector<32x64xf32>
    %246 = tpu.matmul %243, %245, %cst_107 {dimension_numbers = #tpu.dot_dimension_numbers<[1], [0], [0], [1], [0, 0, 1, 1], [], []>} : vector<32x256xbf16>, vector<256x64xbf16>, vector<32x64xf32> -> vector<32x64xf32>
    %c1_108 = arith.constant 1 : index
    %c0_109 = arith.constant 0 : index
    %c0_110 = arith.constant 0 : index
    %247 = vector.load %arg13[%c1_108, %c0_109, %c0_110] : memref<2x1x64xf32, #tpu.memory_space<vmem>>, vector<1x1x64xf32>
    %248 = vector.shape_cast %247 : vector<1x1x64xf32> to vector<1x64xf32>
    %249 = vector.broadcast %248 : vector<1x64xf32> to vector<32x64xf32>
    %250 = arith.addf %246, %249 : vector<32x64xf32>
    %251 = arith.addf %206, %250 : vector<32x64xf32>
    %c0_111 = arith.constant 0 : index
    %c0_112 = arith.constant 0 : index
    %252 = vector.load %arg14[%c0_111, %c0_112] : memref<1x64xf32, #tpu.memory_space<vmem>>, vector<1x64xf32>
    %c0_113 = arith.constant 0 : index
    %c0_114 = arith.constant 0 : index
    %253 = vector.load %arg15[%c0_113, %c0_114] : memref<1x64xf32, #tpu.memory_space<vmem>>, vector<1x64xf32>
    %cst_115 = arith.constant dense<0.000000e+00> : vector<32xf32>
    %254 = vector.multi_reduction <add>, %251, %cst_115 [1] : vector<32x64xf32> to vector<32xf32>
    %255 = vector.shape_cast %254 : vector<32xf32> to vector<32x1xf32>
    %cst_116 = arith.constant 6.400000e+01 : f32
    %256 = vector.broadcast %cst_116 : f32 to vector<32x1xf32>
    %257 = arith.divf %255, %256 : vector<32x1xf32>
    %258 = vector.broadcast %257 : vector<32x1xf32> to vector<32x64xf32>
    %259 = arith.subf %251, %258 : vector<32x64xf32>
    %260 = arith.mulf %259, %259 : vector<32x64xf32>
    %cst_117 = arith.constant dense<0.000000e+00> : vector<32xf32>
    %261 = vector.multi_reduction <add>, %260, %cst_117 [1] : vector<32x64xf32> to vector<32xf32>
    %262 = vector.shape_cast %261 : vector<32xf32> to vector<32x1xf32>
    %cst_118 = arith.constant 6.400000e+01 : f32
    %263 = vector.broadcast %cst_118 : f32 to vector<32x1xf32>
    %264 = arith.divf %262, %263 : vector<32x1xf32>
    %265 = vector.broadcast %257 : vector<32x1xf32> to vector<32x64xf32>
    %266 = arith.subf %251, %265 : vector<32x64xf32>
    %cst_119 = arith.constant 9.99999974E-6 : f32
    %267 = vector.broadcast %cst_119 : f32 to vector<32x1xf32>
    %268 = arith.addf %264, %267 : vector<32x1xf32>
    %269 = math.rsqrt %268 : vector<32x1xf32>
    %270 = vector.broadcast %269 : vector<32x1xf32> to vector<32x64xf32>
    %271 = arith.mulf %266, %270 : vector<32x64xf32>
    %272 = vector.broadcast %252 : vector<1x64xf32> to vector<32x64xf32>
    %273 = arith.mulf %271, %272 : vector<32x64xf32>
    %274 = vector.broadcast %253 : vector<1x64xf32> to vector<32x64xf32>
    %275 = arith.addf %273, %274 : vector<32x64xf32>
    %276 = arith.truncf %275 : vector<32x64xf32> to vector<32x64xbf16>
    %c0_120 = arith.constant 0 : index
    %c0_121 = arith.constant 0 : index
    %277 = vector.load %arg16[%c0_120, %c0_121] : memref<64x128xbf16, #tpu.memory_space<vmem>>, vector<64x128xbf16>
    %cst_122 = arith.constant dense<0.000000e+00> : vector<32x128xf32>
    %278 = tpu.matmul %276, %277, %cst_122 {dimension_numbers = #tpu.dot_dimension_numbers<[1], [0], [0], [1], [0, 0, 1, 1], [], []>} : vector<32x64xbf16>, vector<64x128xbf16>, vector<32x128xf32> -> vector<32x128xf32>
    %c0_123 = arith.constant 0 : index
    %c0_124 = arith.constant 0 : index
    %279 = vector.load %arg17[%c0_123, %c0_124] : memref<1x128xf32, #tpu.memory_space<vmem>>, vector<1x128xf32>
    %280 = vector.broadcast %279 : vector<1x128xf32> to vector<32x128xf32>
    %281 = arith.addf %278, %280 : vector<32x128xf32>
    %c0_125 = arith.constant 0 : index
    %c0_126 = arith.constant 0 : index
    %282 = vector.load %arg18[%c0_125, %c0_126] : memref<32x128xf32, #tpu.memory_space<vmem>>, vector<32x128xf32>
    tpu.vector_store %arg18[%c0_125, %c0_126], %281 {strides = array<i32>} : memref<32x128xf32, #tpu.memory_space<vmem>>, vector<32x128xf32>,
    return
  }
}

</mosaic_0001>

<llo_original>
// kernel: gpt_forward.1
$region0: #{gpt_forward.1}
  #allocation0 [shape = 'u32[]', space=smem, size = 0x4, offset = 0x4, fixed_abs, tag = 'smem constant byte address 0x4 - core index']
  #allocation1 [shape = 'u32[144,128]{1,0:T(1,128)}', space=vmem, size = 0x12000, scoped, tag = 'internal scratch']
  %s0 = inlined_call_operand.vmem [shape: s32[32,1], index: 0, kind: input, shape index: {}]
  %s1 = inlined_call_operand.vmem [shape: f32[128,64], index: 1, kind: input, shape index: {}]
  %s2 = inlined_call_operand.vmem [shape: f32[16,64], index: 2, kind: input, shape index: {}]
  %s3 = inlined_call_operand.vmem [shape: f32[2,1,64], index: 3, kind: input, shape index: {}]
  %s4 = inlined_call_operand.vmem [shape: f32[2,1,64], index: 4, kind: input, shape index: {}]
  %s5 = inlined_call_operand.vmem [shape: bf16[2,192,64], index: 5, kind: input, shape index: {}]
  %s6 = inlined_call_operand.vmem [shape: bf16[2,64,64], index: 6, kind: input, shape index: {}]
  %s7 = inlined_call_operand.vmem [shape: f32[2,1,64], index: 7, kind: input, shape index: {}]
  %s8 = inlined_call_operand.vmem [shape: f32[2,1,64], index: 8, kind: input, shape index: {}]
  %s9 = inlined_call_operand.vmem [shape: f32[2,1,64], index: 9, kind: input, shape index: {}]
  %s10 = inlined_call_operand.vmem [shape: bf16[2,64,256], index: 10, kind: input, shape index: {}]
  %s11 = inlined_call_operand.vmem [shape: f32[2,1,256], index: 11, kind: input, shape index: {}]
  %s12 = inlined_call_operand.vmem [shape: bf16[2,256,64], index: 12, kind: input, shape index: {}]
  %s13 = inlined_call_operand.vmem [shape: f32[2,1,64], index: 13, kind: input, shape index: {}]
  %s14 = inlined_call_operand.vmem [shape: f32[1,64], index: 14, kind: input, shape index: {}]
  %s15 = inlined_call_operand.vmem [shape: f32[1,64], index: 15, kind: input, shape index: {}]
  %s16 = inlined_call_operand.vmem [shape: bf16[64,128], index: 16, kind: input, shape index: {}]
  %s17 = inlined_call_operand.vmem [shape: f32[1,128], index: 17, kind: input, shape index: {}]
  %s18 = inlined_call_operand.hbm [shape: f32[32,128], index: 18, kind: output, shape index: {}]
  %s19 = sld [smem:[#allocation0]]
  $region82: #{gpt_forward.1} parent=0
    _
  %s21 = ssub.s32 1, %s19
  %s22 = scalar_select 0, %s21, %s19
  $region1: #{gpt_forward.1} parent=0
    #allocation2 [shape = 'u8[16384]{0}', space=vmem, size = 0x4000, scoped, tag = 'output window, operand 0, single buffered']
    #allocation3 [shape = 's32[1]{0}', space=sflag, size = 0x4, scoped, tag = 'scoped memory for gpt_forward.1']
    %23 = vsyncpa [#allocation3], 0
    // Predicated region
    $region2: #{gpt_forward.1} parent=1 // pred_check
      _
    $region3: #{gpt_forward.1} parent=1 // pred_check_branch
      %25 = sbr.rel (0) target = $region5
    $region4: #{gpt_forward.1} parent=1 // pred_region
      _
    $region5: #{gpt_forward.1} parent=1 // pred_fallthru
      _
    // Predicated region
    $region6: #{gpt_forward.1} parent=1 // pred_check
      _
    $region7: #{gpt_forward.1} parent=1 // pred_check_branch
      %27 = sbr.rel (0) target = $region9
    $region8: #{gpt_forward.1} parent=1 // pred_region
      _
    $region9: #{gpt_forward.1} parent=1 // pred_fallthru
      _
    // Predicated region
    $region10: #{gpt_forward.1} parent=1 // pred_check
      _
    $region11: #{gpt_forward.1} parent=1 // pred_check_branch
      %29 = sbr.rel (0) target = $region13
    $region12: #{gpt_forward.1} parent=1 // pred_region
      _
    $region13: #{gpt_forward.1} parent=1 // pred_fallthru
      _
    // Predicated region
    $region14: #{gpt_forward.1} parent=1 // pred_check
      _
    $region15: #{gpt_forward.1} parent=1 // pred_check_branch
      %31 = sbr.rel (0) target = $region17
    $region16: #{gpt_forward.1} parent=1 // pred_region
      _
    $region17: #{gpt_forward.1} parent=1 // pred_fallthru
      _
    // Predicated region
    $region18: #{gpt_forward.1} parent=1 // pred_check
      _
    $region19: #{gpt_forward.1} parent=1 // pred_check_branch
      %33 = sbr.rel (0) target = $region21
    $region20: #{gpt_forward.1} parent=1 // pred_region
      _
    $region21: #{gpt_forward.1} parent=1 // pred_fallthru
      _
    // Predicated region
    $region22: #{gpt_forward.1} parent=1 // pred_check
      _
    $region23: #{gpt_forward.1} parent=1 // pred_check_branch
      %35 = sbr.rel (0) target = $region25
    $region24: #{gpt_forward.1} parent=1 // pred_region
      _
    $region25: #{gpt_forward.1} parent=1 // pred_fallthru
      _
    // Predicated region
    $region26: #{gpt_forward.1} parent=1 // pred_check
      _
    $region27: #{gpt_forward.1} parent=1 // pred_check_branch
      %37 = sbr.rel (0) target = $region29
    $region28: #{gpt_forward.1} parent=1 // pred_region
      _
    $region29: #{gpt_forward.1} parent=1 // pred_fallthru
      _
    // Predicated region
    $region30: #{gpt_forward.1} parent=1 // pred_check
      _
    $region31: #{gpt_forward.1} parent=1 // pred_check_branch
      %39 = sbr.rel (0) target = $region33
    $region32: #{gpt_forward.1} parent=1 // pred_region
      _
    $region33: #{gpt_forward.1} parent=1 // pred_fallthru
      _
    // Predicated region
    $region34: #{gpt_forward.1} parent=1 // pred_check
      _
    $region35: #{gpt_forward.1} parent=1 // pred_check_branch
      %41 = sbr.rel (0) target = $region37
    $region36: #{gpt_forward.1} parent=1 // pred_region
      _
    $region37: #{gpt_forward.1} parent=1 // pred_fallthru
      _
    // Predicated region
    $region38: #{gpt_forward.1} parent=1 // pred_check
      _
    $region39: #{gpt_forward.1} parent=1 // pred_check_branch
      %43 = sbr.rel (0) target = $region41
    $region40: #{gpt_forward.1} parent=1 // pred_region
      _
    $region41: #{gpt_forward.1} parent=1 // pred_fallthru
      _
    // Predicated region
    $region42: #{gpt_forward.1} parent=1 // pred_check
      _
    $region43: #{gpt_forward.1} parent=1 // pred_check_branch
      %45 = sbr.rel (0) target = $region45
    $region44: #{gpt_forward.1} parent=1 // pred_region
      _
    $region45: #{gpt_forward.1} parent=1 // pred_fallthru
      _
    // Predicated region
    $region46: #{gpt_forward.1} parent=1 // pred_check
      _
    $region47: #{gpt_forward.1} parent=1 // pred_check_branch
      %47 = sbr.rel (0) target = $region49
    $region48: #{gpt_forward.1} parent=1 // pred_region
      _
    $region49: #{gpt_forward.1} parent=1 // pred_fallthru
      _
    // Predicated region
    $region50: #{gpt_forward.1} parent=1 // pred_check
      _
    $region51: #{gpt_forward.1} parent=1 // pred_check_branch
      %49 = sbr.rel (0) target = $region53
    $region52: #{gpt_forward.1} parent=1 // pred_region
      _
    $region53: #{gpt_forward.1} parent=1 // pred_fallthru
      _
    // Predicated region
    $region54: #{gpt_forward.1} parent=1 // pred_check
      _
    $region55: #{gpt_forward.1} parent=1 // pred_check_branch
      %51 = sbr.rel (0) target = $region57
    $region56: #{gpt_forward.1} parent=1 // pred_region
      _
    $region57: #{gpt_forward.1} parent=1 // pred_fallthru
      _
    // Predicated region
    $region58: #{gpt_forward.1} parent=1 // pred_check
      _
    $region59: #{gpt_forward.1} parent=1 // pred_check_branch
      %53 = sbr.rel (0) target = $region61
    $region60: #{gpt_forward.1} parent=1 // pred_region
      _
    $region61: #{gpt_forward.1} parent=1 // pred_fallthru
      _
    // Predicated region
    $region62: #{gpt_forward.1} parent=1 // pred_check
      _
    $region63: #{gpt_forward.1} parent=1 // pred_check_branch
      %55 = sbr.rel (0) target = $region65
    $region64: #{gpt_forward.1} parent=1 // pred_region
      _
    $region65: #{gpt_forward.1} parent=1 // pred_fallthru
      _
    // Predicated region
    $region66: #{gpt_forward.1} parent=1 // pred_check
      _
    $region67: #{gpt_forward.1} parent=1 // pred_check_branch
      %57 = sbr.rel (0) target = $region69
    $region68: #{gpt_forward.1} parent=1 // pred_region
      _
    $region69: #{gpt_forward.1} parent=1 // pred_fallthru
      _
    // Predicated region
    $region70: #{gpt_forward.1} parent=1 // pred_check
      _
    $region71: #{gpt_forward.1} parent=1 // pred_check_branch
      %59 = sbr.rel (0) target = $region73
    $region72: #{gpt_forward.1} parent=1 // pred_region
      _
    $region73: #{gpt_forward.1} parent=1 // pred_fallthru
      _
    %v61 = vlaneseq
    %v62 = vand.u32 %v61, 127
    %v63 = vld [vmem:[%s0] sm:$0xff]
    %v64 = vld [vmem:[%s0 + $0x8] sm:$0xff]
    %v65 = vld [vmem:[%s0 + $0x10] sm:$0xff]
    %v66 = vld [vmem:[%s0 + $0x18] sm:$0xff]
    %67 = vset.pattern.permute.xlu0 0
    %68 = vperm.xlu0 %67, %v63
    %v69 = vpop.permute.xlu0 %68
    %70 = vset.pattern.permute.xlu0 0
    %71 = vperm.xlu0 %70, %v64
    %v72 = vpop.permute.xlu0 %71
    %73 = vset.pattern.permute.xlu0 0
    %74 = vperm.xlu0 %73, %v65
    %v75 = vpop.permute.xlu0 %74
    %76 = vset.pattern.permute.xlu0 0
    %77 = vperm.xlu0 %76, %v66
    %v78 = vpop.permute.xlu0 %77
    %vm79 = vcmp.eq.s32.totalorder %v69, %v62
    %vm80 = vcmp.eq.s32.totalorder %v72, %v62
    %vm81 = vcmp.eq.s32.totalorder %v75, %v62
    %vm82 = vcmp.eq.s32.totalorder %v78, %v62
    %v83 = vsel %vm79, 1, 0
    %v84 = vsel %vm80, 1, 0
    %v85 = vsel %vm81, 1, 0
    %v86 = vsel %vm82, 1, 0
    %v87 = vcvt.s32.f32 %v83
    %v88 = vcvt.s32.f32 %v84
    %v89 = vcvt.s32.f32 %v85
    %v90 = vcvt.s32.f32 %v86
    %v91 = vld [vmem:[%s1] sm:$0xff]
    %v92 = vld [vmem:[%s1 + $0x8] sm:$0xff]
    %v93 = vld [vmem:[%s1 + $0x10] sm:$0xff]
    %v94 = vld [vmem:[%s1 + $0x18] sm:$0xff]
    %v95 = vld [vmem:[%s1 + $0x20] sm:$0xff]
    %v96 = vld [vmem:[%s1 + $0x28] sm:$0xff]
    %v97 = vld [vmem:[%s1 + $0x30] sm:$0xff]
    %v98 = vld [vmem:[%s1 + $0x38] sm:$0xff]
    %v99 = vld [vmem:[%s1 + $0x40] sm:$0xff]
    %v100 = vld [vmem:[%s1 + $0x48] sm:$0xff]
    %v101 = vld [vmem:[%s1 + $0x50] sm:$0xff]
    %v102 = vld [vmem:[%s1 + $0x58] sm:$0xff]
    %v103 = vld [vmem:[%s1 + $0x60] sm:$0xff]
    %v104 = vld [vmem:[%s1 + $0x68] sm:$0xff]
    %v105 = vld [vmem:[%s1 + $0x70] sm:$0xff]
    %v106 = vld [vmem:[%s1 + $0x78] sm:$0xff]
    %107 = vmatprep.subr.mxu0 0.0
    %108 = vmatpush1.msra.mxu0 %v91
    %109 = vmatprep.subr.mxu0 0.0
    %110 = vmatpush1.msra.mxu0 %v92
    %111 = vmatprep.subr.mxu0 0.0
    %112 = vmatpush1.msra.mxu0 %v93
    %113 = vmatprep.subr.mxu0 0.0
    %114 = vmatpush1.msra.mxu0 %v94
    %115 = vmatprep.subr.mxu0 0.0
    %116 = vmatpush1.msra.mxu0 %v95
    %117 = vmatprep.subr.mxu0 0.0
    %118 = vmatpush1.msra.mxu0 %v96
    %119 = vmatprep.subr.mxu0 0.0
    %120 = vmatpush1.msra.mxu0 %v97
    %121 = vmatprep.subr.mxu0 0.0
    %122 = vmatpush1.msra.mxu0 %v98
    %123 = vmatprep.subr.mxu0 0.0
    %124 = vmatpush1.msra.mxu0 %v99
    %125 = vmatprep.subr.mxu0 0.0
    %126 = vmatpush1.msra.mxu0 %v100
    %127 = vmatprep.subr.mxu0 0.0
    %128 = vmatpush1.msra.mxu0 %v101
    %129 = vmatprep.subr.mxu0 0.0
    %130 = vmatpush1.msra.mxu0 %v102
    %131 = vmatprep.subr.mxu0 0.0
    %132 = vmatpush1.msra.mxu0 %v103
    %133 = vmatprep.subr.mxu0 0.0
    %134 = vmatpush1.msra.mxu0 %v104
    %135 = vmatprep.subr.mxu0 0.0
    %136 = vmatpush1.msra.mxu0 %v105
    %137 = vmatprep.subr.mxu0 0.0
    %138 = vmatpush1.msra.mxu0 %v106
    %139 = vmatprep.subr.mxu0 0.0
    %140 = vmatpush1.msra.mxu0 0.0
    %141 = vmatprep.subr.mxu0 0.0
    %142 = vmatpush1.msra.mxu0 0.0
    %143 = vmatprep.subr.mxu0 0.0
    %144 = vmatpush1.msra.mxu0 0.0
    %145 = vmatprep.subr.mxu0 0.0
    %146 = vmatpush1.msra.mxu0 0.0
    %147 = vmatprep.subr.mxu0 0.0
    %148 = vmatpush1.msra.mxu0 0.0
    %149 = vmatprep.subr.mxu0 0.0
    %150 = vmatpush1.msra.mxu0 0.0
    %151 = vmatprep.subr.mxu0 0.0
    %152 = vmatpush1.msra.mxu0 0.0
    %153 = vmatprep.subr.mxu0 0.0
    %154 = vmatpush1.msra.mxu0 0.0
    %155 = vmatprep.subr.mxu0 0.0
    %156 = vmatpush1.msra.mxu0 0.0
    %157 = vmatprep.subr.mxu0 0.0
    %158 = vmatpush1.msra.mxu0 0.0
    %159 = vmatprep.subr.mxu0 0.0
    %160 = vmatpush1.msra.mxu0 0.0
    %161 = vmatprep.subr.mxu0 0.0
    %162 = vmatpush1.msra.mxu0 0.0
    %163 = vmatprep.subr.mxu0 0.0
    %164 = vmatpush1.msra.mxu0 0.0
    %165 = vmatprep.subr.mxu0 0.0
    %166 = vmatpush1.msra.mxu0 0.0
    %167 = vmatprep.subr.mxu0 0.0
    %168 = vmatpush1.msra.mxu0 0.0
    %169 = vmatprep.subr.mxu0 0.0
    %170 = vmatpush1.msra.mxu0 0.0
    %171 = vmatprep.mubr.f32.mxu0 0.0
    %172 = vmatmul.mubr.f32.gmra.mrb[0].mxu0 %v87
    %v173 = vpop.f32.mrb[0].mxu0
    %v174 = vadd.f32 0.0, %v173
    %v175 = vpop.f32.mrb[0].mxu0
    %176 = vmatprep.mubr.f32.mxu0 0.0
    %177 = vmatmul.mubr.f32.gmra.mrb[0].mxu0 %v88
    %v178 = vpop.f32.mrb[0].mxu0
    %v179 = vadd.f32 0.0, %v178
    %v180 = vpop.f32.mrb[0].mxu0
    %181 = vmatprep.mubr.f32.mxu0 0.0
    %182 = vmatmul.mubr.f32.gmra.mrb[0].mxu0 %v89
    %v183 = vpop.f32.mrb[0].mxu0
    %v184 = vadd.f32 0.0, %v183
    %v185 = vpop.f32.mrb[0].mxu0
    %186 = vmatprep.mubr.f32.mxu0 0.0
    %187 = vmatmul.mubr.f32.gmra.mrb[0].mxu0 %v90
    %v188 = vpop.f32.mrb[0].mxu0
    %v189 = vadd.f32 0.0, %v188
    %v190 = vpop.f32.mrb[0].mxu0
    %191 = vdwg.mxu0
    %v192 = vld [vmem:[%s2] sm:$0xff]
    %v193 = vld [vmem:[%s2 + $0x8] sm:$0xff]
    %v194 = vadd.f32 %v174, %v192
    %v195 = vadd.f32 %v179, %v193
    %v196 = vadd.f32 %v184, %v192
    %v197 = vadd.f32 %v189, %v193
    %v198 = vlaneseq
    %v199 = vshrl.u32 %v198, 7
    %v200 = vadd.s32 %v199, 8
    %v201 = vadd.s32 %v199, 16
    %v202 = vadd.s32 %v199, 24
    %v203 = vshra.s32 %v199, 4
    %v204 = vshra.s32 %v200, 4
    %v205 = vshra.s32 %v201, 4
    %v206 = vshra.s32 %v202, 4
    %v207 = vshra.s32 %v62, 4
    %vm208 = vcmp.ge.s32.totalorder %v199, %v62
    %vm209 = vcmp.ge.s32.totalorder %v200, %v62
    %vm210 = vcmp.ge.s32.totalorder %v201, %v62
    %vm211 = vcmp.ge.s32.totalorder %v202, %v62
    %vm212 = vcmp.eq.s32.totalorder %v203, %v207
    %vm213 = vcmp.eq.s32.totalorder %v204, %v207
    %vm214 = vcmp.eq.s32.totalorder %v205, %v207
    %vm215 = vcmp.eq.s32.totalorder %v206, %v207
    %vm216 = vmand %vm208, %vm212
    %vm217 = vmand %vm209, %vm213
    %vm218 = vmand %vm210, %vm214
    %vm219 = vmand %vm211, %vm215
    %v220 = vsel %vm216, 0.0, -1e+30
    %v221 = vsel %vm217, 0.0, -1e+30
    %v222 = vsel %vm218, 0.0, -1e+30
    %v223 = vsel %vm219, 0.0, -1e+30
    %v224 = vld [vmem:[%s3] sm:$0x1]
    %v225 = vld [vmem:[%s4] sm:$0x1]
    %vm226 = vcmask 523264
    %v227 = vsel %vm226, %v194, 0.0
    %228 = vadd.xlane.f32.xlu0 %v227
    %v229 = vpop.xlane.xlu0 %228
    %v230 = vsel %vm226, %v195, 0.0
    %231 = vadd.xlane.f32.xlu0 %v230
    %v232 = vpop.xlane.xlu0 %231
    %v233 = vsel %vm226, %v196, 0.0
    %234 = vadd.xlane.f32.xlu0 %v233
    %v235 = vpop.xlane.xlu0 %234
    %v236 = vsel %vm226, %v197, 0.0
    %237 = vadd.xlane.f32.xlu0 %v236
    %v238 = vpop.xlane.xlu0 %237
    %v239 = vrcp.pop 64.0
    %v240 = vmul.f32 %v229, %v239
    %v241 = vmul.f32 %v232, %v239
    %v242 = vmul.f32 %v235, %v239
    %v243 = vmul.f32 %v238, %v239
    %v244 = vsub.f32 %v194, %v240
    %v245 = vsub.f32 %v195, %v241
    %v246 = vsub.f32 %v196, %v242
    %v247 = vsub.f32 %v197, %v243
    %v248 = vmul.f32 %v244, %v244
    %v249 = vmul.f32 %v245, %v245
    %v250 = vmul.f32 %v246, %v246
    %v251 = vmul.f32 %v247, %v247
    %v252 = vsel %vm226, %v248, 0.0
    %253 = vadd.xlane.f32.xlu0 %v252
    %v254 = vpop.xlane.xlu0 %253
    %v255 = vsel %vm226, %v249, 0.0
    %256 = vadd.xlane.f32.xlu0 %v255
    %v257 = vpop.xlane.xlu0 %256
    %v258 = vsel %vm226, %v250, 0.0
    %259 = vadd.xlane.f32.xlu0 %v258
    %v260 = vpop.xlane.xlu0 %259
    %v261 = vsel %vm226, %v251, 0.0
    %262 = vadd.xlane.f32.xlu0 %v261
    %v263 = vpop.xlane.xlu0 %262
    %v264 = vmul.f32 %v254, %v239
    %v265 = vmul.f32 %v257, %v239
    %v266 = vmul.f32 %v260, %v239
    %v267 = vmul.f32 %v263, %v239
    %v268 = vadd.f32 %v264, 1e-05
    %v269 = vadd.f32 %v265, 1e-05
    %v270 = vadd.f32 %v266, 1e-05
    %v271 = vadd.f32 %v267, 1e-05
    %v272 = vrsqrt.pop %v268
    %v273 = vrsqrt.pop %v269
    %v274 = vrsqrt.pop %v270
    %v275 = vrsqrt.pop %v271
    %v276 = vmul.f32 %v244, %v272
    %v277 = vmul.f32 %v245, %v273
    %v278 = vmul.f32 %v246, %v274
    %v279 = vmul.f32 %v247, %v275
    %v281 = vlaneseq
    %v282 = vshrl.u32 %v281, 7
    %v283 = vsub.s32 0, %v282
    %v284 = vrot.slane %v224, %v283
    %v286 = vmul.f32 %v276, %v284
    %v287 = vmul.f32 %v277, %v284
    %v288 = vmul.f32 %v278, %v284
    %v289 = vmul.f32 %v279, %v284
    %v291 = vlaneseq
    %v292 = vshrl.u32 %v291, 7
    %v293 = vsub.s32 0, %v292
    %v294 = vrot.slane %v225, %v293
    %v296 = vadd.f32 %v286, %v294
    %v297 = vadd.f32 %v287, %v294
    %v298 = vadd.f32 %v288, %v294
    %v299 = vadd.f32 %v289, %v294
    %v300 = vpack.c.bf16 %v297, %v296
    %v301 = vpack.c.bf16 %v299, %v298
    %v302 = vld [vmem:[%s5] sm:$0xf]
    %v303 = vld [vmem:[%s5 + $0x4] sm:$0xf]
    %v304 = vld [vmem:[%s5 + $0x8] sm:$0xf]
    %v305 = vld [vmem:[%s5 + $0xc] sm:$0xf]
    %v306 = vld [vmem:[%s5 + $0x10] sm:$0xf]
    %v307 = vld [vmem:[%s5 + $0x14] sm:$0xf]
    %v308 = vld [vmem:[%s5 + $0x18] sm:$0xf]
    %v309 = vld [vmem:[%s5 + $0x1c] sm:$0xf]
    %v310 = vld [vmem:[%s5 + $0x20] sm:$0xf]
    %v311 = vld [vmem:[%s5 + $0x24] sm:$0xf]
    %v312 = vld [vmem:[%s5 + $0x28] sm:$0xf]
    %v313 = vld [vmem:[%s5 + $0x2c] sm:$0xf]
    %v314 = vld [vmem:[%s5 + $0x30] sm:$0xf]
    %v315 = vld [vmem:[%s5 + $0x34] sm:$0xf]
    %v316 = vld [vmem:[%s5 + $0x38] sm:$0xf]
    %v317 = vld [vmem:[%s5 + $0x3c] sm:$0xf]
    %v318 = vld [vmem:[%s5 + $0x40] sm:$0xf]
    %v319 = vld [vmem:[%s5 + $0x44] sm:$0xf]
    %v320 = vld [vmem:[%s5 + $0x48] sm:$0xf]
    %v321 = vld [vmem:[%s5 + $0x4c] sm:$0xf]
    %v322 = vld [vmem:[%s5 + $0x50] sm:$0xf]
    %v323 = vld [vmem:[%s5 + $0x54] sm:$0xf]
    %v324 = vld [vmem:[%s5 + $0x58] sm:$0xf]
    %v325 = vld [vmem:[%s5 + $0x5c] sm:$0xf]
    %v350 = vunpack.c.l.b16 %v302
    %v351 = vunpack.c.l.b16 %v303
    %v352 = vunpack.c.l.b16 %v304
    %v353 = vunpack.c.l.b16 %v305
    %v354 = vunpack.c.l.b16 %v306
    %v355 = vunpack.c.l.b16 %v307
    %v356 = vunpack.c.l.b16 %v308
    %v357 = vunpack.c.l.b16 %v309
    %v358 = vunpack.c.l.b16 %v310
    %v359 = vunpack.c.l.b16 %v311
    %v360 = vunpack.c.l.b16 %v312
    %v361 = vunpack.c.l.b16 %v313
    %v362 = vunpack.c.l.b16 %v314
    %v363 = vunpack.c.l.b16 %v315
    %v364 = vunpack.c.l.b16 %v316
    %v365 = vunpack.c.l.b16 %v317
    %v366 = vunpack.c.l.b16 %v318
    %v367 = vunpack.c.l.b16 %v319
    %v368 = vunpack.c.l.b16 %v320
    %v369 = vunpack.c.l.b16 %v321
    %v370 = vunpack.c.l.b16 %v322
    %v371 = vunpack.c.l.b16 %v323
    %v372 = vunpack.c.l.b16 %v324
    %v373 = vunpack.c.l.b16 %v325
    %v374 = vpack.c.b16 %v351, %v350
    %v375 = vpack.c.b16 %v353, %v352
    %v376 = vpack.c.b16 %v355, %v354
    %v377 = vpack.c.b16 %v357, %v356
    %v378 = vpack.c.b16 %v359, %v358
    %v379 = vpack.c.b16 %v361, %v360
    %v380 = vpack.c.b16 %v363, %v362
    %v381 = vpack.c.b16 %v365, %v364
    %v382 = vpack.c.b16 %v367, %v366
    %v383 = vpack.c.b16 %v369, %v368
    %v384 = vpack.c.b16 %v371, %v370
    %v385 = vpack.c.b16 %v373, %v372
    %v387 = vsel %vm226, %v374, 0
    %v390 = vsel %vm226, %v375, 0
    %v393 = vsel %vm226, %v376, 0
    %v396 = vsel %vm226, %v377, 0
    %v399 = vsel %vm226, %v378, 0
    %v402 = vsel %vm226, %v379, 0
    %v405 = vsel %vm226, %v380, 0
    %v408 = vsel %vm226, %v381, 0
    %v411 = vsel %vm226, %v382, 0
    %v414 = vsel %vm226, %v383, 0
    %v417 = vsel %vm226, %v384, 0
    %v420 = vsel %vm226, %v385, 0
    %v423 = vsel %vm226, %v300, 0
    %v426 = vsel %vm226, %v301, 0
    %428 = vmatprep.subr.bf16.mxu0 0
    %429 = vmatpush1.bf16.xpose.msra.mxu0 %v423
    %430 = vmatprep.subr.bf16.mxu0 0
    %431 = vmatpush1.bf16.xpose.msra.mxu0 %v426
    %432 = vmatprep.subr.bf16.mxu0 0
    %433 = vmatpush1.bf16.xpose.msra.mxu0 0
    %434 = vmatprep.subr.bf16.mxu0 0
    %435 = vmatpush1.bf16.xpose.msra.mxu0 0
    %436 = vmatprep.subr.bf16.mxu0 0
    %437 = vmatpush1.bf16.xpose.msra.mxu0 0
    %438 = vmatprep.subr.bf16.mxu0 0
    %439 = vmatpush1.bf16.xpose.msra.mxu0 0
    %440 = vmatprep.subr.bf16.mxu0 0
    %441 = vmatpush1.bf16.xpose.msra.mxu0 0
    %442 = vmatprep.subr.bf16.mxu0 0
    %443 = vmatpush1.bf16.xpose.msra.mxu0 0
    %444 = vmatprep.subr.bf16.mxu0 0
    %445 = vmatpush1.bf16.xpose.msra.mxu0 0
    %446 = vmatprep.subr.bf16.mxu0 0
    %447 = vmatpush1.bf16.xpose.msra.mxu0 0
    %448 = vmatprep.subr.bf16.mxu0 0
    %449 = vmatpush1.bf16.xpose.msra.mxu0 0
    %450 = vmatprep.subr.bf16.mxu0 0
    %451 = vmatpush1.bf16.xpose.msra.mxu0 0
    %452 = vmatprep.subr.bf16.mxu0 0
    %453 = vmatpush1.bf16.xpose.msra.mxu0 0
    %454 = vmatprep.subr.bf16.mxu0 0
    %455 = vmatpush1.bf16.xpose.msra.mxu0 0
    %456 = vmatprep.subr.bf16.mxu0 0
    %457 = vmatpush1.bf16.xpose.msra.mxu0 0
    %458 = vmatprep.subr.bf16.mxu0 0
    %459 = vmatpush1.bf16.xpose.msra.mxu0 0
    %460 = vmatprep.mubr.bf16.mxu0 0
    %461 = vmatmul.mubr.bf16.gmra.mrb[0].mxu0 %v387
    %v462 = vpop.f32.mrb[0].mxu0
    %v463 = vadd.f32 0.0, %v462
    %v464 = vpop.f32.mrb[0].mxu0
    %v465 = vpop.f32.mrb[0].mxu0
    %v466 = vadd.f32 0.0, %v465
    %v467 = vpop.f32.mrb[0].mxu0
    %468 = vmatprep.mubr.bf16.mxu0 0
    %469 = vmatmul.mubr.bf16.gmra.mrb[0].mxu0 %v390
    %v470 = vpop.f32.mrb[0].mxu0
    %v471 = vadd.f32 0.0, %v470
    %v472 = vpop.f32.mrb[0].mxu0
    %v473 = vpop.f32.mrb[0].mxu0
    %v474 = vadd.f32 0.0, %v473
    %v475 = vpop.f32.mrb[0].mxu0
    %476 = vmatprep.mubr.bf16.mxu0 0
    %477 = vmatmul.mubr.bf16.gmra.mrb[0].mxu0 %v393
    %v478 = vpop.f32.mrb[0].mxu0
    %v479 = vadd.f32 0.0, %v478
    %v480 = vpop.f32.mrb[0].mxu0
    %v481 = vpop.f32.mrb[0].mxu0
    %v482 = vadd.f32 0.0, %v481
    %v483 = vpop.f32.mrb[0].mxu0
    %484 = vmatprep.mubr.bf16.mxu0 0
    %485 = vmatmul.mubr.bf16.gmra.mrb[0].mxu0 %v396
    %v486 = vpop.f32.mrb[0].mxu0
    %v487 = vadd.f32 0.0, %v486
    %v488 = vpop.f32.mrb[0].mxu0
    %v489 = vpop.f32.mrb[0].mxu0
    %v490 = vadd.f32 0.0, %v489
    %v491 = vpop.f32.mrb[0].mxu0
    %492 = vmatprep.mubr.bf16.mxu0 0
    %493 = vmatmul.mubr.bf16.gmra.mrb[0].mxu0 %v399
    %v494 = vpop.f32.mrb[0].mxu0
    %v495 = vadd.f32 0.0, %v494
    %v496 = vpop.f32.mrb[0].mxu0
    %v497 = vpop.f32.mrb[0].mxu0
    %v498 = vadd.f32 0.0, %v497
    %v499 = vpop.f32.mrb[0].mxu0
    %500 = vmatprep.mubr.bf16.mxu0 0
    %501 = vmatmul.mubr.bf16.gmra.mrb[0].mxu0 %v402
    %v502 = vpop.f32.mrb[0].mxu0
    %v503 = vadd.f32 0.0, %v502
    %v504 = vpop.f32.mrb[0].mxu0
    %v505 = vpop.f32.mrb[0].mxu0
    %v506 = vadd.f32 0.0, %v505
    %v507 = vpop.f32.mrb[0].mxu0
    %508 = vmatprep.mubr.bf16.mxu0 0
    %509 = vmatmul.mubr.bf16.gmra.mrb[0].mxu0 %v405
    %v510 = vpop.f32.mrb[0].mxu0
    %v511 = vadd.f32 0.0, %v510
    %v512 = vpop.f32.mrb[0].mxu0
    %v513 = vpop.f32.mrb[0].mxu0
    %v514 = vadd.f32 0.0, %v513
    %v515 = vpop.f32.mrb[0].mxu0
    %516 = vmatprep.mubr.bf16.mxu0 0
    %517 = vmatmul.mubr.bf16.gmra.mrb[0].mxu0 %v408
    %v518 = vpop.f32.mrb[0].mxu0
    %v519 = vadd.f32 0.0, %v518
    %v520 = vpop.f32.mrb[0].mxu0
    %v521 = vpop.f32.mrb[0].mxu0
    %v522 = vadd.f32 0.0, %v521
    %v523 = vpop.f32.mrb[0].mxu0
    %524 = vmatprep.mubr.bf16.mxu0 0
    %525 = vmatmul.mubr.bf16.gmra.mrb[0].mxu0 %v411
    %v526 = vpop.f32.mrb[0].mxu0
    %v527 = vadd.f32 0.0, %v526
    %v528 = vpop.f32.mrb[0].mxu0
    %v529 = vpop.f32.mrb[0].mxu0
    %v530 = vadd.f32 0.0, %v529
    %v531 = vpop.f32.mrb[0].mxu0
    %532 = vmatprep.mubr.bf16.mxu0 0
    %533 = vmatmul.mubr.bf16.gmra.mrb[0].mxu0 %v414
    %v534 = vpop.f32.mrb[0].mxu0
    %v535 = vadd.f32 0.0, %v534
    %v536 = vpop.f32.mrb[0].mxu0
    %v537 = vpop.f32.mrb[0].mxu0
    %v538 = vadd.f32 0.0, %v537
    %v539 = vpop.f32.mrb[0].mxu0
    %540 = vmatprep.mubr.bf16.mxu0 0
    %541 = vmatmul.mubr.bf16.gmra.mrb[0].mxu0 %v417
    %v542 = vpop.f32.mrb[0].mxu0
    %v543 = vadd.f32 0.0, %v542
    %v544 = vpop.f32.mrb[0].mxu0
    %v545 = vpop.f32.mrb[0].mxu0
    %v546 = vadd.f32 0.0, %v545
    %v547 = vpop.f32.mrb[0].mxu0
    %548 = vmatprep.mubr.bf16.mxu0 0
    %549 = vmatmul.mubr.bf16.gmra.mrb[0].mxu0 %v420
    %v550 = vpop.f32.mrb[0].mxu0
    %v551 = vadd.f32 0.0, %v550
    %v552 = vpop.f32.mrb[0].mxu0
    %v553 = vpop.f32.mrb[0].mxu0
    %v554 = vadd.f32 0.0, %v553
    %v555 = vpop.f32.mrb[0].mxu0
    %556 = vdwg.mxu0
    %557 = vxpose.xlu0.b32.start [1/16] %v463, 128
    %558 = vxpose.xlu0.b32.cont [2/16] %v466, 128
    %559 = vxpose.xlu0.b32.cont [3/16] 0.0, 128
    %560 = vxpose.xlu0.b32.cont [4/16] 0.0, 128
    %561 = vxpose.xlu0.b32.cont [5/16] 0.0, 128
    %562 = vxpose.xlu0.b32.cont [6/16] 0.0, 128
    %563 = vxpose.xlu0.b32.cont [7/16] 0.0, 128
    %564 = vxpose.xlu0.b32.cont [8/16] 0.0, 128
    %565 = vxpose.xlu0.b32.cont [9/16] 0.0, 128
    %566 = vxpose.xlu0.b32.cont [10/16] 0.0, 128
    %567 = vxpose.xlu0.b32.cont [11/16] 0.0, 128
    %568 = vxpose.xlu0.b32.cont [12/16] 0.0, 128
    %569 = vxpose.xlu0.b32.cont [13/16] 0.0, 128
    %570 = vxpose.xlu0.b32.cont [14/16] 0.0, 128
    %571 = vxpose.xlu0.b32.cont [15/16] 0.0, 128
    %572 = vxpose.xlu0.b32.end [16/16] 0.0, 128
    %v573 = vpop.trf.xlu0
    %v574 = vpop.trf.xlu0
    %v575 = vpop.trf.xlu0
    %v576 = vpop.trf.xlu0
    %v577 = vpop.trf.xlu0
    %v578 = vpop.trf.xlu0
    %v579 = vpop.trf.xlu0
    %v580 = vpop.trf.xlu0
    %v581 = vpop.trf.xlu0
    %v582 = vpop.trf.xlu0
    %v583 = vpop.trf.xlu0
    %v584 = vpop.trf.xlu0
    %v585 = vpop.trf.xlu0
    %v586 = vpop.trf.xlu0
    %v587 = vpop.trf.xlu0
    %v588 = vpop.trf.xlu0
    %589 = vxpose.xlu0.b32.start [1/16] %v471, 128
    %590 = vxpose.xlu0.b32.cont [2/16] %v474, 128
    %591 = vxpose.xlu0.b32.cont [3/16] 0.0, 128
    %592 = vxpose.xlu0.b32.cont [4/16] 0.0, 128
    %593 = vxpose.xlu0.b32.cont [5/16] 0.0, 128
    %594 = vxpose.xlu0.b32.cont [6/16] 0.0, 128
    %595 = vxpose.xlu0.b32.cont [7/16] 0.0, 128
    %596 = vxpose.xlu0.b32.cont [8/16] 0.0, 128
    %597 = vxpose.xlu0.b32.cont [9/16] 0.0, 128
    %598 = vxpose.xlu0.b32.cont [10/16] 0.0, 128
    %599 = vxpose.xlu0.b32.cont [11/16] 0.0, 128
    %600 = vxpose.xlu0.b32.cont [12/16] 0.0, 128
    %601 = vxpose.xlu0.b32.cont [13/16] 0.0, 128
    %602 = vxpose.xlu0.b32.cont [14/16] 0.0, 128
    %603 = vxpose.xlu0.b32.cont [15/16] 0.0, 128
    %604 = vxpose.xlu0.b32.end [16/16] 0.0, 128
    %v605 = vpop.trf.xlu0
    %v606 = vpop.trf.xlu0
    %v607 = vpop.trf.xlu0
    %v608 = vpop.trf.xlu0
    %v609 = vpop.trf.xlu0
    %v610 = vpop.trf.xlu0
    %v611 = vpop.trf.xlu0
    %v612 = vpop.trf.xlu0
    %v613 = vpop.trf.xlu0
    %v614 = vpop.trf.xlu0
    %v615 = vpop.trf.xlu0
    %v616 = vpop.trf.xlu0
    %v617 = vpop.trf.xlu0
    %v618 = vpop.trf.xlu0
    %v619 = vpop.trf.xlu0
    %v620 = vpop.trf.xlu0
    %621 = vxpose.xlu0.b32.start [1/16] %v479, 128
    %622 = vxpose.xlu0.b32.cont [2/16] %v482, 128
    %623 = vxpose.xlu0.b32.cont [3/16] 0.0, 128
    %624 = vxpose.xlu0.b32.cont [4/16] 0.0, 128
    %625 = vxpose.xlu0.b32.cont [5/16] 0.0, 128
    %626 = vxpose.xlu0.b32.cont [6/16] 0.0, 128
    %627 = vxpose.xlu0.b32.cont [7/16] 0.0, 128
    %628 = vxpose.xlu0.b32.cont [8/16] 0.0, 128
    %629 = vxpose.xlu0.b32.cont [9/16] 0.0, 128
    %630 = vxpose.xlu0.b32.cont [10/16] 0.0, 128
    %631 = vxpose.xlu0.b32.cont [11/16] 0.0, 128
    %632 = vxpose.xlu0.b32.cont [12/16] 0.0, 128
    %633 = vxpose.xlu0.b32.cont [13/16] 0.0, 128
    %634 = vxpose.xlu0.b32.cont [14/16] 0.0, 128
    %635 = vxpose.xlu0.b32.cont [15/16] 0.0, 128
    %636 = vxpose.xlu0.b32.end [16/16] 0.0, 128
    %v637 = vpop.trf.xlu0
    %v638 = vpop.trf.xlu0
    %v639 = vpop.trf.xlu0
    %v640 = vpop.trf.xlu0
    %v641 = vpop.trf.xlu0
    %v642 = vpop.trf.xlu0
    %v643 = vpop.trf.xlu0
    %v644 = vpop.trf.xlu0
    %v645 = vpop.trf.xlu0
    %v646 = vpop.trf.xlu0
    %v647 = vpop.trf.xlu0
    %v648 = vpop.trf.xlu0
    %v649 = vpop.trf.xlu0
    %v650 = vpop.trf.xlu0
    %v651 = vpop.trf.xlu0
    %v652 = vpop.trf.xlu0
    %653 = vxpose.xlu0.b32.start [1/16] %v487, 128
    %654 = vxpose.xlu0.b32.cont [2/16] %v490, 128
    %655 = vxpose.xlu0.b32.cont [3/16] 0.0, 128
    %656 = vxpose.xlu0.b32.cont [4/16] 0.0, 128
    %657 = vxpose.xlu0.b32.cont [5/16] 0.0, 128
    %658 = vxpose.xlu0.b32.cont [6/16] 0.0, 128
    %659 = vxpose.xlu0.b32.cont [7/16] 0.0, 128
    %660 = vxpose.xlu0.b32.cont [8/16] 0.0, 128
    %661 = vxpose.xlu0.b32.cont [9/16] 0.0, 128
    %662 = vxpose.xlu0.b32.cont [10/16] 0.0, 128
    %663 = vxpose.xlu0.b32.cont [11/16] 0.0, 128
    %664 = vxpose.xlu0.b32.cont [12/16] 0.0, 128
    %665 = vxpose.xlu0.b32.cont [13/16] 0.0, 128
    %666 = vxpose.xlu0.b32.cont [14/16] 0.0, 128
    %667 = vxpose.xlu0.b32.cont [15/16] 0.0, 128
    %668 = vxpose.xlu0.b32.end [16/16] 0.0, 128
    %v669 = vpop.trf.xlu0
    %v670 = vpop.trf.xlu0
    %v671 = vpop.trf.xlu0
    %v672 = vpop.trf.xlu0
    %v673 = vpop.trf.xlu0
    %v674 = vpop.trf.xlu0
    %v675 = vpop.trf.xlu0
    %v676 = vpop.trf.xlu0
    %v677 = vpop.trf.xlu0
    %v678 = vpop.trf.xlu0
    %v679 = vpop.trf.xlu0
    %v680 = vpop.trf.xlu0
    %v681 = vpop.trf.xlu0
    %v682 = vpop.trf.xlu0
    %v683 = vpop.trf.xlu0
    %v684 = vpop.trf.xlu0
    %v685 = vpack.c.bf16 %v574, %v573
    %v686 = vpack.c.bf16 %v576, %v575
    %v687 = vpack.c.bf16 %v606, %v605
    %v688 = vpack.c.bf16 %v608, %v607
    %v689 = vpack.c.bf16 %v638, %v637
    %v690 = vpack.c.bf16 %v640, %v639
    %v691 = vpack.c.bf16 %v670, %v669
    %v692 = vpack.c.bf16 %v672, %v671
    %v693 = vpack.c.bf16 %v498, %v495
    %v694 = vpack.c.bf16 %v506, %v503
    %v695 = vpack.c.bf16 %v514, %v511
    %v696 = vpack.c.bf16 %v522, %v519
    %v697 = vpack.c.bf16 %v530, %v527
    %v698 = vpack.c.bf16 %v538, %v535
    %v699 = vpack.c.bf16 %v546, %v543
    %v700 = vpack.c.bf16 %v554, %v551
    %vm701 = vcmask 130048
    %v703 = vsel %vm701, %v685, 0
    %v706 = vsel %vm701, %v686, 0
    %708 = vmatprep.subr.bf16.mxu0 0
    %709 = vmatpush1.bf16.msra.mxu0 %v693
    %710 = vmatprep.subr.bf16.mxu0 0
    %711 = vmatpush1.bf16.msra.mxu0 0
    %712 = vmatprep.subr.bf16.mxu0 0
    %713 = vmatpush1.bf16.msra.mxu0 0
    %714 = vmatprep.subr.bf16.mxu0 0
    %715 = vmatpush1.bf16.msra.mxu0 0
    %716 = vmatprep.subr.bf16.mxu0 0
    %717 = vmatpush1.bf16.msra.mxu0 0
    %718 = vmatprep.subr.bf16.mxu0 0
    %719 = vmatpush1.bf16.msra.mxu0 0
    %720 = vmatprep.subr.bf16.mxu0 0
    %721 = vmatpush1.bf16.msra.mxu0 0
    %722 = vmatprep.subr.bf16.mxu0 0
    %723 = vmatpush1.bf16.msra.mxu0 0
    %724 = vmatprep.subr.bf16.mxu0 0
    %725 = vmatpush1.bf16.msra.mxu0 0
    %726 = vmatprep.subr.bf16.mxu0 0
    %727 = vmatpush1.bf16.msra.mxu0 0
    %728 = vmatprep.subr.bf16.mxu0 0
    %729 = vmatpush1.bf16.msra.mxu0 0
    %730 = vmatprep.subr.bf16.mxu0 0
    %731 = vmatpush1.bf16.msra.mxu0 0
    %732 = vmatprep.subr.bf16.mxu0 0
    %733 = vmatpush1.bf16.msra.mxu0 0
    %734 = vmatprep.subr.bf16.mxu0 0
    %735 = vmatpush1.bf16.msra.mxu0 0
    %736 = vmatprep.subr.bf16.mxu0 0
    %737 = vmatpush1.bf16.msra.mxu0 0
    %738 = vmatprep.subr.bf16.mxu0 0
    %739 = vmatpush1.bf16.msra.mxu0 0
    %740 = vmatprep.mubr.bf16.mxu0 0
    %741 = vmatmul.mubr.bf16.gmra.mrb[0].mxu0 %v703
    %v742 = vpop.f32.mrb[0].mxu0
    %v743 = vadd.f32 %v220, %v742
    %v744 = vpop.f32.mrb[0].mxu0
    %v745 = vpop.f32.mrb[0].mxu0
    %v746 = vadd.f32 %v221, %v745
    %v747 = vpop.f32.mrb[0].mxu0
    %748 = vmatprep.mubr.bf16.mxu0 0
    %749 = vmatmul.mubr.bf16.gmra.mrb[0].mxu0 %v706
    %v750 = vpop.f32.mrb[0].mxu0
    %v751 = vadd.f32 %v222, %v750
    %v752 = vpop.f32.mrb[0].mxu0
    %v753 = vpop.f32.mrb[0].mxu0
    %v754 = vadd.f32 %v223, %v753
    %v755 = vpop.f32.mrb[0].mxu0
    %756 = vdwg.mxu0
    %v758 = vsel %vm701, %v687, 0
    %v761 = vsel %vm701, %v688, 0
    %763 = vmatprep.subr.bf16.mxu0 0
    %764 = vmatpush1.bf16.msra.mxu0 %v694
    %765 = vmatprep.subr.bf16.mxu0 0
    %766 = vmatpush1.bf16.msra.mxu0 0
    %767 = vmatprep.subr.bf16.mxu0 0
    %768 = vmatpush1.bf16.msra.mxu0 0
    %769 = vmatprep.subr.bf16.mxu0 0
    %770 = vmatpush1.bf16.msra.mxu0 0
    %771 = vmatprep.subr.bf16.mxu0 0
    %772 = vmatpush1.bf16.msra.mxu0 0
    %773 = vmatprep.subr.bf16.mxu0 0
    %774 = vmatpush1.bf16.msra.mxu0 0
    %775 = vmatprep.subr.bf16.mxu0 0
    %776 = vmatpush1.bf16.msra.mxu0 0
    %777 = vmatprep.subr.bf16.mxu0 0
    %778 = vmatpush1.bf16.msra.mxu0 0
    %779 = vmatprep.subr.bf16.mxu0 0
    %780 = vmatpush1.bf16.msra.mxu0 0
    %781 = vmatprep.subr.bf16.mxu0 0
    %782 = vmatpush1.bf16.msra.mxu0 0
    %783 = vmatprep.subr.bf16.mxu0 0
    %784 = vmatpush1.bf16.msra.mxu0 0
    %785 = vmatprep.subr.bf16.mxu0 0
    %786 = vmatpush1.bf16.msra.mxu0 0
    %787 = vmatprep.subr.bf16.mxu0 0
    %788 = vmatpush1.bf16.msra.mxu0 0
    %789 = vmatprep.subr.bf16.mxu0 0
    %790 = vmatpush1.bf16.msra.mxu0 0
    %791 = vmatprep.subr.bf16.mxu0 0
    %792 = vmatpush1.bf16.msra.mxu0 0
    %793 = vmatprep.subr.bf16.mxu0 0
    %794 = vmatpush1.bf16.msra.mxu0 0
    %795 = vmatprep.mubr.bf16.mxu0 0
    %796 = vmatmul.mubr.bf16.gmra.mrb[0].mxu0 %v758
    %v797 = vpop.f32.mrb[0].mxu0
    %v798 = vadd.f32 %v220, %v797
    %v799 = vpop.f32.mrb[0].mxu0
    %v800 = vpop.f32.mrb[0].mxu0
    %v801 = vadd.f32 %v221, %v800
    %v802 = vpop.f32.mrb[0].mxu0
    %803 = vmatprep.mubr.bf16.mxu0 0
    %804 = vmatmul.mubr.bf16.gmra.mrb[0].mxu0 %v761
    %v805 = vpop.f32.mrb[0].mxu0
    %v806 = vadd.f32 %v222, %v805
    %v807 = vpop.f32.mrb[0].mxu0
    %v808 = vpop.f32.mrb[0].mxu0
    %v809 = vadd.f32 %v223, %v808
    %v810 = vpop.f32.mrb[0].mxu0
    %811 = vdwg.mxu0
    %v813 = vsel %vm701, %v689, 0
    %v816 = vsel %vm701, %v690, 0
    %818 = vmatprep.subr.bf16.mxu0 0
    %819 = vmatpush1.bf16.msra.mxu0 %v695
    %820 = vmatprep.subr.bf16.mxu0 0
    %821 = vmatpush1.bf16.msra.mxu0 0
    %822 = vmatprep.subr.bf16.mxu0 0
    %823 = vmatpush1.bf16.msra.mxu0 0
    %824 = vmatprep.subr.bf16.mxu0 0
    %825 = vmatpush1.bf16.msra.mxu0 0
    %826 = vmatprep.subr.bf16.mxu0 0
    %827 = vmatpush1.bf16.msra.mxu0 0
    %828 = vmatprep.subr.bf16.mxu0 0
    %829 = vmatpush1.bf16.msra.mxu0 0
    %830 = vmatprep.subr.bf16.mxu0 0
    %831 = vmatpush1.bf16.msra.mxu0 0
    %832 = vmatprep.subr.bf16.mxu0 0
    %833 = vmatpush1.bf16.msra.mxu0 0
    %834 = vmatprep.subr.bf16.mxu0 0
    %835 = vmatpush1.bf16.msra.mxu0 0
    %836 = vmatprep.subr.bf16.mxu0 0
    %837 = vmatpush1.bf16.msra.mxu0 0
    %838 = vmatprep.subr.bf16.mxu0 0
    %839 = vmatpush1.bf16.msra.mxu0 0
    %840 = vmatprep.subr.bf16.mxu0 0
    %841 = vmatpush1.bf16.msra.mxu0 0
    %842 = vmatprep.subr.bf16.mxu0 0
    %843 = vmatpush1.bf16.msra.mxu0 0
    %844 = vmatprep.subr.bf16.mxu0 0
    %845 = vmatpush1.bf16.msra.mxu0 0
    %846 = vmatprep.subr.bf16.mxu0 0
    %847 = vmatpush1.bf16.msra.mxu0 0
    %848 = vmatprep.subr.bf16.mxu0 0
    %849 = vmatpush1.bf16.msra.mxu0 0
    %850 = vmatprep.mubr.bf16.mxu0 0
    %851 = vmatmul.mubr.bf16.gmra.mrb[0].mxu0 %v813
    %v852 = vpop.f32.mrb[0].mxu0
    %v853 = vadd.f32 %v220, %v852
    %v854 = vpop.f32.mrb[0].mxu0
    %v855 = vpop.f32.mrb[0].mxu0
    %v856 = vadd.f32 %v221, %v855
    %v857 = vpop.f32.mrb[0].mxu0
    %858 = vmatprep.mubr.bf16.mxu0 0
    %859 = vmatmul.mubr.bf16.gmra.mrb[0].mxu0 %v816
    %v860 = vpop.f32.mrb[0].mxu0
    %v861 = vadd.f32 %v222, %v860
    %v862 = vpop.f32.mrb[0].mxu0
    %v863 = vpop.f32.mrb[0].mxu0
    %v864 = vadd.f32 %v223, %v863
    %v865 = vpop.f32.mrb[0].mxu0
    %866 = vdwg.mxu0
    %v868 = vsel %vm701, %v691, 0
    %v871 = vsel %vm701, %v692, 0
    %873 = vmatprep.subr.bf16.mxu0 0
    %874 = vmatpush1.bf16.msra.mxu0 %v696
    %875 = vmatprep.subr.bf16.mxu0 0
    %876 = vmatpush1.bf16.msra.mxu0 0
    %877 = vmatprep.subr.bf16.mxu0 0
    %878 = vmatpush1.bf16.msra.mxu0 0
    %879 = vmatprep.subr.bf16.mxu0 0
    %880 = vmatpush1.bf16.msra.mxu0 0
    %881 = vmatprep.subr.bf16.mxu0 0
    %882 = vmatpush1.bf16.msra.mxu0 0
    %883 = vmatprep.subr.bf16.mxu0 0
    %884 = vmatpush1.bf16.msra.mxu0 0
    %885 = vmatprep.subr.bf16.mxu0 0
    %886 = vmatpush1.bf16.msra.mxu0 0
    %887 = vmatprep.subr.bf16.mxu0 0
    %888 = vmatpush1.bf16.msra.mxu0 0
    %889 = vmatprep.subr.bf16.mxu0 0
    %890 = vmatpush1.bf16.msra.mxu0 0
    %891 = vmatprep.subr.bf16.mxu0 0
    %892 = vmatpush1.bf16.msra.mxu0 0
    %893 = vmatprep.subr.bf16.mxu0 0
    %894 = vmatpush1.bf16.msra.mxu0 0
    %895 = vmatprep.subr.bf16.mxu0 0
    %896 = vmatpush1.bf16.msra.mxu0 0
    %897 = vmatprep.subr.bf16.mxu0 0
    %898 = vmatpush1.bf16.msra.mxu0 0
    %899 = vmatprep.subr.bf16.mxu0 0
    %900 = vmatpush1.bf16.msra.mxu0 0
    %901 = vmatprep.subr.bf16.mxu0 0
    %902 = vmatpush1.bf16.msra.mxu0 0
    %903 = vmatprep.subr.bf16.mxu0 0
    %904 = vmatpush1.bf16.msra.mxu0 0
    %905 = vmatprep.mubr.bf16.mxu0 0
    %906 = vmatmul.mubr.bf16.gmra.mrb[0].mxu0 %v868
    %v907 = vpop.f32.mrb[0].mxu0
    %v908 = vadd.f32 %v220, %v907
    %v909 = vpop.f32.mrb[0].mxu0
    %v910 = vpop.f32.mrb[0].mxu0
    %v911 = vadd.f32 %v221, %v910
    %v912 = vpop.f32.mrb[0].mxu0
    %913 = vmatprep.mubr.bf16.mxu0 0
    %914 = vmatmul.mubr.bf16.gmra.mrb[0].mxu0 %v871
    %v915 = vpop.f32.mrb[0].mxu0
    %v916 = vadd.f32 %v222, %v915
    %v917 = vpop.f32.mrb[0].mxu0
    %v918 = vpop.f32.mrb[0].mxu0
    %v919 = vadd.f32 %v223, %v918
    %v920 = vpop.f32.mrb[0].mxu0
    %921 = vdwg.mxu0
    %vm922 = vcmask 261120
    %v923 = vsel %vm922, %v743, -inf
    %924 = vmax.xlane.f32.xlu0 %v923
    %v925 = vpop.xlane.xlu0 %924
    %v926 = vsel %vm922, %v746, -inf
    %927 = vmax.xlane.f32.xlu0 %v926
    %v928 = vpop.xlane.xlu0 %927
    %v929 = vsel %vm922, %v751, -inf
    %930 = vmax.xlane.f32.xlu0 %v929
    %v931 = vpop.xlane.xlu0 %930
    %v932 = vsel %vm922, %v754, -inf
    %933 = vmax.xlane.f32.xlu0 %v932
    %v934 = vpop.xlane.xlu0 %933
    %v935 = vsel %vm922, %v798, -inf
    %936 = vmax.xlane.f32.xlu0 %v935
    %v937 = vpop.xlane.xlu0 %936
    %v938 = vsel %vm922, %v801, -inf
    %939 = vmax.xlane.f32.xlu0 %v938
    %v940 = vpop.xlane.xlu0 %939
    %v941 = vsel %vm922, %v806, -inf
    %942 = vmax.xlane.f32.xlu0 %v941
    %v943 = vpop.xlane.xlu0 %942
    %v944 = vsel %vm922, %v809, -inf
    %945 = vmax.xlane.f32.xlu0 %v944
    %v946 = vpop.xlane.xlu0 %945
    %v947 = vsel %vm922, %v853, -inf
    %948 = vmax.xlane.f32.xlu0 %v947
    %v949 = vpop.xlane.xlu0 %948
    %v950 = vsel %vm922, %v856, -inf
    %951 = vmax.xlane.f32.xlu0 %v950
    %v952 = vpop.xlane.xlu0 %951
    %v953 = vsel %vm922, %v861, -inf
    %954 = vmax.xlane.f32.xlu0 %v953
    %v955 = vpop.xlane.xlu0 %954
    %v956 = vsel %vm922, %v864, -inf
    %957 = vmax.xlane.f32.xlu0 %v956
    %v958 = vpop.xlane.xlu0 %957
    %v959 = vsel %vm922, %v908, -inf
    %960 = vmax.xlane.f32.xlu0 %v959
    %v961 = vpop.xlane.xlu0 %960
    %v962 = vsel %vm922, %v911, -inf
    %963 = vmax.xlane.f32.xlu0 %v962
    %v964 = vpop.xlane.xlu0 %963
    %v965 = vsel %vm922, %v916, -inf
    %966 = vmax.xlane.f32.xlu0 %v965
    %v967 = vpop.xlane.xlu0 %966
    %v968 = vsel %vm922, %v919, -inf
    %969 = vmax.xlane.f32.xlu0 %v968
    %v970 = vpop.xlane.xlu0 %969
    %v971 = vsub.f32 %v743, %v925
    %v972 = vsub.f32 %v746, %v928
    %v973 = vsub.f32 %v751, %v931
    %v974 = vsub.f32 %v754, %v934
    %v975 = vsub.f32 %v798, %v937
    %v976 = vsub.f32 %v801, %v940
    %v977 = vsub.f32 %v806, %v943
    %v978 = vsub.f32 %v809, %v946
    %v979 = vsub.f32 %v853, %v949
    %v980 = vsub.f32 %v856, %v952
    %v981 = vsub.f32 %v861, %v955
    %v982 = vsub.f32 %v864, %v958
    %v983 = vsub.f32 %v908, %v961
    %v984 = vsub.f32 %v911, %v964
    %v985 = vsub.f32 %v916, %v967
    %v986 = vsub.f32 %v919, %v970
    %v987 = vmul.f32 %v971, 1.442695
    %v988 = vpow.pop %v987
    %v989 = vmul.f32 %v972, 1.442695
    %v990 = vpow.pop %v989
    %v991 = vmul.f32 %v973, 1.442695
    %v992 = vpow.pop %v991
    %v993 = vmul.f32 %v974, 1.442695
    %v994 = vpow.pop %v993
    %v995 = vmul.f32 %v975, 1.442695
    %v996 = vpow.pop %v995
    %v997 = vmul.f32 %v976, 1.442695
    %v998 = vpow.pop %v997
    %v999 = vmul.f32 %v977, 1.442695
    %v1000 = vpow.pop %v999
    %v1001 = vmul.f32 %v978, 1.442695
    %v1002 = vpow.pop %v1001
    %v1003 = vmul.f32 %v979, 1.442695
    %v1004 = vpow.pop %v1003
    %v1005 = vmul.f32 %v980, 1.442695
    %v1006 = vpow.pop %v1005
    %v1007 = vmul.f32 %v981, 1.442695
    %v1008 = vpow.pop %v1007
    %v1009 = vmul.f32 %v982, 1.442695
    %v1010 = vpow.pop %v1009
    %v1011 = vmul.f32 %v983, 1.442695
    %v1012 = vpow.pop %v1011
    %v1013 = vmul.f32 %v984, 1.442695
    %v1014 = vpow.pop %v1013
    %v1015 = vmul.f32 %v985, 1.442695
    %v1016 = vpow.pop %v1015
    %v1017 = vmul.f32 %v986, 1.442695
    %v1018 = vpow.pop %v1017
    %v1019 = vsel %vm922, %v988, 0.0
    %1020 = vadd.xlane.f32.xlu0 %v1019
    %v1021 = vpop.xlane.xlu0 %1020
    %v1022 = vsel %vm922, %v990, 0.0
    %1023 = vadd.xlane.f32.xlu0 %v1022
    %v1024 = vpop.xlane.xlu0 %1023
    %v1025 = vsel %vm922, %v992, 0.0
    %1026 = vadd.xlane.f32.xlu0 %v1025
    %v1027 = vpop.xlane.xlu0 %1026
    %v1028 = vsel %vm922, %v994, 0.0
    %1029 = vadd.xlane.f32.xlu0 %v1028
    %v1030 = vpop.xlane.xlu0 %1029
    %v1031 = vsel %vm922, %v996, 0.0
    %1032 = vadd.xlane.f32.xlu0 %v1031
    %v1033 = vpop.xlane.xlu0 %1032
    %v1034 = vsel %vm922, %v998, 0.0
    %1035 = vadd.xlane.f32.xlu0 %v1034
    %v1036 = vpop.xlane.xlu0 %1035
    %v1037 = vsel %vm922, %v1000, 0.0
    %1038 = vadd.xlane.f32.xlu0 %v1037
    %v1039 = vpop.xlane.xlu0 %1038
    %v1040 = vsel %vm922, %v1002, 0.0
    %1041 = vadd.xlane.f32.xlu0 %v1040
    %v1042 = vpop.xlane.xlu0 %1041
    %v1043 = vsel %vm922, %v1004, 0.0
    %1044 = vadd.xlane.f32.xlu0 %v1043
    %v1045 = vpop.xlane.xlu0 %1044
    %v1046 = vsel %vm922, %v1006, 0.0
    %1047 = vadd.xlane.f32.xlu0 %v1046
    %v1048 = vpop.xlane.xlu0 %1047
    %v1049 = vsel %vm922, %v1008, 0.0
    %1050 = vadd.xlane.f32.xlu0 %v1049
    %v1051 = vpop.xlane.xlu0 %1050
    %v1052 = vsel %vm922, %v1010, 0.0
    %1053 = vadd.xlane.f32.xlu0 %v1052
    %v1054 = vpop.xlane.xlu0 %1053
    %v1055 = vsel %vm922, %v1012, 0.0
    %1056 = vadd.xlane.f32.xlu0 %v1055
    %v1057 = vpop.xlane.xlu0 %1056
    %v1058 = vsel %vm922, %v1014, 0.0
    %1059 = vadd.xlane.f32.xlu0 %v1058
    %v1060 = vpop.xlane.xlu0 %1059
    %v1061 = vsel %vm922, %v1016, 0.0
    %1062 = vadd.xlane.f32.xlu0 %v1061
    %v1063 = vpop.xlane.xlu0 %1062
    %v1064 = vsel %vm922, %v1018, 0.0
    %1065 = vadd.xlane.f32.xlu0 %v1064
    %v1066 = vpop.xlane.xlu0 %1065
    %v1067 = vrcp.pop %v1021
    %v1068 = vrcp.pop %v1024
    %v1069 = vrcp.pop %v1027
    %v1070 = vrcp.pop %v1030
    %v1071 = vrcp.pop %v1033
    %v1072 = vrcp.pop %v1036
    %v1073 = vrcp.pop %v1039
    %v1074 = vrcp.pop %v1042
    %v1075 = vrcp.pop %v1045
    %v1076 = vrcp.pop %v1048
    %v1077 = vrcp.pop %v1051
    %v1078 = vrcp.pop %v1054
    %v1079 = vrcp.pop %v1057
    %v1080 = vrcp.pop %v1060
    %v1081 = vrcp.pop %v1063
    %v1082 = vrcp.pop %v1066
    %v1083 = vmul.f32 %v988, %v1067
    %v1084 = vmul.f32 %v990, %v1068
    %v1085 = vmul.f32 %v992, %v1069
    %v1086 = vmul.f32 %v994, %v1070
    %v1087 = vmul.f32 %v996, %v1071
    %v1088 = vmul.f32 %v998, %v1072
    %v1089 = vmul.f32 %v1000, %v1073
    %v1090 = vmul.f32 %v1002, %v1074
    %v1091 = vmul.f32 %v1004, %v1075
    %v1092 = vmul.f32 %v1006, %v1076
    %v1093 = vmul.f32 %v1008, %v1077
    %v1094 = vmul.f32 %v1010, %v1078
    %v1095 = vmul.f32 %v1012, %v1079
    %v1096 = vmul.f32 %v1014, %v1080
    %v1097 = vmul.f32 %v1016, %v1081
    %v1098 = vmul.f32 %v1018, %v1082
    %v1099 = vpack.c.bf16 %v1084, %v1083
    %v1100 = vpack.c.bf16 %v1086, %v1085
    %v1101 = vpack.c.bf16 %v1088, %v1087
    %v1102 = vpack.c.bf16 %v1090, %v1089
    %v1103 = vpack.c.bf16 %v1092, %v1091
    %v1104 = vpack.c.bf16 %v1094, %v1093
    %v1105 = vpack.c.bf16 %v1096, %v1095
    %v1106 = vpack.c.bf16 %v1098, %v1097
    %v1108 = vsel %vm922, %v697, 0
    %v1111 = vsel %vm922, %v1099, 0
    %v1114 = vsel %vm922, %v1100, 0
    %1116 = vmatprep.subr.bf16.mxu0 0
    %1117 = vmatpush1.bf16.xpose.msra.mxu0 %v1111
    %1118 = vmatprep.subr.bf16.mxu0 0
    %1119 = vmatpush1.bf16.xpose.msra.mxu0 %v1114
    %1120 = vmatprep.subr.bf16.mxu0 0
    %1121 = vmatpush1.bf16.xpose.msra.mxu0 0
    %1122 = vmatprep.subr.bf16.mxu0 0
    %1123 = vmatpush1.bf16.xpose.msra.mxu0 0
    %1124 = vmatprep.subr.bf16.mxu0 0
    %1125 = vmatpush1.bf16.xpose.msra.mxu0 0
    %1126 = vmatprep.subr.bf16.mxu0 0
    %1127 = vmatpush1.bf16.xpose.msra.mxu0 0
    %1128 = vmatprep.subr.bf16.mxu0 0
    %1129 = vmatpush1.bf16.xpose.msra.mxu0 0
    %1130 = vmatprep.subr.bf16.mxu0 0
    %1131 = vmatpush1.bf16.xpose.msra.mxu0 0
    %1132 = vmatprep.subr.bf16.mxu0 0
    %1133 = vmatpush1.bf16.xpose.msra.mxu0 0
    %1134 = vmatprep.subr.bf16.mxu0 0
    %1135 = vmatpush1.bf16.xpose.msra.mxu0 0
    %1136 = vmatprep.subr.bf16.mxu0 0
    %1137 = vmatpush1.bf16.xpose.msra.mxu0 0
    %1138 = vmatprep.subr.bf16.mxu0 0
    %1139 = vmatpush1.bf16.xpose.msra.mxu0 0
    %1140 = vmatprep.subr.bf16.mxu0 0
    %1141 = vmatpush1.bf16.xpose.msra.mxu0 0
    %1142 = vmatprep.subr.bf16.mxu0 0
    %1143 = vmatpush1.bf16.xpose.msra.mxu0 0
    %1144 = vmatprep.subr.bf16.mxu0 0
    %1145 = vmatpush1.bf16.xpose.msra.mxu0 0
    %1146 = vmatprep.subr.bf16.mxu0 0
    %1147 = vmatpush1.bf16.xpose.msra.mxu0 0
    %1148 = vmatprep.mubr.bf16.mxu0 0
    %1149 = vmatmul.mubr.bf16.gmra.mrb[0].mxu0 %v1108
    %v1150 = vpop.f32.mrb[0].mxu0
    %v1151 = vadd.f32 0.0, %v1150
    %v1152 = vpop.f32.mrb[0].mxu0
    %v1153 = vpop.f32.mrb[0].mxu0
    %v1154 = vadd.f32 0.0, %v1153
    %v1155 = vpop.f32.mrb[0].mxu0
    %1156 = vdwg.mxu0
    %v1158 = vsel %vm922, %v698, 0
    %v1161 = vsel %vm922, %v1101, 0
    %v1164 = vsel %vm922, %v1102, 0
    %1166 = vmatprep.subr.bf16.mxu0 0
    %1167 = vmatpush1.bf16.xpose.msra.mxu0 %v1161
    %1168 = vmatprep.subr.bf16.mxu0 0
    %1169 = vmatpush1.bf16.xpose.msra.mxu0 %v1164
    %1170 = vmatprep.subr.bf16.mxu0 0
    %1171 = vmatpush1.bf16.xpose.msra.mxu0 0
    %1172 = vmatprep.subr.bf16.mxu0 0
    %1173 = vmatpush1.bf16.xpose.msra.mxu0 0
    %1174 = vmatprep.subr.bf16.mxu0 0
    %1175 = vmatpush1.bf16.xpose.msra.mxu0 0
    %1176 = vmatprep.subr.bf16.mxu0 0
    %1177 = vmatpush1.bf16.xpose.msra.mxu0 0
    %1178 = vmatprep.subr.bf16.mxu0 0
    %1179 = vmatpush1.bf16.xpose.msra.mxu0 0
    %1180 = vmatprep.subr.bf16.mxu0 0
    %1181 = vmatpush1.bf16.xpose.msra.mxu0 0
    %1182 = vmatprep.subr.bf16.mxu0 0
    %1183 = vmatpush1.bf16.xpose.msra.mxu0 0
    %1184 = vmatprep.subr.bf16.mxu0 0
    %1185 = vmatpush1.bf16.xpose.msra.mxu0 0
    %1186 = vmatprep.subr.bf16.mxu0 0
    %1187 = vmatpush1.bf16.xpose.msra.mxu0 0
    %1188 = vmatprep.subr.bf16.mxu0 0
    %1189 = vmatpush1.bf16.xpose.msra.mxu0 0
    %1190 = vmatprep.subr.bf16.mxu0 0
    %1191 = vmatpush1.bf16.xpose.msra.mxu0 0
    %1192 = vmatprep.subr.bf16.mxu0 0
    %1193 = vmatpush1.bf16.xpose.msra.mxu0 0
    %1194 = vmatprep.subr.bf16.mxu0 0
    %1195 = vmatpush1.bf16.xpose.msra.mxu0 0
    %1196 = vmatprep.subr.bf16.mxu0 0
    %1197 = vmatpush1.bf16.xpose.msra.mxu0 0
    %1198 = vmatprep.mubr.bf16.mxu0 0
    %1199 = vmatmul.mubr.bf16.gmra.mrb[0].mxu0 %v1158
    %v1200 = vpop.f32.mrb[0].mxu0
    %v1201 = vadd.f32 0.0, %v1200
    %v1202 = vpop.f32.mrb[0].mxu0
    %v1203 = vpop.f32.mrb[0].mxu0
    %v1204 = vadd.f32 0.0, %v1203
    %v1205 = vpop.f32.mrb[0].mxu0
    %1206 = vdwg.mxu0
    %v1208 = vsel %vm922, %v699, 0
    %v1211 = vsel %vm922, %v1103, 0
    %v1214 = vsel %vm922, %v1104, 0
    %1216 = vmatprep.subr.bf16.mxu0 0
    %1217 = vmatpush1.bf16.xpose.msra.mxu0 %v1211
    %1218 = vmatprep.subr.bf16.mxu0 0
    %1219 = vmatpush1.bf16.xpose.msra.mxu0 %v1214
    %1220 = vmatprep.subr.bf16.mxu0 0
    %1221 = vmatpush1.bf16.xpose.msra.mxu0 0
    %1222 = vmatprep.subr.bf16.mxu0 0
    %1223 = vmatpush1.bf16.xpose.msra.mxu0 0
    %1224 = vmatprep.subr.bf16.mxu0 0
    %1225 = vmatpush1.bf16.xpose.msra.mxu0 0
    %1226 = vmatprep.subr.bf16.mxu0 0
    %1227 = vmatpush1.bf16.xpose.msra.mxu0 0
    %1228 = vmatprep.subr.bf16.mxu0 0
    %1229 = vmatpush1.bf16.xpose.msra.mxu0 0
    %1230 = vmatprep.subr.bf16.mxu0 0
    %1231 = vmatpush1.bf16.xpose.msra.mxu0 0
    %1232 = vmatprep.subr.bf16.mxu0 0
    %1233 = vmatpush1.bf16.xpose.msra.mxu0 0
    %1234 = vmatprep.subr.bf16.mxu0 0
    %1235 = vmatpush1.bf16.xpose.msra.mxu0 0
    %1236 = vmatprep.subr.bf16.mxu0 0
    %1237 = vmatpush1.bf16.xpose.msra.mxu0 0
    %1238 = vmatprep.subr.bf16.mxu0 0
    %1239 = vmatpush1.bf16.xpose.msra.mxu0 0
    %1240 = vmatprep.subr.bf16.mxu0 0
    %1241 = vmatpush1.bf16.xpose.msra.mxu0 0
    %1242 = vmatprep.subr.bf16.mxu0 0
    %1243 = vmatpush1.bf16.xpose.msra.mxu0 0
    %1244 = vmatprep.subr.bf16.mxu0 0
    %1245 = vmatpush1.bf16.xpose.msra.mxu0 0
    %1246 = vmatprep.subr.bf16.mxu0 0
    %1247 = vmatpush1.bf16.xpose.msra.mxu0 0
    %1248 = vmatprep.mubr.bf16.mxu0 0
    %1249 = vmatmul.mubr.bf16.gmra.mrb[0].mxu0 %v1208
    %v1250 = vpop.f32.mrb[0].mxu0
    %v1251 = vadd.f32 0.0, %v1250
    %v1252 = vpop.f32.mrb[0].mxu0
    %v1253 = vpop.f32.mrb[0].mxu0
    %v1254 = vadd.f32 0.0, %v1253
    %v1255 = vpop.f32.mrb[0].mxu0
    %1256 = vdwg.mxu0
    %v1258 = vsel %vm922, %v700, 0
    %v1261 = vsel %vm922, %v1105, 0
    %v1264 = vsel %vm922, %v1106, 0
    %1266 = vmatprep.subr.bf16.mxu0 0
    %1267 = vmatpush1.bf16.xpose.msra.mxu0 %v1261
    %1268 = vmatprep.subr.bf16.mxu0 0
    %1269 = vmatpush1.bf16.xpose.msra.mxu0 %v1264
    %1270 = vmatprep.subr.bf16.mxu0 0
    %1271 = vmatpush1.bf16.xpose.msra.mxu0 0
    %1272 = vmatprep.subr.bf16.mxu0 0
    %1273 = vmatpush1.bf16.xpose.msra.mxu0 0
    %1274 = vmatprep.subr.bf16.mxu0 0
    %1275 = vmatpush1.bf16.xpose.msra.mxu0 0
    %1276 = vmatprep.subr.bf16.mxu0 0
    %1277 = vmatpush1.bf16.xpose.msra.mxu0 0
    %1278 = vmatprep.subr.bf16.mxu0 0
    %1279 = vmatpush1.bf16.xpose.msra.mxu0 0
    %1280 = vmatprep.subr.bf16.mxu0 0
    %1281 = vmatpush1.bf16.xpose.msra.mxu0 0
    %1282 = vmatprep.subr.bf16.mxu0 0
    %1283 = vmatpush1.bf16.xpose.msra.mxu0 0
    %1284 = vmatprep.subr.bf16.mxu0 0
    %1285 = vmatpush1.bf16.xpose.msra.mxu0 0
    %1286 = vmatprep.subr.bf16.mxu0 0
    %1287 = vmatpush1.bf16.xpose.msra.mxu0 0
    %1288 = vmatprep.subr.bf16.mxu0 0
    %1289 = vmatpush1.bf16.xpose.msra.mxu0 0
    %1290 = vmatprep.subr.bf16.mxu0 0
    %1291 = vmatpush1.bf16.xpose.msra.mxu0 0
    %1292 = vmatprep.subr.bf16.mxu0 0
    %1293 = vmatpush1.bf16.xpose.msra.mxu0 0
    %1294 = vmatprep.subr.bf16.mxu0 0
    %1295 = vmatpush1.bf16.xpose.msra.mxu0 0
    %1296 = vmatprep.subr.bf16.mxu0 0
    %1297 = vmatpush1.bf16.xpose.msra.mxu0 0
    %1298 = vmatprep.mubr.bf16.mxu0 0
    %1299 = vmatmul.mubr.bf16.gmra.mrb[0].mxu0 %v1258
    %v1300 = vpop.f32.mrb[0].mxu0
    %v1301 = vadd.f32 0.0, %v1300
    %v1302 = vpop.f32.mrb[0].mxu0
    %v1303 = vpop.f32.mrb[0].mxu0
    %v1304 = vadd.f32 0.0, %v1303
    %v1305 = vpop.f32.mrb[0].mxu0
    %1306 = vdwg.mxu0
    %1307 = vxpose.xlu0.b32.start [1/16] %v1151, 128
    %1308 = vxpose.xlu0.b32.cont [2/16] %v1154, 128
    %1309 = vxpose.xlu0.b32.cont [3/16] %v1201, 128
    %1310 = vxpose.xlu0.b32.cont [4/16] %v1204, 128
    %1311 = vxpose.xlu0.b32.cont [5/16] %v1251, 128
    %1312 = vxpose.xlu0.b32.cont [6/16] %v1254, 128
    %1313 = vxpose.xlu0.b32.cont [7/16] %v1301, 128
    %1314 = vxpose.xlu0.b32.cont [8/16] %v1304, 128
    %1315 = vxpose.xlu0.b32.cont [9/16] 0.0, 128
    %1316 = vxpose.xlu0.b32.cont [10/16] 0.0, 128
    %1317 = vxpose.xlu0.b32.cont [11/16] 0.0, 128
    %1318 = vxpose.xlu0.b32.cont [12/16] 0.0, 128
    %1319 = vxpose.xlu0.b32.cont [13/16] 0.0, 128
    %1320 = vxpose.xlu0.b32.cont [14/16] 0.0, 128
    %1321 = vxpose.xlu0.b32.cont [15/16] 0.0, 128
    %1322 = vxpose.xlu0.b32.end [16/16] 0.0, 128
    %v1323 = vpop.trf.xlu0
    %v1324 = vpop.trf.xlu0
    %v1325 = vpop.trf.xlu0
    %v1326 = vpop.trf.xlu0
    %v1327 = vpop.trf.xlu0
    %v1328 = vpop.trf.xlu0
    %v1329 = vpop.trf.xlu0
    %v1330 = vpop.trf.xlu0
    %v1331 = vpop.trf.xlu0
    %v1332 = vpop.trf.xlu0
    %v1333 = vpop.trf.xlu0
    %v1334 = vpop.trf.xlu0
    %v1335 = vpop.trf.xlu0
    %v1336 = vpop.trf.xlu0
    %v1337 = vpop.trf.xlu0
    %v1338 = vpop.trf.xlu0
    %v1339 = vpack.c.bf16 %v1324, %v1323
    %v1340 = vpack.c.bf16 %v1326, %v1325
    %v1341 = vld [vmem:[%s6] sm:$0xf]
    %v1342 = vld [vmem:[%s6 + $0x4] sm:$0xf]
    %v1343 = vld [vmem:[%s6 + $0x8] sm:$0xf]
    %v1344 = vld [vmem:[%s6 + $0xc] sm:$0xf]
    %v1345 = vld [vmem:[%s6 + $0x10] sm:$0xf]
    %v1346 = vld [vmem:[%s6 + $0x14] sm:$0xf]
    %v1347 = vld [vmem:[%s6 + $0x18] sm:$0xf]
    %v1348 = vld [vmem:[%s6 + $0x1c] sm:$0xf]
    %v1357 = vunpack.c.l.b16 %v1341
    %v1358 = vunpack.c.l.b16 %v1342
    %v1359 = vunpack.c.l.b16 %v1343
    %v1360 = vunpack.c.l.b16 %v1344
    %v1361 = vunpack.c.l.b16 %v1345
    %v1362 = vunpack.c.l.b16 %v1346
    %v1363 = vunpack.c.l.b16 %v1347
    %v1364 = vunpack.c.l.b16 %v1348
    %v1365 = vpack.c.b16 %v1358, %v1357
    %v1366 = vpack.c.b16 %v1360, %v1359
    %v1367 = vpack.c.b16 %v1362, %v1361
    %v1368 = vpack.c.b16 %v1364, %v1363
    %v1374 = vsel %vm226, %v1339, 0
    %v1377 = vsel %vm226, %v1340, 0
    %1379 = vmatprep.subr.bf16.mxu0 0
    %1380 = vmatpush1.bf16.msra.mxu0 %v1365
    %1381 = vmatprep.subr.bf16.mxu0 0
    %1382 = vmatpush1.bf16.msra.mxu0 %v1366
    %1383 = vmatprep.subr.bf16.mxu0 0
    %1384 = vmatpush1.bf16.msra.mxu0 %v1367
    %1385 = vmatprep.subr.bf16.mxu0 0
    %1386 = vmatpush1.bf16.msra.mxu0 %v1368
    %1387 = vmatprep.subr.bf16.mxu0 0
    %1388 = vmatpush1.bf16.msra.mxu0 0
    %1389 = vmatprep.subr.bf16.mxu0 0
    %1390 = vmatpush1.bf16.msra.mxu0 0
    %1391 = vmatprep.subr.bf16.mxu0 0
    %1392 = vmatpush1.bf16.msra.mxu0 0
    %1393 = vmatprep.subr.bf16.mxu0 0
    %1394 = vmatpush1.bf16.msra.mxu0 0
    %1395 = vmatprep.subr.bf16.mxu0 0
    %1396 = vmatpush1.bf16.msra.mxu0 0
    %1397 = vmatprep.subr.bf16.mxu0 0
    %1398 = vmatpush1.bf16.msra.mxu0 0
    %1399 = vmatprep.subr.bf16.mxu0 0
    %1400 = vmatpush1.bf16.msra.mxu0 0
    %1401 = vmatprep.subr.bf16.mxu0 0
    %1402 = vmatpush1.bf16.msra.mxu0 0
    %1403 = vmatprep.subr.bf16.mxu0 0
    %1404 = vmatpush1.bf16.msra.mxu0 0
    %1405 = vmatprep.subr.bf16.mxu0 0
    %1406 = vmatpush1.bf16.msra.mxu0 0
    %1407 = vmatprep.subr.bf16.mxu0 0
    %1408 = vmatpush1.bf16.msra.mxu0 0
    %1409 = vmatprep.subr.bf16.mxu0 0
    %1410 = vmatpush1.bf16.msra.mxu0 0
    %1411 = vmatprep.mubr.bf16.mxu0 0
    %1412 = vmatmul.mubr.bf16.gmra.mrb[0].mxu0 %v1374
    %v1413 = vpop.f32.mrb[0].mxu0
    %v1414 = vadd.f32 0.0, %v1413
    %v1415 = vpop.f32.mrb[0].mxu0
    %v1416 = vpop.f32.mrb[0].mxu0
    %v1417 = vadd.f32 0.0, %v1416
    %v1418 = vpop.f32.mrb[0].mxu0
    %1419 = vmatprep.mubr.bf16.mxu0 0
    %1420 = vmatmul.mubr.bf16.gmra.mrb[0].mxu0 %v1377
    %v1421 = vpop.f32.mrb[0].mxu0
    %v1422 = vadd.f32 0.0, %v1421
    %v1423 = vpop.f32.mrb[0].mxu0
    %v1424 = vpop.f32.mrb[0].mxu0
    %v1425 = vadd.f32 0.0, %v1424
    %v1426 = vpop.f32.mrb[0].mxu0
    %1427 = vdwg.mxu0
    %v1428 = vadd.f32 %v194, %v1414
    %v1429 = vadd.f32 %v195, %v1417
    %v1430 = vadd.f32 %v196, %v1422
    %v1431 = vadd.f32 %v197, %v1425
    %v1432 = vld [vmem:[%s7] sm:$0x1]
    %v1434 = vlaneseq
    %v1435 = vshrl.u32 %v1434, 7
    %v1436 = vsub.s32 0, %v1435
    %v1437 = vrot.slane %v1432, %v1436
    %v1439 = vadd.f32 %v1428, %v1437
    %v1440 = vadd.f32 %v1429, %v1437
    %v1441 = vadd.f32 %v1430, %v1437
    %v1442 = vadd.f32 %v1431, %v1437
    %v1443 = vld [vmem:[%s8] sm:$0x1]
    %v1444 = vld [vmem:[%s9] sm:$0x1]
    %v1445 = vsel %vm226, %v1439, 0.0
    %1446 = vadd.xlane.f32.xlu0 %v1445
    %v1447 = vpop.xlane.xlu0 %1446
    %v1448 = vsel %vm226, %v1440, 0.0
    %1449 = vadd.xlane.f32.xlu0 %v1448
    %v1450 = vpop.xlane.xlu0 %1449
    %v1451 = vsel %vm226, %v1441, 0.0
    %1452 = vadd.xlane.f32.xlu0 %v1451
    %v1453 = vpop.xlane.xlu0 %1452
    %v1454 = vsel %vm226, %v1442, 0.0
    %1455 = vadd.xlane.f32.xlu0 %v1454
    %v1456 = vpop.xlane.xlu0 %1455
    %v1457 = vmul.f32 %v1447, %v239
    %v1458 = vmul.f32 %v1450, %v239
    %v1459 = vmul.f32 %v1453, %v239
    %v1460 = vmul.f32 %v1456, %v239
    %v1461 = vsub.f32 %v1439, %v1457
    %v1462 = vsub.f32 %v1440, %v1458
    %v1463 = vsub.f32 %v1441, %v1459
    %v1464 = vsub.f32 %v1442, %v1460
    %v1465 = vmul.f32 %v1461, %v1461
    %v1466 = vmul.f32 %v1462, %v1462
    %v1467 = vmul.f32 %v1463, %v1463
    %v1468 = vmul.f32 %v1464, %v1464
    %v1469 = vsel %vm226, %v1465, 0.0
    %1470 = vadd.xlane.f32.xlu0 %v1469
    %v1471 = vpop.xlane.xlu0 %1470
    %v1472 = vsel %vm226, %v1466, 0.0
    %1473 = vadd.xlane.f32.xlu0 %v1472
    %v1474 = vpop.xlane.xlu0 %1473
    %v1475 = vsel %vm226, %v1467, 0.0
    %1476 = vadd.xlane.f32.xlu0 %v1475
    %v1477 = vpop.xlane.xlu0 %1476
    %v1478 = vsel %vm226, %v1468, 0.0
    %1479 = vadd.xlane.f32.xlu0 %v1478
    %v1480 = vpop.xlane.xlu0 %1479
    %v1481 = vmul.f32 %v1471, %v239
    %v1482 = vmul.f32 %v1474, %v239
    %v1483 = vmul.f32 %v1477, %v239
    %v1484 = vmul.f32 %v1480, %v239
    %v1485 = vadd.f32 %v1481, 1e-05
    %v1486 = vadd.f32 %v1482, 1e-05
    %v1487 = vadd.f32 %v1483, 1e-05
    %v1488 = vadd.f32 %v1484, 1e-05
    %v1489 = vrsqrt.pop %v1485
    %v1490 = vrsqrt.pop %v1486
    %v1491 = vrsqrt.pop %v1487
    %v1492 = vrsqrt.pop %v1488
    %v1493 = vmul.f32 %v1461, %v1489
    %v1494 = vmul.f32 %v1462, %v1490
    %v1495 = vmul.f32 %v1463, %v1491
    %v1496 = vmul.f32 %v1464, %v1492
    %v1498 = vlaneseq
    %v1499 = vshrl.u32 %v1498, 7
    %v1500 = vsub.s32 0, %v1499
    %v1501 = vrot.slane %v1443, %v1500
    %v1503 = vmul.f32 %v1493, %v1501
    %v1504 = vmul.f32 %v1494, %v1501
    %v1505 = vmul.f32 %v1495, %v1501
    %v1506 = vmul.f32 %v1496, %v1501
    %v1508 = vlaneseq
    %v1509 = vshrl.u32 %v1508, 7
    %v1510 = vsub.s32 0, %v1509
    %v1511 = vrot.slane %v1444, %v1510
    %v1513 = vadd.f32 %v1503, %v1511
    %v1514 = vadd.f32 %v1504, %v1511
    %v1515 = vadd.f32 %v1505, %v1511
    %v1516 = vadd.f32 %v1506, %v1511
    %v1517 = vpack.c.bf16 %v1514, %v1513
    %v1518 = vpack.c.bf16 %v1516, %v1515
    %v1519 = vld [vmem:[%s10] sm:$0xff]
    %v1520 = vld [vmem:[%s10 + $0x8] sm:$0xff]
    %v1521 = vld [vmem:[%s10 + $0x10] sm:$0xff]
    %v1522 = vld [vmem:[%s10 + $0x18] sm:$0xff]
    %v1523 = vld [vmem:[%s10 + $0x20] sm:$0xff]
    %v1524 = vld [vmem:[%s10 + $0x28] sm:$0xff]
    %v1525 = vld [vmem:[%s10 + $0x30] sm:$0xff]
    %v1526 = vld [vmem:[%s10 + $0x38] sm:$0xff]
    %v1527 = vld [vmem:[%s11] sm:$0x3]
    %v1529 = vlaneseq
    %v1530 = vshrl.u32 %v1529, 7
    %v1531 = vsub.s32 0, %v1530
    %v1532 = vrot.slane %v1527, %v1531
    %v1533 = vlaneseq
    %v1534 = vshrl.u32 %v1533, 7
    %v1535 = vsub.s32 1, %v1534
    %v1536 = vrot.slane %v1527, %v1535
    %v1547 = vunpack.c.l.b16 %v1519
    %v1548 = vunpack.c.h.b16 %v1519
    %v1549 = vunpack.c.l.b16 %v1520
    %v1550 = vunpack.c.h.b16 %v1520
    %v1551 = vunpack.c.l.b16 %v1521
    %v1552 = vunpack.c.h.b16 %v1521
    %v1553 = vunpack.c.l.b16 %v1522
    %v1554 = vunpack.c.h.b16 %v1522
    %v1555 = vunpack.c.l.b16 %v1523
    %v1556 = vunpack.c.h.b16 %v1523
    %v1557 = vunpack.c.l.b16 %v1524
    %v1558 = vunpack.c.h.b16 %v1524
    %v1559 = vunpack.c.l.b16 %v1525
    %v1560 = vunpack.c.h.b16 %v1525
    %v1561 = vunpack.c.l.b16 %v1526
    %v1562 = vunpack.c.h.b16 %v1526
    %v1563 = vpack.c.b16 %v1549, %v1547
    %v1564 = vpack.c.b16 %v1550, %v1548
    %v1565 = vpack.c.b16 %v1553, %v1551
    %v1566 = vpack.c.b16 %v1554, %v1552
    %v1567 = vpack.c.b16 %v1557, %v1555
    %v1568 = vpack.c.b16 %v1558, %v1556
    %v1569 = vpack.c.b16 %v1561, %v1559
    %v1570 = vpack.c.b16 %v1562, %v1560
    %v1580 = vsel %vm226, %v1517, 0
    %v1583 = vsel %vm226, %v1518, 0
    %1585 = vmatprep.subr.bf16.mxu0 %v1564
    %1586 = vmatpush1.bf16.msra.mxu0 %v1563
    %1587 = vmatprep.subr.bf16.mxu0 %v1566
    %1588 = vmatpush1.bf16.msra.mxu0 %v1565
    %1589 = vmatprep.subr.bf16.mxu0 %v1568
    %1590 = vmatpush1.bf16.msra.mxu0 %v1567
    %1591 = vmatprep.subr.bf16.mxu0 %v1570
    %1592 = vmatpush1.bf16.msra.mxu0 %v1569
    %1593 = vmatprep.subr.bf16.mxu0 0
    %1594 = vmatpush1.bf16.msra.mxu0 0
    %1595 = vmatprep.subr.bf16.mxu0 0
    %1596 = vmatpush1.bf16.msra.mxu0 0
    %1597 = vmatprep.subr.bf16.mxu0 0
    %1598 = vmatpush1.bf16.msra.mxu0 0
    %1599 = vmatprep.subr.bf16.mxu0 0
    %1600 = vmatpush1.bf16.msra.mxu0 0
    %1601 = vmatprep.subr.bf16.mxu0 0
    %1602 = vmatpush1.bf16.msra.mxu0 0
    %1603 = vmatprep.subr.bf16.mxu0 0
    %1604 = vmatpush1.bf16.msra.mxu0 0
    %1605 = vmatprep.subr.bf16.mxu0 0
    %1606 = vmatpush1.bf16.msra.mxu0 0
    %1607 = vmatprep.subr.bf16.mxu0 0
    %1608 = vmatpush1.bf16.msra.mxu0 0
    %1609 = vmatprep.subr.bf16.mxu0 0
    %1610 = vmatpush1.bf16.msra.mxu0 0
    %1611 = vmatprep.subr.bf16.mxu0 0
    %1612 = vmatpush1.bf16.msra.mxu0 0
    %1613 = vmatprep.subr.bf16.mxu0 0
    %1614 = vmatpush1.bf16.msra.mxu0 0
    %1615 = vmatprep.subr.bf16.mxu0 0
    %1616 = vmatpush1.bf16.msra.mxu0 0
    %1617 = vmatprep.mubr.bf16.mxu0 0
    %1618 = vmatmul.mubr.bf16.gmra.mrb[0].mxu0 %v1580
    %v1619 = vpop.f32.mrb[0].mxu0
    %v1620 = vadd.f32 %v1532, %v1619
    %v1621 = vpop.f32.mrb[0].mxu0
    %v1622 = vadd.f32 %v1536, %v1621
    %v1623 = vpop.f32.mrb[0].mxu0
    %v1624 = vadd.f32 %v1532, %v1623
    %v1625 = vpop.f32.mrb[0].mxu0
    %v1626 = vadd.f32 %v1536, %v1625
    %1627 = vmatprep.mubr.bf16.mxu0 0
    %1628 = vmatmul.mubr.bf16.gmra.mrb[0].mxu0 %v1583
    %v1629 = vpop.f32.mrb[0].mxu0
    %v1630 = vadd.f32 %v1532, %v1629
    %v1631 = vpop.f32.mrb[0].mxu0
    %v1632 = vadd.f32 %v1536, %v1631
    %v1633 = vpop.f32.mrb[0].mxu0
    %v1634 = vadd.f32 %v1532, %v1633
    %v1635 = vpop.f32.mrb[0].mxu0
    %v1636 = vadd.f32 %v1536, %v1635
    %1637 = vdwg.mxu0
    %v1638 = vmax.f32 %v1620, 0.0
    %v1639 = vmax.f32 %v1622, 0.0
    %v1640 = vmax.f32 %v1624, 0.0
    %v1641 = vmax.f32 %v1626, 0.0
    %v1642 = vmax.f32 %v1630, 0.0
    %v1643 = vmax.f32 %v1632, 0.0
    %v1644 = vmax.f32 %v1634, 0.0
    %v1645 = vmax.f32 %v1636, 0.0
    %v1646 = vpack.c.bf16 %v1640, %v1638
    %v1647 = vpack.c.bf16 %v1641, %v1639
    %v1648 = vpack.c.bf16 %v1644, %v1642
    %v1649 = vpack.c.bf16 %v1645, %v1643
    %v1650 = vld [vmem:[%s12] sm:$0xf]
    %v1651 = vld [vmem:[%s12 + $0x4] sm:$0xf]
    %v1652 = vld [vmem:[%s12 + $0x8] sm:$0xf]
    %v1653 = vld [vmem:[%s12 + $0xc] sm:$0xf]
    %v1654 = vld [vmem:[%s12 + $0x10] sm:$0xf]
    %v1655 = vld [vmem:[%s12 + $0x14] sm:$0xf]
    %v1656 = vld [vmem:[%s12 + $0x18] sm:$0xf]
    %v1657 = vld [vmem:[%s12 + $0x1c] sm:$0xf]
    %v1658 = vld [vmem:[%s12 + $0x20] sm:$0xf]
    %v1659 = vld [vmem:[%s12 + $0x24] sm:$0xf]
    %v1660 = vld [vmem:[%s12 + $0x28] sm:$0xf]
    %v1661 = vld [vmem:[%s12 + $0x2c] sm:$0xf]
    %v1662 = vld [vmem:[%s12 + $0x30] sm:$0xf]
    %v1663 = vld [vmem:[%s12 + $0x34] sm:$0xf]
    %v1664 = vld [vmem:[%s12 + $0x38] sm:$0xf]
    %v1665 = vld [vmem:[%s12 + $0x3c] sm:$0xf]
    %v1666 = vld [vmem:[%s12 + $0x40] sm:$0xf]
    %v1667 = vld [vmem:[%s12 + $0x44] sm:$0xf]
    %v1668 = vld [vmem:[%s12 + $0x48] sm:$0xf]
    %v1669 = vld [vmem:[%s12 + $0x4c] sm:$0xf]
    %v1670 = vld [vmem:[%s12 + $0x50] sm:$0xf]
    %v1671 = vld [vmem:[%s12 + $0x54] sm:$0xf]
    %v1672 = vld [vmem:[%s12 + $0x58] sm:$0xf]
    %v1673 = vld [vmem:[%s12 + $0x5c] sm:$0xf]
    %v1674 = vld [vmem:[%s12 + $0x60] sm:$0xf]
    %v1675 = vld [vmem:[%s12 + $0x64] sm:$0xf]
    %v1676 = vld [vmem:[%s12 + $0x68] sm:$0xf]
    %v1677 = vld [vmem:[%s12 + $0x6c] sm:$0xf]
    %v1678 = vld [vmem:[%s12 + $0x70] sm:$0xf]
    %v1679 = vld [vmem:[%s12 + $0x74] sm:$0xf]
    %v1680 = vld [vmem:[%s12 + $0x78] sm:$0xf]
    %v1681 = vld [vmem:[%s12 + $0x7c] sm:$0xf]
    %v1682 = vld [vmem:[%s13] sm:$0x1]
    %v1684 = vlaneseq
    %v1685 = vshrl.u32 %v1684, 7
    %v1686 = vsub.s32 0, %v1685
    %v1687 = vrot.slane %v1682, %v1686
    %v1721 = vunpack.c.l.b16 %v1650
    %v1722 = vunpack.c.l.b16 %v1651
    %v1723 = vunpack.c.l.b16 %v1652
    %v1724 = vunpack.c.l.b16 %v1653
    %v1725 = vunpack.c.l.b16 %v1654
    %v1726 = vunpack.c.l.b16 %v1655
    %v1727 = vunpack.c.l.b16 %v1656
    %v1728 = vunpack.c.l.b16 %v1657
    %v1729 = vunpack.c.l.b16 %v1658
    %v1730 = vunpack.c.l.b16 %v1659
    %v1731 = vunpack.c.l.b16 %v1660
    %v1732 = vunpack.c.l.b16 %v1661
    %v1733 = vunpack.c.l.b16 %v1662
    %v1734 = vunpack.c.l.b16 %v1663
    %v1735 = vunpack.c.l.b16 %v1664
    %v1736 = vunpack.c.l.b16 %v1665
    %v1737 = vunpack.c.l.b16 %v1666
    %v1738 = vunpack.c.l.b16 %v1667
    %v1739 = vunpack.c.l.b16 %v1668
    %v1740 = vunpack.c.l.b16 %v1669
    %v1741 = vunpack.c.l.b16 %v1670
    %v1742 = vunpack.c.l.b16 %v1671
    %v1743 = vunpack.c.l.b16 %v1672
    %v1744 = vunpack.c.l.b16 %v1673
    %v1745 = vunpack.c.l.b16 %v1674
    %v1746 = vunpack.c.l.b16 %v1675
    %v1747 = vunpack.c.l.b16 %v1676
    %v1748 = vunpack.c.l.b16 %v1677
    %v1749 = vunpack.c.l.b16 %v1678
    %v1750 = vunpack.c.l.b16 %v1679
    %v1751 = vunpack.c.l.b16 %v1680
    %v1752 = vunpack.c.l.b16 %v1681
    %v1753 = vpack.c.b16 %v1722, %v1721
    %v1754 = vpack.c.b16 %v1724, %v1723
    %v1755 = vpack.c.b16 %v1726, %v1725
    %v1756 = vpack.c.b16 %v1728, %v1727
    %v1757 = vpack.c.b16 %v1730, %v1729
    %v1758 = vpack.c.b16 %v1732, %v1731
    %v1759 = vpack.c.b16 %v1734, %v1733
    %v1760 = vpack.c.b16 %v1736, %v1735
    %v1761 = vpack.c.b16 %v1738, %v1737
    %v1762 = vpack.c.b16 %v1740, %v1739
    %v1763 = vpack.c.b16 %v1742, %v1741
    %v1764 = vpack.c.b16 %v1744, %v1743
    %v1765 = vpack.c.b16 %v1746, %v1745
    %v1766 = vpack.c.b16 %v1748, %v1747
    %v1767 = vpack.c.b16 %v1750, %v1749
    %v1768 = vpack.c.b16 %v1752, %v1751
    %1785 = vmatprep.subr.bf16.mxu0 0
    %1786 = vmatpush1.bf16.msra.mxu0 %v1753
    %1787 = vmatprep.subr.bf16.mxu0 0
    %1788 = vmatpush1.bf16.msra.mxu0 %v1754
    %1789 = vmatprep.subr.bf16.mxu0 0
    %1790 = vmatpush1.bf16.msra.mxu0 %v1755
    %1791 = vmatprep.subr.bf16.mxu0 0
    %1792 = vmatpush1.bf16.msra.mxu0 %v1756
    %1793 = vmatprep.subr.bf16.mxu0 0
    %1794 = vmatpush1.bf16.msra.mxu0 %v1757
    %1795 = vmatprep.subr.bf16.mxu0 0
    %1796 = vmatpush1.bf16.msra.mxu0 %v1758
    %1797 = vmatprep.subr.bf16.mxu0 0
    %1798 = vmatpush1.bf16.msra.mxu0 %v1759
    %1799 = vmatprep.subr.bf16.mxu0 0
    %1800 = vmatpush1.bf16.msra.mxu0 %v1760
    %1801 = vmatprep.subr.bf16.mxu0 0
    %1802 = vmatpush1.bf16.msra.mxu0 %v1761
    %1803 = vmatprep.subr.bf16.mxu0 0
    %1804 = vmatpush1.bf16.msra.mxu0 %v1762
    %1805 = vmatprep.subr.bf16.mxu0 0
    %1806 = vmatpush1.bf16.msra.mxu0 %v1763
    %1807 = vmatprep.subr.bf16.mxu0 0
    %1808 = vmatpush1.bf16.msra.mxu0 %v1764
    %1809 = vmatprep.subr.bf16.mxu0 0
    %1810 = vmatpush1.bf16.msra.mxu0 %v1765
    %1811 = vmatprep.subr.bf16.mxu0 0
    %1812 = vmatpush1.bf16.msra.mxu0 %v1766
    %1813 = vmatprep.subr.bf16.mxu0 0
    %1814 = vmatpush1.bf16.msra.mxu0 %v1767
    %1815 = vmatprep.subr.bf16.mxu0 0
    %1816 = vmatpush1.bf16.msra.mxu0 %v1768
    %1817 = vmatprep.mubr.bf16.mxu0 %v1647
    %1818 = vmatmul.mubr.bf16.gmra.mrb[0].mxu0 %v1646
    %v1819 = vpop.f32.mrb[0].mxu0
    %v1820 = vadd.f32 %v1687, %v1819
    %v1821 = vpop.f32.mrb[0].mxu0
    %v1822 = vpop.f32.mrb[0].mxu0
    %v1823 = vadd.f32 %v1687, %v1822
    %v1824 = vpop.f32.mrb[0].mxu0
    %1825 = vmatprep.mubr.bf16.mxu0 %v1649
    %1826 = vmatmul.mubr.bf16.gmra.mrb[0].mxu0 %v1648
    %v1827 = vpop.f32.mrb[0].mxu0
    %v1828 = vadd.f32 %v1687, %v1827
    %v1829 = vpop.f32.mrb[0].mxu0
    %v1830 = vpop.f32.mrb[0].mxu0
    %v1831 = vadd.f32 %v1687, %v1830
    %v1832 = vpop.f32.mrb[0].mxu0
    %1833 = vdwg.mxu0
    %v1834 = vadd.f32 %v1439, %v1820
    %v1835 = vadd.f32 %v1440, %v1823
    %v1836 = vadd.f32 %v1441, %v1828
    %v1837 = vadd.f32 %v1442, %v1831
    %s1838 = scalar_lea.vmem %s3, 1
    %v1839 = vld [vmem:[%s1838] sm:$0x1]
    %s1840 = scalar_lea.vmem %s4, 1
    %v1841 = vld [vmem:[%s1840] sm:$0x1]
    %v1842 = vsel %vm226, %v1834, 0.0
    %1843 = vadd.xlane.f32.xlu0 %v1842
    %v1844 = vpop.xlane.xlu0 %1843
    %v1845 = vsel %vm226, %v1835, 0.0
    %1846 = vadd.xlane.f32.xlu0 %v1845
    %v1847 = vpop.xlane.xlu0 %1846
    %v1848 = vsel %vm226, %v1836, 0.0
    %1849 = vadd.xlane.f32.xlu0 %v1848
    %v1850 = vpop.xlane.xlu0 %1849
    %v1851 = vsel %vm226, %v1837, 0.0
    %1852 = vadd.xlane.f32.xlu0 %v1851
    %v1853 = vpop.xlane.xlu0 %1852
    %v1854 = vmul.f32 %v1844, %v239
    %v1855 = vmul.f32 %v1847, %v239
    %v1856 = vmul.f32 %v1850, %v239
    %v1857 = vmul.f32 %v1853, %v239
    %v1858 = vsub.f32 %v1834, %v1854
    %v1859 = vsub.f32 %v1835, %v1855
    %v1860 = vsub.f32 %v1836, %v1856
    %v1861 = vsub.f32 %v1837, %v1857
    %v1862 = vmul.f32 %v1858, %v1858
    %v1863 = vmul.f32 %v1859, %v1859
    %v1864 = vmul.f32 %v1860, %v1860
    %v1865 = vmul.f32 %v1861, %v1861
    %v1866 = vsel %vm226, %v1862, 0.0
    %1867 = vadd.xlane.f32.xlu0 %v1866
    %v1868 = vpop.xlane.xlu0 %1867
    %v1869 = vsel %vm226, %v1863, 0.0
    %1870 = vadd.xlane.f32.xlu0 %v1869
    %v1871 = vpop.xlane.xlu0 %1870
    %v1872 = vsel %vm226, %v1864, 0.0
    %1873 = vadd.xlane.f32.xlu0 %v1872
    %v1874 = vpop.xlane.xlu0 %1873
    %v1875 = vsel %vm226, %v1865, 0.0
    %1876 = vadd.xlane.f32.xlu0 %v1875
    %v1877 = vpop.xlane.xlu0 %1876
    %v1878 = vmul.f32 %v1868, %v239
    %v1879 = vmul.f32 %v1871, %v239
    %v1880 = vmul.f32 %v1874, %v239
    %v1881 = vmul.f32 %v1877, %v239
    %v1882 = vadd.f32 %v1878, 1e-05
    %v1883 = vadd.f32 %v1879, 1e-05
    %v1884 = vadd.f32 %v1880, 1e-05
    %v1885 = vadd.f32 %v1881, 1e-05
    %v1886 = vrsqrt.pop %v1882
    %v1887 = vrsqrt.pop %v1883
    %v1888 = vrsqrt.pop %v1884
    %v1889 = vrsqrt.pop %v1885
    %v1890 = vmul.f32 %v1858, %v1886
    %v1891 = vmul.f32 %v1859, %v1887
    %v1892 = vmul.f32 %v1860, %v1888
    %v1893 = vmul.f32 %v1861, %v1889
    %v1895 = vlaneseq
    %v1896 = vshrl.u32 %v1895, 7
    %v1897 = vsub.s32 0, %v1896
    %v1898 = vrot.slane %v1839, %v1897
    %v1900 = vmul.f32 %v1890, %v1898
    %v1901 = vmul.f32 %v1891, %v1898
    %v1902 = vmul.f32 %v1892, %v1898
    %v1903 = vmul.f32 %v1893, %v1898
    %v1905 = vlaneseq
    %v1906 = vshrl.u32 %v1905, 7
    %v1907 = vsub.s32 0, %v1906
    %v1908 = vrot.slane %v1841, %v1907
    %v1910 = vadd.f32 %v1900, %v1908
    %v1911 = vadd.f32 %v1901, %v1908
    %v1912 = vadd.f32 %v1902, %v1908
    %v1913 = vadd.f32 %v1903, %v1908
    %v1914 = vpack.c.bf16 %v1911, %v1910
    %v1915 = vpack.c.bf16 %v1913, %v1912
    %s1916 = scalar_lea.vmem %s5, 96
    %v1917 = vld [vmem:[%s1916] sm:$0xf]
    %v1918 = vld [vmem:[%s1916 + $0x4] sm:$0xf]
    %v1919 = vld [vmem:[%s1916 + $0x8] sm:$0xf]
    %v1920 = vld [vmem:[%s1916 + $0xc] sm:$0xf]
    %v1921 = vld [vmem:[%s1916 + $0x10] sm:$0xf]
    %v1922 = vld [vmem:[%s1916 + $0x14] sm:$0xf]
    %v1923 = vld [vmem:[%s1916 + $0x18] sm:$0xf]
    %v1924 = vld [vmem:[%s1916 + $0x1c] sm:$0xf]
    %v1925 = vld [vmem:[%s1916 + $0x20] sm:$0xf]
    %v1926 = vld [vmem:[%s1916 + $0x24] sm:$0xf]
    %v1927 = vld [vmem:[%s1916 + $0x28] sm:$0xf]
    %v1928 = vld [vmem:[%s1916 + $0x2c] sm:$0xf]
    %v1929 = vld [vmem:[%s1916 + $0x30] sm:$0xf]
    %v1930 = vld [vmem:[%s1916 + $0x34] sm:$0xf]
    %v1931 = vld [vmem:[%s1916 + $0x38] sm:$0xf]
    %v1932 = vld [vmem:[%s1916 + $0x3c] sm:$0xf]
    %v1933 = vld [vmem:[%s1916 + $0x40] sm:$0xf]
    %v1934 = vld [vmem:[%s1916 + $0x44] sm:$0xf]
    %v1935 = vld [vmem:[%s1916 + $0x48] sm:$0xf]
    %v1936 = vld [vmem:[%s1916 + $0x4c] sm:$0xf]
    %v1937 = vld [vmem:[%s1916 + $0x50] sm:$0xf]
    %v1938 = vld [vmem:[%s1916 + $0x54] sm:$0xf]
    %v1939 = vld [vmem:[%s1916 + $0x58] sm:$0xf]
    %v1940 = vld [vmem:[%s1916 + $0x5c] sm:$0xf]
    %v1965 = vunpack.c.l.b16 %v1917
    %v1966 = vunpack.c.l.b16 %v1918
    %v1967 = vunpack.c.l.b16 %v1919
    %v1968 = vunpack.c.l.b16 %v1920
    %v1969 = vunpack.c.l.b16 %v1921
    %v1970 = vunpack.c.l.b16 %v1922
    %v1971 = vunpack.c.l.b16 %v1923
    %v1972 = vunpack.c.l.b16 %v1924
    %v1973 = vunpack.c.l.b16 %v1925
    %v1974 = vunpack.c.l.b16 %v1926
    %v1975 = vunpack.c.l.b16 %v1927
    %v1976 = vunpack.c.l.b16 %v1928
    %v1977 = vunpack.c.l.b16 %v1929
    %v1978 = vunpack.c.l.b16 %v1930
    %v1979 = vunpack.c.l.b16 %v1931
    %v1980 = vunpack.c.l.b16 %v1932
    %v1981 = vunpack.c.l.b16 %v1933
    %v1982 = vunpack.c.l.b16 %v1934
    %v1983 = vunpack.c.l.b16 %v1935
    %v1984 = vunpack.c.l.b16 %v1936
    %v1985 = vunpack.c.l.b16 %v1937
    %v1986 = vunpack.c.l.b16 %v1938
    %v1987 = vunpack.c.l.b16 %v1939
    %v1988 = vunpack.c.l.b16 %v1940
    %v1989 = vpack.c.b16 %v1966, %v1965
    %v1990 = vpack.c.b16 %v1968, %v1967
    %v1991 = vpack.c.b16 %v1970, %v1969
    %v1992 = vpack.c.b16 %v1972, %v1971
    %v1993 = vpack.c.b16 %v1974, %v1973
    %v1994 = vpack.c.b16 %v1976, %v1975
    %v1995 = vpack.c.b16 %v1978, %v1977
    %v1996 = vpack.c.b16 %v1980, %v1979
    %v1997 = vpack.c.b16 %v1982, %v1981
    %v1998 = vpack.c.b16 %v1984, %v1983
    %v1999 = vpack.c.b16 %v1986, %v1985
    %v2000 = vpack.c.b16 %v1988, %v1987
    %v2002 = vsel %vm226, %v1989, 0
    %v2005 = vsel %vm226, %v1990, 0
    %v2008 = vsel %vm226, %v1991, 0
    %v2011 = vsel %vm226, %v1992, 0
    %v2014 = vsel %vm226, %v1993, 0
    %v2017 = vsel %vm226, %v1994, 0
    %v2020 = vsel %vm226, %v1995, 0
    %v2023 = vsel %vm226, %v1996, 0
    %v2026 = vsel %vm226, %v1997, 0
    %v2029 = vsel %vm226, %v1998, 0
    %v2032 = vsel %vm226, %v1999, 0
    %v2035 = vsel %vm226, %v2000, 0
    %v2038 = vsel %vm226, %v1914, 0
    %v2041 = vsel %vm226, %v1915, 0
    %2043 = vmatprep.subr.bf16.mxu0 0
    %2044 = vmatpush1.bf16.xpose.msra.mxu0 %v2038
    %2045 = vmatprep.subr.bf16.mxu0 0
    %2046 = vmatpush1.bf16.xpose.msra.mxu0 %v2041
    %2047 = vmatprep.subr.bf16.mxu0 0
    %2048 = vmatpush1.bf16.xpose.msra.mxu0 0
    %2049 = vmatprep.subr.bf16.mxu0 0
    %2050 = vmatpush1.bf16.xpose.msra.mxu0 0
    %2051 = vmatprep.subr.bf16.mxu0 0
    %2052 = vmatpush1.bf16.xpose.msra.mxu0 0
    %2053 = vmatprep.subr.bf16.mxu0 0
    %2054 = vmatpush1.bf16.xpose.msra.mxu0 0
    %2055 = vmatprep.subr.bf16.mxu0 0
    %2056 = vmatpush1.bf16.xpose.msra.mxu0 0
    %2057 = vmatprep.subr.bf16.mxu0 0
    %2058 = vmatpush1.bf16.xpose.msra.mxu0 0
    %2059 = vmatprep.subr.bf16.mxu0 0
    %2060 = vmatpush1.bf16.xpose.msra.mxu0 0
    %2061 = vmatprep.subr.bf16.mxu0 0
    %2062 = vmatpush1.bf16.xpose.msra.mxu0 0
    %2063 = vmatprep.subr.bf16.mxu0 0
    %2064 = vmatpush1.bf16.xpose.msra.mxu0 0
    %2065 = vmatprep.subr.bf16.mxu0 0
    %2066 = vmatpush1.bf16.xpose.msra.mxu0 0
    %2067 = vmatprep.subr.bf16.mxu0 0
    %2068 = vmatpush1.bf16.xpose.msra.mxu0 0
    %2069 = vmatprep.subr.bf16.mxu0 0
    %2070 = vmatpush1.bf16.xpose.msra.mxu0 0
    %2071 = vmatprep.subr.bf16.mxu0 0
    %2072 = vmatpush1.bf16.xpose.msra.mxu0 0
    %2073 = vmatprep.subr.bf16.mxu0 0
    %2074 = vmatpush1.bf16.xpose.msra.mxu0 0
    %2075 = vmatprep.mubr.bf16.mxu0 0
    %2076 = vmatmul.mubr.bf16.gmra.mrb[0].mxu0 %v2002
    %v2077 = vpop.f32.mrb[0].mxu0
    %v2078 = vadd.f32 0.0, %v2077
    %v2079 = vpop.f32.mrb[0].mxu0
    %v2080 = vpop.f32.mrb[0].mxu0
    %v2081 = vadd.f32 0.0, %v2080
    %v2082 = vpop.f32.mrb[0].mxu0
    %2083 = vmatprep.mubr.bf16.mxu0 0
    %2084 = vmatmul.mubr.bf16.gmra.mrb[0].mxu0 %v2005
    %v2085 = vpop.f32.mrb[0].mxu0
    %v2086 = vadd.f32 0.0, %v2085
    %v2087 = vpop.f32.mrb[0].mxu0
    %v2088 = vpop.f32.mrb[0].mxu0
    %v2089 = vadd.f32 0.0, %v2088
    %v2090 = vpop.f32.mrb[0].mxu0
    %2091 = vmatprep.mubr.bf16.mxu0 0
    %2092 = vmatmul.mubr.bf16.gmra.mrb[0].mxu0 %v2008
    %v2093 = vpop.f32.mrb[0].mxu0
    %v2094 = vadd.f32 0.0, %v2093
    %v2095 = vpop.f32.mrb[0].mxu0
    %v2096 = vpop.f32.mrb[0].mxu0
    %v2097 = vadd.f32 0.0, %v2096
    %v2098 = vpop.f32.mrb[0].mxu0
    %2099 = vmatprep.mubr.bf16.mxu0 0
    %2100 = vmatmul.mubr.bf16.gmra.mrb[0].mxu0 %v2011
    %v2101 = vpop.f32.mrb[0].mxu0
    %v2102 = vadd.f32 0.0, %v2101
    %v2103 = vpop.f32.mrb[0].mxu0
    %v2104 = vpop.f32.mrb[0].mxu0
    %v2105 = vadd.f32 0.0, %v2104
    %v2106 = vpop.f32.mrb[0].mxu0
    %2107 = vmatprep.mubr.bf16.mxu0 0
    %2108 = vmatmul.mubr.bf16.gmra.mrb[0].mxu0 %v2014
    %v2109 = vpop.f32.mrb[0].mxu0
    %v2110 = vadd.f32 0.0, %v2109
    %v2111 = vpop.f32.mrb[0].mxu0
    %v2112 = vpop.f32.mrb[0].mxu0
    %v2113 = vadd.f32 0.0, %v2112
    %v2114 = vpop.f32.mrb[0].mxu0
    %2115 = vmatprep.mubr.bf16.mxu0 0
    %2116 = vmatmul.mubr.bf16.gmra.mrb[0].mxu0 %v2017
    %v2117 = vpop.f32.mrb[0].mxu0
    %v2118 = vadd.f32 0.0, %v2117
    %v2119 = vpop.f32.mrb[0].mxu0
    %v2120 = vpop.f32.mrb[0].mxu0
    %v2121 = vadd.f32 0.0, %v2120
    %v2122 = vpop.f32.mrb[0].mxu0
    %2123 = vmatprep.mubr.bf16.mxu0 0
    %2124 = vmatmul.mubr.bf16.gmra.mrb[0].mxu0 %v2020
    %v2125 = vpop.f32.mrb[0].mxu0
    %v2126 = vadd.f32 0.0, %v2125
    %v2127 = vpop.f32.mrb[0].mxu0
    %v2128 = vpop.f32.mrb[0].mxu0
    %v2129 = vadd.f32 0.0, %v2128
    %v2130 = vpop.f32.mrb[0].mxu0
    %2131 = vmatprep.mubr.bf16.mxu0 0
    %2132 = vmatmul.mubr.bf16.gmra.mrb[0].mxu0 %v2023
    %v2133 = vpop.f32.mrb[0].mxu0
    %v2134 = vadd.f32 0.0, %v2133
    %v2135 = vpop.f32.mrb[0].mxu0
    %v2136 = vpop.f32.mrb[0].mxu0
    %v2137 = vadd.f32 0.0, %v2136
    %v2138 = vpop.f32.mrb[0].mxu0
    %2139 = vmatprep.mubr.bf16.mxu0 0
    %2140 = vmatmul.mubr.bf16.gmra.mrb[0].mxu0 %v2026
    %v2141 = vpop.f32.mrb[0].mxu0
    %v2142 = vadd.f32 0.0, %v2141
    %v2143 = vpop.f32.mrb[0].mxu0
    %v2144 = vpop.f32.mrb[0].mxu0
    %v2145 = vadd.f32 0.0, %v2144
    %v2146 = vpop.f32.mrb[0].mxu0
    %2147 = vmatprep.mubr.bf16.mxu0 0
    %2148 = vmatmul.mubr.bf16.gmra.mrb[0].mxu0 %v2029
    %v2149 = vpop.f32.mrb[0].mxu0
    %v2150 = vadd.f32 0.0, %v2149
    %v2151 = vpop.f32.mrb[0].mxu0
    %v2152 = vpop.f32.mrb[0].mxu0
    %v2153 = vadd.f32 0.0, %v2152
    %v2154 = vpop.f32.mrb[0].mxu0
    %2155 = vmatprep.mubr.bf16.mxu0 0
    %2156 = vmatmul.mubr.bf16.gmra.mrb[0].mxu0 %v2032
    %v2157 = vpop.f32.mrb[0].mxu0
    %v2158 = vadd.f32 0.0, %v2157
    %v2159 = vpop.f32.mrb[0].mxu0
    %v2160 = vpop.f32.mrb[0].mxu0
    %v2161 = vadd.f32 0.0, %v2160
    %v2162 = vpop.f32.mrb[0].mxu0
    %2163 = vmatprep.mubr.bf16.mxu0 0
    %2164 = vmatmul.mubr.bf16.gmra.mrb[0].mxu0 %v2035
    %v2165 = vpop.f32.mrb[0].mxu0
    %v2166 = vadd.f32 0.0, %v2165
    %v2167 = vpop.f32.mrb[0].mxu0
    %v2168 = vpop.f32.mrb[0].mxu0
    %v2169 = vadd.f32 0.0, %v2168
    %v2170 = vpop.f32.mrb[0].mxu0
    %2171 = vdwg.mxu0
    %2172 = vxpose.xlu0.b32.start [1/16] %v2078, 128
    %2173 = vxpose.xlu0.b32.cont [2/16] %v2081, 128
    %2174 = vxpose.xlu0.b32.cont [3/16] 0.0, 128
    %2175 = vxpose.xlu0.b32.cont [4/16] 0.0, 128
    %2176 = vxpose.xlu0.b32.cont [5/16] 0.0, 128
    %2177 = vxpose.xlu0.b32.cont [6/16] 0.0, 128
    %2178 = vxpose.xlu0.b32.cont [7/16] 0.0, 128
    %2179 = vxpose.xlu0.b32.cont [8/16] 0.0, 128
    %2180 = vxpose.xlu0.b32.cont [9/16] 0.0, 128
    %2181 = vxpose.xlu0.b32.cont [10/16] 0.0, 128
    %2182 = vxpose.xlu0.b32.cont [11/16] 0.0, 128
    %2183 = vxpose.xlu0.b32.cont [12/16] 0.0, 128
    %2184 = vxpose.xlu0.b32.cont [13/16] 0.0, 128
    %2185 = vxpose.xlu0.b32.cont [14/16] 0.0, 128
    %2186 = vxpose.xlu0.b32.cont [15/16] 0.0, 128
    %2187 = vxpose.xlu0.b32.end [16/16] 0.0, 128
    %v2188 = vpop.trf.xlu0
    %v2189 = vpop.trf.xlu0
    %v2190 = vpop.trf.xlu0
    %v2191 = vpop.trf.xlu0
    %v2192 = vpop.trf.xlu0
    %v2193 = vpop.trf.xlu0
    %v2194 = vpop.trf.xlu0
    %v2195 = vpop.trf.xlu0
    %v2196 = vpop.trf.xlu0
    %v2197 = vpop.trf.xlu0
    %v2198 = vpop.trf.xlu0
    %v2199 = vpop.trf.xlu0
    %v2200 = vpop.trf.xlu0
    %v2201 = vpop.trf.xlu0
    %v2202 = vpop.trf.xlu0
    %v2203 = vpop.trf.xlu0
    %2204 = vxpose.xlu0.b32.start [1/16] %v2086, 128
    %2205 = vxpose.xlu0.b32.cont [2/16] %v2089, 128
    %2206 = vxpose.xlu0.b32.cont [3/16] 0.0, 128
    %2207 = vxpose.xlu0.b32.cont [4/16] 0.0, 128
    %2208 = vxpose.xlu0.b32.cont [5/16] 0.0, 128
    %2209 = vxpose.xlu0.b32.cont [6/16] 0.0, 128
    %2210 = vxpose.xlu0.b32.cont [7/16] 0.0, 128
    %2211 = vxpose.xlu0.b32.cont [8/16] 0.0, 128
    %2212 = vxpose.xlu0.b32.cont [9/16] 0.0, 128
    %2213 = vxpose.xlu0.b32.cont [10/16] 0.0, 128
    %2214 = vxpose.xlu0.b32.cont [11/16] 0.0, 128
    %2215 = vxpose.xlu0.b32.cont [12/16] 0.0, 128
    %2216 = vxpose.xlu0.b32.cont [13/16] 0.0, 128
    %2217 = vxpose.xlu0.b32.cont [14/16] 0.0, 128
    %2218 = vxpose.xlu0.b32.cont [15/16] 0.0, 128
    %2219 = vxpose.xlu0.b32.end [16/16] 0.0, 128
    %v2220 = vpop.trf.xlu0
    %v2221 = vpop.trf.xlu0
    %v2222 = vpop.trf.xlu0
    %v2223 = vpop.trf.xlu0
    %v2224 = vpop.trf.xlu0
    %v2225 = vpop.trf.xlu0
    %v2226 = vpop.trf.xlu0
    %v2227 = vpop.trf.xlu0
    %v2228 = vpop.trf.xlu0
    %v2229 = vpop.trf.xlu0
    %v2230 = vpop.trf.xlu0
    %v2231 = vpop.trf.xlu0
    %v2232 = vpop.trf.xlu0
    %v2233 = vpop.trf.xlu0
    %v2234 = vpop.trf.xlu0
    %v2235 = vpop.trf.xlu0
    %2236 = vxpose.xlu0.b32.start [1/16] %v2094, 128
    %2237 = vxpose.xlu0.b32.cont [2/16] %v2097, 128
    %2238 = vxpose.xlu0.b32.cont [3/16] 0.0, 128
    %2239 = vxpose.xlu0.b32.cont [4/16] 0.0, 128
    %2240 = vxpose.xlu0.b32.cont [5/16] 0.0, 128
    %2241 = vxpose.xlu0.b32.cont [6/16] 0.0, 128
    %2242 = vxpose.xlu0.b32.cont [7/16] 0.0, 128
    %2243 = vxpose.xlu0.b32.cont [8/16] 0.0, 128
    %2244 = vxpose.xlu0.b32.cont [9/16] 0.0, 128
    %2245 = vxpose.xlu0.b32.cont [10/16] 0.0, 128
    %2246 = vxpose.xlu0.b32.cont [11/16] 0.0, 128
    %2247 = vxpose.xlu0.b32.cont [12/16] 0.0, 128
    %2248 = vxpose.xlu0.b32.cont [13/16] 0.0, 128
    %2249 = vxpose.xlu0.b32.cont [14/16] 0.0, 128
    %2250 = vxpose.xlu0.b32.cont [15/16] 0.0, 128
    %2251 = vxpose.xlu0.b32.end [16/16] 0.0, 128
    %v2252 = vpop.trf.xlu0
    %v2253 = vpop.trf.xlu0
    %v2254 = vpop.trf.xlu0
    %v2255 = vpop.trf.xlu0
    %v2256 = vpop.trf.xlu0
    %v2257 = vpop.trf.xlu0
    %v2258 = vpop.trf.xlu0
    %v2259 = vpop.trf.xlu0
    %v2260 = vpop.trf.xlu0
    %v2261 = vpop.trf.xlu0
    %v2262 = vpop.trf.xlu0
    %v2263 = vpop.trf.xlu0
    %v2264 = vpop.trf.xlu0
    %v2265 = vpop.trf.xlu0
    %v2266 = vpop.trf.xlu0
    %v2267 = vpop.trf.xlu0
    %2268 = vxpose.xlu0.b32.start [1/16] %v2102, 128
    %2269 = vxpose.xlu0.b32.cont [2/16] %v2105, 128
    %2270 = vxpose.xlu0.b32.cont [3/16] 0.0, 128
    %2271 = vxpose.xlu0.b32.cont [4/16] 0.0, 128
    %2272 = vxpose.xlu0.b32.cont [5/16] 0.0, 128
    %2273 = vxpose.xlu0.b32.cont [6/16] 0.0, 128
    %2274 = vxpose.xlu0.b32.cont [7/16] 0.0, 128
    %2275 = vxpose.xlu0.b32.cont [8/16] 0.0, 128
    %2276 = vxpose.xlu0.b32.cont [9/16] 0.0, 128
    %2277 = vxpose.xlu0.b32.cont [10/16] 0.0, 128
    %2278 = vxpose.xlu0.b32.cont [11/16] 0.0, 128
    %2279 = vxpose.xlu0.b32.cont [12/16] 0.0, 128
    %2280 = vxpose.xlu0.b32.cont [13/16] 0.0, 128
    %2281 = vxpose.xlu0.b32.cont [14/16] 0.0, 128
    %2282 = vxpose.xlu0.b32.cont [15/16] 0.0, 128
    %2283 = vxpose.xlu0.b32.end [16/16] 0.0, 128
    %v2284 = vpop.trf.xlu0
    %v2285 = vpop.trf.xlu0
    %v2286 = vpop.trf.xlu0
    %v2287 = vpop.trf.xlu0
    %v2288 = vpop.trf.xlu0
    %v2289 = vpop.trf.xlu0
    %v2290 = vpop.trf.xlu0
    %v2291 = vpop.trf.xlu0
    %v2292 = vpop.trf.xlu0
    %v2293 = vpop.trf.xlu0
    %v2294 = vpop.trf.xlu0
    %v2295 = vpop.trf.xlu0
    %v2296 = vpop.trf.xlu0
    %v2297 = vpop.trf.xlu0
    %v2298 = vpop.trf.xlu0
    %v2299 = vpop.trf.xlu0
    %v2300 = vpack.c.bf16 %v2189, %v2188
    %v2301 = vpack.c.bf16 %v2191, %v2190
    %v2302 = vpack.c.bf16 %v2221, %v2220
    %v2303 = vpack.c.bf16 %v2223, %v2222
    %v2304 = vpack.c.bf16 %v2253, %v2252
    %v2305 = vpack.c.bf16 %v2255, %v2254
    %v2306 = vpack.c.bf16 %v2285, %v2284
    %v2307 = vpack.c.bf16 %v2287, %v2286
    %v2308 = vpack.c.bf16 %v2113, %v2110
    %v2309 = vpack.c.bf16 %v2121, %v2118
    %v2310 = vpack.c.bf16 %v2129, %v2126
    %v2311 = vpack.c.bf16 %v2137, %v2134
    %v2312 = vpack.c.bf16 %v2145, %v2142
    %v2313 = vpack.c.bf16 %v2153, %v2150
    %v2314 = vpack.c.bf16 %v2161, %v2158
    %v2315 = vpack.c.bf16 %v2169, %v2166
    %v2317 = vsel %vm701, %v2300, 0
    %v2320 = vsel %vm701, %v2301, 0
    %2322 = vmatprep.subr.bf16.mxu0 0
    %2323 = vmatpush1.bf16.msra.mxu0 %v2308
    %2324 = vmatprep.subr.bf16.mxu0 0
    %2325 = vmatpush1.bf16.msra.mxu0 0
    %2326 = vmatprep.subr.bf16.mxu0 0
    %2327 = vmatpush1.bf16.msra.mxu0 0
    %2328 = vmatprep.subr.bf16.mxu0 0
    %2329 = vmatpush1.bf16.msra.mxu0 0
    %2330 = vmatprep.subr.bf16.mxu0 0
    %2331 = vmatpush1.bf16.msra.mxu0 0
    %2332 = vmatprep.subr.bf16.mxu0 0
    %2333 = vmatpush1.bf16.msra.mxu0 0
    %2334 = vmatprep.subr.bf16.mxu0 0
    %2335 = vmatpush1.bf16.msra.mxu0 0
    %2336 = vmatprep.subr.bf16.mxu0 0
    %2337 = vmatpush1.bf16.msra.mxu0 0
    %2338 = vmatprep.subr.bf16.mxu0 0
    %2339 = vmatpush1.bf16.msra.mxu0 0
    %2340 = vmatprep.subr.bf16.mxu0 0
    %2341 = vmatpush1.bf16.msra.mxu0 0
    %2342 = vmatprep.subr.bf16.mxu0 0
    %2343 = vmatpush1.bf16.msra.mxu0 0
    %2344 = vmatprep.subr.bf16.mxu0 0
    %2345 = vmatpush1.bf16.msra.mxu0 0
    %2346 = vmatprep.subr.bf16.mxu0 0
    %2347 = vmatpush1.bf16.msra.mxu0 0
    %2348 = vmatprep.subr.bf16.mxu0 0
    %2349 = vmatpush1.bf16.msra.mxu0 0
    %2350 = vmatprep.subr.bf16.mxu0 0
    %2351 = vmatpush1.bf16.msra.mxu0 0
    %2352 = vmatprep.subr.bf16.mxu0 0
    %2353 = vmatpush1.bf16.msra.mxu0 0
    %2354 = vmatprep.mubr.bf16.mxu0 0
    %2355 = vmatmul.mubr.bf16.gmra.mrb[0].mxu0 %v2317
    %v2356 = vpop.f32.mrb[0].mxu0
    %v2357 = vadd.f32 %v220, %v2356
    %v2358 = vpop.f32.mrb[0].mxu0
    %v2359 = vpop.f32.mrb[0].mxu0
    %v2360 = vadd.f32 %v221, %v2359
    %v2361 = vpop.f32.mrb[0].mxu0
    %2362 = vmatprep.mubr.bf16.mxu0 0
    %2363 = vmatmul.mubr.bf16.gmra.mrb[0].mxu0 %v2320
    %v2364 = vpop.f32.mrb[0].mxu0
    %v2365 = vadd.f32 %v222, %v2364
    %v2366 = vpop.f32.mrb[0].mxu0
    %v2367 = vpop.f32.mrb[0].mxu0
    %v2368 = vadd.f32 %v223, %v2367
    %v2369 = vpop.f32.mrb[0].mxu0
    %2370 = vdwg.mxu0
    %v2372 = vsel %vm701, %v2302, 0
    %v2375 = vsel %vm701, %v2303, 0
    %2377 = vmatprep.subr.bf16.mxu0 0
    %2378 = vmatpush1.bf16.msra.mxu0 %v2309
    %2379 = vmatprep.subr.bf16.mxu0 0
    %2380 = vmatpush1.bf16.msra.mxu0 0
    %2381 = vmatprep.subr.bf16.mxu0 0
    %2382 = vmatpush1.bf16.msra.mxu0 0
    %2383 = vmatprep.subr.bf16.mxu0 0
    %2384 = vmatpush1.bf16.msra.mxu0 0
    %2385 = vmatprep.subr.bf16.mxu0 0
    %2386 = vmatpush1.bf16.msra.mxu0 0
    %2387 = vmatprep.subr.bf16.mxu0 0
    %2388 = vmatpush1.bf16.msra.mxu0 0
    %2389 = vmatprep.subr.bf16.mxu0 0
    %2390 = vmatpush1.bf16.msra.mxu0 0
    %2391 = vmatprep.subr.bf16.mxu0 0
    %2392 = vmatpush1.bf16.msra.mxu0 0
    %2393 = vmatprep.subr.bf16.mxu0 0
    %2394 = vmatpush1.bf16.msra.mxu0 0
    %2395 = vmatprep.subr.bf16.mxu0 0
    %2396 = vmatpush1.bf16.msra.mxu0 0
    %2397 = vmatprep.subr.bf16.mxu0 0
    %2398 = vmatpush1.bf16.msra.mxu0 0
    %2399 = vmatprep.subr.bf16.mxu0 0
    %2400 = vmatpush1.bf16.msra.mxu0 0
    %2401 = vmatprep.subr.bf16.mxu0 0
    %2402 = vmatpush1.bf16.msra.mxu0 0
    %2403 = vmatprep.subr.bf16.mxu0 0
    %2404 = vmatpush1.bf16.msra.mxu0 0
    %2405 = vmatprep.subr.bf16.mxu0 0
    %2406 = vmatpush1.bf16.msra.mxu0 0
    %2407 = vmatprep.subr.bf16.mxu0 0
    %2408 = vmatpush1.bf16.msra.mxu0 0
    %2409 = vmatprep.mubr.bf16.mxu0 0
    %2410 = vmatmul.mubr.bf16.gmra.mrb[0].mxu0 %v2372
    %v2411 = vpop.f32.mrb[0].mxu0
    %v2412 = vadd.f32 %v220, %v2411
    %v2413 = vpop.f32.mrb[0].mxu0
    %v2414 = vpop.f32.mrb[0].mxu0
    %v2415 = vadd.f32 %v221, %v2414
    %v2416 = vpop.f32.mrb[0].mxu0
    %2417 = vmatprep.mubr.bf16.mxu0 0
    %2418 = vmatmul.mubr.bf16.gmra.mrb[0].mxu0 %v2375
    %v2419 = vpop.f32.mrb[0].mxu0
    %v2420 = vadd.f32 %v222, %v2419
    %v2421 = vpop.f32.mrb[0].mxu0
    %v2422 = vpop.f32.mrb[0].mxu0
    %v2423 = vadd.f32 %v223, %v2422
    %v2424 = vpop.f32.mrb[0].mxu0
    %2425 = vdwg.mxu0
    %v2427 = vsel %vm701, %v2304, 0
    %v2430 = vsel %vm701, %v2305, 0
    %2432 = vmatprep.subr.bf16.mxu0 0
    %2433 = vmatpush1.bf16.msra.mxu0 %v2310
    %2434 = vmatprep.subr.bf16.mxu0 0
    %2435 = vmatpush1.bf16.msra.mxu0 0
    %2436 = vmatprep.subr.bf16.mxu0 0
    %2437 = vmatpush1.bf16.msra.mxu0 0
    %2438 = vmatprep.subr.bf16.mxu0 0
    %2439 = vmatpush1.bf16.msra.mxu0 0
    %2440 = vmatprep.subr.bf16.mxu0 0
    %2441 = vmatpush1.bf16.msra.mxu0 0
    %2442 = vmatprep.subr.bf16.mxu0 0
    %2443 = vmatpush1.bf16.msra.mxu0 0
    %2444 = vmatprep.subr.bf16.mxu0 0
    %2445 = vmatpush1.bf16.msra.mxu0 0
    %2446 = vmatprep.subr.bf16.mxu0 0
    %2447 = vmatpush1.bf16.msra.mxu0 0
    %2448 = vmatprep.subr.bf16.mxu0 0
    %2449 = vmatpush1.bf16.msra.mxu0 0
    %2450 = vmatprep.subr.bf16.mxu0 0
    %2451 = vmatpush1.bf16.msra.mxu0 0
    %2452 = vmatprep.subr.bf16.mxu0 0
    %2453 = vmatpush1.bf16.msra.mxu0 0
    %2454 = vmatprep.subr.bf16.mxu0 0
    %2455 = vmatpush1.bf16.msra.mxu0 0
    %2456 = vmatprep.subr.bf16.mxu0 0
    %2457 = vmatpush1.bf16.msra.mxu0 0
    %2458 = vmatprep.subr.bf16.mxu0 0
    %2459 = vmatpush1.bf16.msra.mxu0 0
    %2460 = vmatprep.subr.bf16.mxu0 0
    %2461 = vmatpush1.bf16.msra.mxu0 0
    %2462 = vmatprep.subr.bf16.mxu0 0
    %2463 = vmatpush1.bf16.msra.mxu0 0
    %2464 = vmatprep.mubr.bf16.mxu0 0
    %2465 = vmatmul.mubr.bf16.gmra.mrb[0].mxu0 %v2427
    %v2466 = vpop.f32.mrb[0].mxu0
    %v2467 = vadd.f32 %v220, %v2466
    %v2468 = vpop.f32.mrb[0].mxu0
    %v2469 = vpop.f32.mrb[0].mxu0
    %v2470 = vadd.f32 %v221, %v2469
    %v2471 = vpop.f32.mrb[0].mxu0
    %2472 = vmatprep.mubr.bf16.mxu0 0
    %2473 = vmatmul.mubr.bf16.gmra.mrb[0].mxu0 %v2430
    %v2474 = vpop.f32.mrb[0].mxu0
    %v2475 = vadd.f32 %v222, %v2474
    %v2476 = vpop.f32.mrb[0].mxu0
    %v2477 = vpop.f32.mrb[0].mxu0
    %v2478 = vadd.f32 %v223, %v2477
    %v2479 = vpop.f32.mrb[0].mxu0
    %2480 = vdwg.mxu0
    %v2482 = vsel %vm701, %v2306, 0
    %v2485 = vsel %vm701, %v2307, 0
    %2487 = vmatprep.subr.bf16.mxu0 0
    %2488 = vmatpush1.bf16.msra.mxu0 %v2311
    %2489 = vmatprep.subr.bf16.mxu0 0
    %2490 = vmatpush1.bf16.msra.mxu0 0
    %2491 = vmatprep.subr.bf16.mxu0 0
    %2492 = vmatpush1.bf16.msra.mxu0 0
    %2493 = vmatprep.subr.bf16.mxu0 0
    %2494 = vmatpush1.bf16.msra.mxu0 0
    %2495 = vmatprep.subr.bf16.mxu0 0
    %2496 = vmatpush1.bf16.msra.mxu0 0
    %2497 = vmatprep.subr.bf16.mxu0 0
    %2498 = vmatpush1.bf16.msra.mxu0 0
    %2499 = vmatprep.subr.bf16.mxu0 0
    %2500 = vmatpush1.bf16.msra.mxu0 0
    %2501 = vmatprep.subr.bf16.mxu0 0
    %2502 = vmatpush1.bf16.msra.mxu0 0
    %2503 = vmatprep.subr.bf16.mxu0 0
    %2504 = vmatpush1.bf16.msra.mxu0 0
    %2505 = vmatprep.subr.bf16.mxu0 0
    %2506 = vmatpush1.bf16.msra.mxu0 0
    %2507 = vmatprep.subr.bf16.mxu0 0
    %2508 = vmatpush1.bf16.msra.mxu0 0
    %2509 = vmatprep.subr.bf16.mxu0 0
    %2510 = vmatpush1.bf16.msra.mxu0 0
    %2511 = vmatprep.subr.bf16.mxu0 0
    %2512 = vmatpush1.bf16.msra.mxu0 0
    %2513 = vmatprep.subr.bf16.mxu0 0
    %2514 = vmatpush1.bf16.msra.mxu0 0
    %2515 = vmatprep.subr.bf16.mxu0 0
    %2516 = vmatpush1.bf16.msra.mxu0 0
    %2517 = vmatprep.subr.bf16.mxu0 0
    %2518 = vmatpush1.bf16.msra.mxu0 0
    %2519 = vmatprep.mubr.bf16.mxu0 0
    %2520 = vmatmul.mubr.bf16.gmra.mrb[0].mxu0 %v2482
    %v2521 = vpop.f32.mrb[0].mxu0
    %v2522 = vadd.f32 %v220, %v2521
    %v2523 = vpop.f32.mrb[0].mxu0
    %v2524 = vpop.f32.mrb[0].mxu0
    %v2525 = vadd.f32 %v221, %v2524
    %v2526 = vpop.f32.mrb[0].mxu0
    %2527 = vmatprep.mubr.bf16.mxu0 0
    %2528 = vmatmul.mubr.bf16.gmra.mrb[0].mxu0 %v2485
    %v2529 = vpop.f32.mrb[0].mxu0
    %v2530 = vadd.f32 %v222, %v2529
    %v2531 = vpop.f32.mrb[0].mxu0
    %v2532 = vpop.f32.mrb[0].mxu0
    %v2533 = vadd.f32 %v223, %v2532
    %v2534 = vpop.f32.mrb[0].mxu0
    %2535 = vdwg.mxu0
    %v2536 = vsel %vm922, %v2357, -inf
    %2537 = vmax.xlane.f32.xlu0 %v2536
    %v2538 = vpop.xlane.xlu0 %2537
    %v2539 = vsel %vm922, %v2360, -inf
    %2540 = vmax.xlane.f32.xlu0 %v2539
    %v2541 = vpop.xlane.xlu0 %2540
    %v2542 = vsel %vm922, %v2365, -inf
    %2543 = vmax.xlane.f32.xlu0 %v2542
    %v2544 = vpop.xlane.xlu0 %2543
    %v2545 = vsel %vm922, %v2368, -inf
    %2546 = vmax.xlane.f32.xlu0 %v2545
    %v2547 = vpop.xlane.xlu0 %2546
    %v2548 = vsel %vm922, %v2412, -inf
    %2549 = vmax.xlane.f32.xlu0 %v2548
    %v2550 = vpop.xlane.xlu0 %2549
    %v2551 = vsel %vm922, %v2415, -inf
    %2552 = vmax.xlane.f32.xlu0 %v2551
    %v2553 = vpop.xlane.xlu0 %2552
    %v2554 = vsel %vm922, %v2420, -inf
    %2555 = vmax.xlane.f32.xlu0 %v2554
    %v2556 = vpop.xlane.xlu0 %2555
    %v2557 = vsel %vm922, %v2423, -inf
    %2558 = vmax.xlane.f32.xlu0 %v2557
    %v2559 = vpop.xlane.xlu0 %2558
    %v2560 = vsel %vm922, %v2467, -inf
    %2561 = vmax.xlane.f32.xlu0 %v2560
    %v2562 = vpop.xlane.xlu0 %2561
    %v2563 = vsel %vm922, %v2470, -inf
    %2564 = vmax.xlane.f32.xlu0 %v2563
    %v2565 = vpop.xlane.xlu0 %2564
    %v2566 = vsel %vm922, %v2475, -inf
    %2567 = vmax.xlane.f32.xlu0 %v2566
    %v2568 = vpop.xlane.xlu0 %2567
    %v2569 = vsel %vm922, %v2478, -inf
    %2570 = vmax.xlane.f32.xlu0 %v2569
    %v2571 = vpop.xlane.xlu0 %2570
    %v2572 = vsel %vm922, %v2522, -inf
    %2573 = vmax.xlane.f32.xlu0 %v2572
    %v2574 = vpop.xlane.xlu0 %2573
    %v2575 = vsel %vm922, %v2525, -inf
    %2576 = vmax.xlane.f32.xlu0 %v2575
    %v2577 = vpop.xlane.xlu0 %2576
    %v2578 = vsel %vm922, %v2530, -inf
    %2579 = vmax.xlane.f32.xlu0 %v2578
    %v2580 = vpop.xlane.xlu0 %2579
    %v2581 = vsel %vm922, %v2533, -inf
    %2582 = vmax.xlane.f32.xlu0 %v2581
    %v2583 = vpop.xlane.xlu0 %2582
    %v2584 = vsub.f32 %v2357, %v2538
    %v2585 = vsub.f32 %v2360, %v2541
    %v2586 = vsub.f32 %v2365, %v2544
    %v2587 = vsub.f32 %v2368, %v2547
    %v2588 = vsub.f32 %v2412, %v2550
    %v2589 = vsub.f32 %v2415, %v2553
    %v2590 = vsub.f32 %v2420, %v2556
    %v2591 = vsub.f32 %v2423, %v2559
    %v2592 = vsub.f32 %v2467, %v2562
    %v2593 = vsub.f32 %v2470, %v2565
    %v2594 = vsub.f32 %v2475, %v2568
    %v2595 = vsub.f32 %v2478, %v2571
    %v2596 = vsub.f32 %v2522, %v2574
    %v2597 = vsub.f32 %v2525, %v2577
    %v2598 = vsub.f32 %v2530, %v2580
    %v2599 = vsub.f32 %v2533, %v2583
    %v2600 = vmul.f32 %v2584, 1.442695
    %v2601 = vpow.pop %v2600
    %v2602 = vmul.f32 %v2585, 1.442695
    %v2603 = vpow.pop %v2602
    %v2604 = vmul.f32 %v2586, 1.442695
    %v2605 = vpow.pop %v2604
    %v2606 = vmul.f32 %v2587, 1.442695
    %v2607 = vpow.pop %v2606
    %v2608 = vmul.f32 %v2588, 1.442695
    %v2609 = vpow.pop %v2608
    %v2610 = vmul.f32 %v2589, 1.442695
    %v2611 = vpow.pop %v2610
    %v2612 = vmul.f32 %v2590, 1.442695
    %v2613 = vpow.pop %v2612
    %v2614 = vmul.f32 %v2591, 1.442695
    %v2615 = vpow.pop %v2614
    %v2616 = vmul.f32 %v2592, 1.442695
    %v2617 = vpow.pop %v2616
    %v2618 = vmul.f32 %v2593, 1.442695
    %v2619 = vpow.pop %v2618
    %v2620 = vmul.f32 %v2594, 1.442695
    %v2621 = vpow.pop %v2620
    %v2622 = vmul.f32 %v2595, 1.442695
    %v2623 = vpow.pop %v2622
    %v2624 = vmul.f32 %v2596, 1.442695
    %v2625 = vpow.pop %v2624
    %v2626 = vmul.f32 %v2597, 1.442695
    %v2627 = vpow.pop %v2626
    %v2628 = vmul.f32 %v2598, 1.442695
    %v2629 = vpow.pop %v2628
    %v2630 = vmul.f32 %v2599, 1.442695
    %v2631 = vpow.pop %v2630
    %v2632 = vsel %vm922, %v2601, 0.0
    %2633 = vadd.xlane.f32.xlu0 %v2632
    %v2634 = vpop.xlane.xlu0 %2633
    %v2635 = vsel %vm922, %v2603, 0.0
    %2636 = vadd.xlane.f32.xlu0 %v2635
    %v2637 = vpop.xlane.xlu0 %2636
    %v2638 = vsel %vm922, %v2605, 0.0
    %2639 = vadd.xlane.f32.xlu0 %v2638
    %v2640 = vpop.xlane.xlu0 %2639
    %v2641 = vsel %vm922, %v2607, 0.0
    %2642 = vadd.xlane.f32.xlu0 %v2641
    %v2643 = vpop.xlane.xlu0 %2642
    %v2644 = vsel %vm922, %v2609, 0.0
    %2645 = vadd.xlane.f32.xlu0 %v2644
    %v2646 = vpop.xlane.xlu0 %2645
    %v2647 = vsel %vm922, %v2611, 0.0
    %2648 = vadd.xlane.f32.xlu0 %v2647
    %v2649 = vpop.xlane.xlu0 %2648
    %v2650 = vsel %vm922, %v2613, 0.0
    %2651 = vadd.xlane.f32.xlu0 %v2650
    %v2652 = vpop.xlane.xlu0 %2651
    %v2653 = vsel %vm922, %v2615, 0.0
    %2654 = vadd.xlane.f32.xlu0 %v2653
    %v2655 = vpop.xlane.xlu0 %2654
    %v2656 = vsel %vm922, %v2617, 0.0
    %2657 = vadd.xlane.f32.xlu0 %v2656
    %v2658 = vpop.xlane.xlu0 %2657
    %v2659 = vsel %vm922, %v2619, 0.0
    %2660 = vadd.xlane.f32.xlu0 %v2659
    %v2661 = vpop.xlane.xlu0 %2660
    %v2662 = vsel %vm922, %v2621, 0.0
    %2663 = vadd.xlane.f32.xlu0 %v2662
    %v2664 = vpop.xlane.xlu0 %2663
    %v2665 = vsel %vm922, %v2623, 0.0
    %2666 = vadd.xlane.f32.xlu0 %v2665
    %v2667 = vpop.xlane.xlu0 %2666
    %v2668 = vsel %vm922, %v2625, 0.0
    %2669 = vadd.xlane.f32.xlu0 %v2668
    %v2670 = vpop.xlane.xlu0 %2669
    %v2671 = vsel %vm922, %v2627, 0.0
    %2672 = vadd.xlane.f32.xlu0 %v2671
    %v2673 = vpop.xlane.xlu0 %2672
    %v2674 = vsel %vm922, %v2629, 0.0
    %2675 = vadd.xlane.f32.xlu0 %v2674
    %v2676 = vpop.xlane.xlu0 %2675
    %v2677 = vsel %vm922, %v2631, 0.0
    %2678 = vadd.xlane.f32.xlu0 %v2677
    %v2679 = vpop.xlane.xlu0 %2678
    %v2680 = vrcp.pop %v2634
    %v2681 = vrcp.pop %v2637
    %v2682 = vrcp.pop %v2640
    %v2683 = vrcp.pop %v2643
    %v2684 = vrcp.pop %v2646
    %v2685 = vrcp.pop %v2649
    %v2686 = vrcp.pop %v2652
    %v2687 = vrcp.pop %v2655
    %v2688 = vrcp.pop %v2658
    %v2689 = vrcp.pop %v2661
    %v2690 = vrcp.pop %v2664
    %v2691 = vrcp.pop %v2667
    %v2692 = vrcp.pop %v2670
    %v2693 = vrcp.pop %v2673
    %v2694 = vrcp.pop %v2676
    %v2695 = vrcp.pop %v2679
    %v2696 = vmul.f32 %v2601, %v2680
    %v2697 = vmul.f32 %v2603, %v2681
    %v2698 = vmul.f32 %v2605, %v2682
    %v2699 = vmul.f32 %v2607, %v2683
    %v2700 = vmul.f32 %v2609, %v2684
    %v2701 = vmul.f32 %v2611, %v2685
    %v2702 = vmul.f32 %v2613, %v2686
    %v2703 = vmul.f32 %v2615, %v2687
    %v2704 = vmul.f32 %v2617, %v2688
    %v2705 = vmul.f32 %v2619, %v2689
    %v2706 = vmul.f32 %v2621, %v2690
    %v2707 = vmul.f32 %v2623, %v2691
    %v2708 = vmul.f32 %v2625, %v2692
    %v2709 = vmul.f32 %v2627, %v2693
    %v2710 = vmul.f32 %v2629, %v2694
    %v2711 = vmul.f32 %v2631, %v2695
    %v2712 = vpack.c.bf16 %v2697, %v2696
    %v2713 = vpack.c.bf16 %v2699, %v2698
    %v2714 = vpack.c.bf16 %v2701, %v2700
    %v2715 = vpack.c.bf16 %v2703, %v2702
    %v2716 = vpack.c.bf16 %v2705, %v2704
    %v2717 = vpack.c.bf16 %v2707, %v2706
    %v2718 = vpack.c.bf16 %v2709, %v2708
    %v2719 = vpack.c.bf16 %v2711, %v2710
    %v2721 = vsel %vm922, %v2312, 0
    %v2724 = vsel %vm922, %v2712, 0
    %v2727 = vsel %vm922, %v2713, 0
    %2729 = vmatprep.subr.bf16.mxu0 0
    %2730 = vmatpush1.bf16.xpose.msra.mxu0 %v2724
    %2731 = vmatprep.subr.bf16.mxu0 0
    %2732 = vmatpush1.bf16.xpose.msra.mxu0 %v2727
    %2733 = vmatprep.subr.bf16.mxu0 0
    %2734 = vmatpush1.bf16.xpose.msra.mxu0 0
    %2735 = vmatprep.subr.bf16.mxu0 0
    %2736 = vmatpush1.bf16.xpose.msra.mxu0 0
    %2737 = vmatprep.subr.bf16.mxu0 0
    %2738 = vmatpush1.bf16.xpose.msra.mxu0 0
    %2739 = vmatprep.subr.bf16.mxu0 0
    %2740 = vmatpush1.bf16.xpose.msra.mxu0 0
    %2741 = vmatprep.subr.bf16.mxu0 0
    %2742 = vmatpush1.bf16.xpose.msra.mxu0 0
    %2743 = vmatprep.subr.bf16.mxu0 0
    %2744 = vmatpush1.bf16.xpose.msra.mxu0 0
    %2745 = vmatprep.subr.bf16.mxu0 0
    %2746 = vmatpush1.bf16.xpose.msra.mxu0 0
    %2747 = vmatprep.subr.bf16.mxu0 0
    %2748 = vmatpush1.bf16.xpose.msra.mxu0 0
    %2749 = vmatprep.subr.bf16.mxu0 0
    %2750 = vmatpush1.bf16.xpose.msra.mxu0 0
    %2751 = vmatprep.subr.bf16.mxu0 0
    %2752 = vmatpush1.bf16.xpose.msra.mxu0 0
    %2753 = vmatprep.subr.bf16.mxu0 0
    %2754 = vmatpush1.bf16.xpose.msra.mxu0 0
    %2755 = vmatprep.subr.bf16.mxu0 0
    %2756 = vmatpush1.bf16.xpose.msra.mxu0 0
    %2757 = vmatprep.subr.bf16.mxu0 0
    %2758 = vmatpush1.bf16.xpose.msra.mxu0 0
    %2759 = vmatprep.subr.bf16.mxu0 0
    %2760 = vmatpush1.bf16.xpose.msra.mxu0 0
    %2761 = vmatprep.mubr.bf16.mxu0 0
    %2762 = vmatmul.mubr.bf16.gmra.mrb[0].mxu0 %v2721
    %v2763 = vpop.f32.mrb[0].mxu0
    %v2764 = vadd.f32 0.0, %v2763
    %v2765 = vpop.f32.mrb[0].mxu0
    %v2766 = vpop.f32.mrb[0].mxu0
    %v2767 = vadd.f32 0.0, %v2766
    %v2768 = vpop.f32.mrb[0].mxu0
    %2769 = vdwg.mxu0
    %v2771 = vsel %vm922, %v2313, 0
    %v2774 = vsel %vm922, %v2714, 0
    %v2777 = vsel %vm922, %v2715, 0
    %2779 = vmatprep.subr.bf16.mxu0 0
    %2780 = vmatpush1.bf16.xpose.msra.mxu0 %v2774
    %2781 = vmatprep.subr.bf16.mxu0 0
    %2782 = vmatpush1.bf16.xpose.msra.mxu0 %v2777
    %2783 = vmatprep.subr.bf16.mxu0 0
    %2784 = vmatpush1.bf16.xpose.msra.mxu0 0
    %2785 = vmatprep.subr.bf16.mxu0 0
    %2786 = vmatpush1.bf16.xpose.msra.mxu0 0
    %2787 = vmatprep.subr.bf16.mxu0 0
    %2788 = vmatpush1.bf16.xpose.msra.mxu0 0
    %2789 = vmatprep.subr.bf16.mxu0 0
    %2790 = vmatpush1.bf16.xpose.msra.mxu0 0
    %2791 = vmatprep.subr.bf16.mxu0 0
    %2792 = vmatpush1.bf16.xpose.msra.mxu0 0
    %2793 = vmatprep.subr.bf16.mxu0 0
    %2794 = vmatpush1.bf16.xpose.msra.mxu0 0
    %2795 = vmatprep.subr.bf16.mxu0 0
    %2796 = vmatpush1.bf16.xpose.msra.mxu0 0
    %2797 = vmatprep.subr.bf16.mxu0 0
    %2798 = vmatpush1.bf16.xpose.msra.mxu0 0
    %2799 = vmatprep.subr.bf16.mxu0 0
    %2800 = vmatpush1.bf16.xpose.msra.mxu0 0
    %2801 = vmatprep.subr.bf16.mxu0 0
    %2802 = vmatpush1.bf16.xpose.msra.mxu0 0
    %2803 = vmatprep.subr.bf16.mxu0 0
    %2804 = vmatpush1.bf16.xpose.msra.mxu0 0
    %2805 = vmatprep.subr.bf16.mxu0 0
    %2806 = vmatpush1.bf16.xpose.msra.mxu0 0
    %2807 = vmatprep.subr.bf16.mxu0 0
    %2808 = vmatpush1.bf16.xpose.msra.mxu0 0
    %2809 = vmatprep.subr.bf16.mxu0 0
    %2810 = vmatpush1.bf16.xpose.msra.mxu0 0
    %2811 = vmatprep.mubr.bf16.mxu0 0
    %2812 = vmatmul.mubr.bf16.gmra.mrb[0].mxu0 %v2771
    %v2813 = vpop.f32.mrb[0].mxu0
    %v2814 = vadd.f32 0.0, %v2813
    %v2815 = vpop.f32.mrb[0].mxu0
    %v2816 = vpop.f32.mrb[0].mxu0
    %v2817 = vadd.f32 0.0, %v2816
    %v2818 = vpop.f32.mrb[0].mxu0
    %2819 = vdwg.mxu0
    %v2821 = vsel %vm922, %v2314, 0
    %v2824 = vsel %vm922, %v2716, 0
    %v2827 = vsel %vm922, %v2717, 0
    %2829 = vmatprep.subr.bf16.mxu0 0
    %2830 = vmatpush1.bf16.xpose.msra.mxu0 %v2824
    %2831 = vmatprep.subr.bf16.mxu0 0
    %2832 = vmatpush1.bf16.xpose.msra.mxu0 %v2827
    %2833 = vmatprep.subr.bf16.mxu0 0
    %2834 = vmatpush1.bf16.xpose.msra.mxu0 0
    %2835 = vmatprep.subr.bf16.mxu0 0
    %2836 = vmatpush1.bf16.xpose.msra.mxu0 0
    %2837 = vmatprep.subr.bf16.mxu0 0
    %2838 = vmatpush1.bf16.xpose.msra.mxu0 0
    %2839 = vmatprep.subr.bf16.mxu0 0
    %2840 = vmatpush1.bf16.xpose.msra.mxu0 0
    %2841 = vmatprep.subr.bf16.mxu0 0
    %2842 = vmatpush1.bf16.xpose.msra.mxu0 0
    %2843 = vmatprep.subr.bf16.mxu0 0
    %2844 = vmatpush1.bf16.xpose.msra.mxu0 0
    %2845 = vmatprep.subr.bf16.mxu0 0
    %2846 = vmatpush1.bf16.xpose.msra.mxu0 0
    %2847 = vmatprep.subr.bf16.mxu0 0
    %2848 = vmatpush1.bf16.xpose.msra.mxu0 0
    %2849 = vmatprep.subr.bf16.mxu0 0
    %2850 = vmatpush1.bf16.xpose.msra.mxu0 0
    %2851 = vmatprep.subr.bf16.mxu0 0
    %2852 = vmatpush1.bf16.xpose.msra.mxu0 0
    %2853 = vmatprep.subr.bf16.mxu0 0
    %2854 = vmatpush1.bf16.xpose.msra.mxu0 0
    %2855 = vmatprep.subr.bf16.mxu0 0
    %2856 = vmatpush1.bf16.xpose.msra.mxu0 0
    %2857 = vmatprep.subr.bf16.mxu0 0
    %2858 = vmatpush1.bf16.xpose.msra.mxu0 0
    %2859 = vmatprep.subr.bf16.mxu0 0
    %2860 = vmatpush1.bf16.xpose.msra.mxu0 0
    %2861 = vmatprep.mubr.bf16.mxu0 0
    %2862 = vmatmul.mubr.bf16.gmra.mrb[0].mxu0 %v2821
    %v2863 = vpop.f32.mrb[0].mxu0
    %v2864 = vadd.f32 0.0, %v2863
    %v2865 = vpop.f32.mrb[0].mxu0
    %v2866 = vpop.f32.mrb[0].mxu0
    %v2867 = vadd.f32 0.0, %v2866
    %v2868 = vpop.f32.mrb[0].mxu0
    %2869 = vdwg.mxu0
    %v2871 = vsel %vm922, %v2315, 0
    %v2874 = vsel %vm922, %v2718, 0
    %v2877 = vsel %vm922, %v2719, 0
    %2879 = vmatprep.subr.bf16.mxu0 0
    %2880 = vmatpush1.bf16.xpose.msra.mxu0 %v2874
    %2881 = vmatprep.subr.bf16.mxu0 0
    %2882 = vmatpush1.bf16.xpose.msra.mxu0 %v2877
    %2883 = vmatprep.subr.bf16.mxu0 0
    %2884 = vmatpush1.bf16.xpose.msra.mxu0 0
    %2885 = vmatprep.subr.bf16.mxu0 0
    %2886 = vmatpush1.bf16.xpose.msra.mxu0 0
    %2887 = vmatprep.subr.bf16.mxu0 0
    %2888 = vmatpush1.bf16.xpose.msra.mxu0 0
    %2889 = vmatprep.subr.bf16.mxu0 0
    %2890 = vmatpush1.bf16.xpose.msra.mxu0 0
    %2891 = vmatprep.subr.bf16.mxu0 0
    %2892 = vmatpush1.bf16.xpose.msra.mxu0 0
    %2893 = vmatprep.subr.bf16.mxu0 0
    %2894 = vmatpush1.bf16.xpose.msra.mxu0 0
    %2895 = vmatprep.subr.bf16.mxu0 0
    %2896 = vmatpush1.bf16.xpose.msra.mxu0 0
    %2897 = vmatprep.subr.bf16.mxu0 0
    %2898 = vmatpush1.bf16.xpose.msra.mxu0 0
    %2899 = vmatprep.subr.bf16.mxu0 0
    %2900 = vmatpush1.bf16.xpose.msra.mxu0 0
    %2901 = vmatprep.subr.bf16.mxu0 0
    %2902 = vmatpush1.bf16.xpose.msra.mxu0 0
    %2903 = vmatprep.subr.bf16.mxu0 0
    %2904 = vmatpush1.bf16.xpose.msra.mxu0 0
    %2905 = vmatprep.subr.bf16.mxu0 0
    %2906 = vmatpush1.bf16.xpose.msra.mxu0 0
    %2907 = vmatprep.subr.bf16.mxu0 0
    %2908 = vmatpush1.bf16.xpose.msra.mxu0 0
    %2909 = vmatprep.subr.bf16.mxu0 0
    %2910 = vmatpush1.bf16.xpose.msra.mxu0 0
    %2911 = vmatprep.mubr.bf16.mxu0 0
    %2912 = vmatmul.mubr.bf16.gmra.mrb[0].mxu0 %v2871
    %v2913 = vpop.f32.mrb[0].mxu0
    %v2914 = vadd.f32 0.0, %v2913
    %v2915 = vpop.f32.mrb[0].mxu0
    %v2916 = vpop.f32.mrb[0].mxu0
    %v2917 = vadd.f32 0.0, %v2916
    %v2918 = vpop.f32.mrb[0].mxu0
    %2919 = vdwg.mxu0
    %2920 = vxpose.xlu0.b32.start [1/16] %v2764, 128
    %2921 = vxpose.xlu0.b32.cont [2/16] %v2767, 128
    %2922 = vxpose.xlu0.b32.cont [3/16] %v2814, 128
    %2923 = vxpose.xlu0.b32.cont [4/16] %v2817, 128
    %2924 = vxpose.xlu0.b32.cont [5/16] %v2864, 128
    %2925 = vxpose.xlu0.b32.cont [6/16] %v2867, 128
    %2926 = vxpose.xlu0.b32.cont [7/16] %v2914, 128
    %2927 = vxpose.xlu0.b32.cont [8/16] %v2917, 128
    %2928 = vxpose.xlu0.b32.cont [9/16] 0.0, 128
    %2929 = vxpose.xlu0.b32.cont [10/16] 0.0, 128
    %2930 = vxpose.xlu0.b32.cont [11/16] 0.0, 128
    %2931 = vxpose.xlu0.b32.cont [12/16] 0.0, 128
    %2932 = vxpose.xlu0.b32.cont [13/16] 0.0, 128
    %2933 = vxpose.xlu0.b32.cont [14/16] 0.0, 128
    %2934 = vxpose.xlu0.b32.cont [15/16] 0.0, 128
    %2935 = vxpose.xlu0.b32.end [16/16] 0.0, 128
    %v2936 = vpop.trf.xlu0
    %v2937 = vpop.trf.xlu0
    %v2938 = vpop.trf.xlu0
    %v2939 = vpop.trf.xlu0
    %v2940 = vpop.trf.xlu0
    %v2941 = vpop.trf.xlu0
    %v2942 = vpop.trf.xlu0
    %v2943 = vpop.trf.xlu0
    %v2944 = vpop.trf.xlu0
    %v2945 = vpop.trf.xlu0
    %v2946 = vpop.trf.xlu0
    %v2947 = vpop.trf.xlu0
    %v2948 = vpop.trf.xlu0
    %v2949 = vpop.trf.xlu0
    %v2950 = vpop.trf.xlu0
    %v2951 = vpop.trf.xlu0
    %v2952 = vpack.c.bf16 %v2937, %v2936
    %v2953 = vpack.c.bf16 %v2939, %v2938
    %s2954 = scalar_lea.vmem %s6, 32
    %v2955 = vld [vmem:[%s2954] sm:$0xf]
    %v2956 = vld [vmem:[%s2954 + $0x4] sm:$0xf]
    %v2957 = vld [vmem:[%s2954 + $0x8] sm:$0xf]
    %v2958 = vld [vmem:[%s2954 + $0xc] sm:$0xf]
    %v2959 = vld [vmem:[%s2954 + $0x10] sm:$0xf]
    %v2960 = vld [vmem:[%s2954 + $0x14] sm:$0xf]
    %v2961 = vld [vmem:[%s2954 + $0x18] sm:$0xf]
    %v2962 = vld [vmem:[%s2954 + $0x1c] sm:$0xf]
    %v2971 = vunpack.c.l.b16 %v2955
    %v2972 = vunpack.c.l.b16 %v2956
    %v2973 = vunpack.c.l.b16 %v2957
    %v2974 = vunpack.c.l.b16 %v2958
    %v2975 = vunpack.c.l.b16 %v2959
    %v2976 = vunpack.c.l.b16 %v2960
    %v2977 = vunpack.c.l.b16 %v2961
    %v2978 = vunpack.c.l.b16 %v2962
    %v2979 = vpack.c.b16 %v2972, %v2971
    %v2980 = vpack.c.b16 %v2974, %v2973
    %v2981 = vpack.c.b16 %v2976, %v2975
    %v2982 = vpack.c.b16 %v2978, %v2977
    %v2988 = vsel %vm226, %v2952, 0
    %v2991 = vsel %vm226, %v2953, 0
    %2993 = vmatprep.subr.bf16.mxu0 0
    %2994 = vmatpush1.bf16.msra.mxu0 %v2979
    %2995 = vmatprep.subr.bf16.mxu0 0
    %2996 = vmatpush1.bf16.msra.mxu0 %v2980
    %2997 = vmatprep.subr.bf16.mxu0 0
    %2998 = vmatpush1.bf16.msra.mxu0 %v2981
    %2999 = vmatprep.subr.bf16.mxu0 0
    %3000 = vmatpush1.bf16.msra.mxu0 %v2982
    %3001 = vmatprep.subr.bf16.mxu0 0
    %3002 = vmatpush1.bf16.msra.mxu0 0
    %3003 = vmatprep.subr.bf16.mxu0 0
    %3004 = vmatpush1.bf16.msra.mxu0 0
    %3005 = vmatprep.subr.bf16.mxu0 0
    %3006 = vmatpush1.bf16.msra.mxu0 0
    %3007 = vmatprep.subr.bf16.mxu0 0
    %3008 = vmatpush1.bf16.msra.mxu0 0
    %3009 = vmatprep.subr.bf16.mxu0 0
    %3010 = vmatpush1.bf16.msra.mxu0 0
    %3011 = vmatprep.subr.bf16.mxu0 0
    %3012 = vmatpush1.bf16.msra.mxu0 0
    %3013 = vmatprep.subr.bf16.mxu0 0
    %3014 = vmatpush1.bf16.msra.mxu0 0
    %3015 = vmatprep.subr.bf16.mxu0 0
    %3016 = vmatpush1.bf16.msra.mxu0 0
    %3017 = vmatprep.subr.bf16.mxu0 0
    %3018 = vmatpush1.bf16.msra.mxu0 0
    %3019 = vmatprep.subr.bf16.mxu0 0
    %3020 = vmatpush1.bf16.msra.mxu0 0
    %3021 = vmatprep.subr.bf16.mxu0 0
    %3022 = vmatpush1.bf16.msra.mxu0 0
    %3023 = vmatprep.subr.bf16.mxu0 0
    %3024 = vmatpush1.bf16.msra.mxu0 0
    %3025 = vmatprep.mubr.bf16.mxu0 0
    %3026 = vmatmul.mubr.bf16.gmra.mrb[0].mxu0 %v2988
    %v3027 = vpop.f32.mrb[0].mxu0
    %v3028 = vadd.f32 0.0, %v3027
    %v3029 = vpop.f32.mrb[0].mxu0
    %v3030 = vpop.f32.mrb[0].mxu0
    %v3031 = vadd.f32 0.0, %v3030
    %v3032 = vpop.f32.mrb[0].mxu0
    %3033 = vmatprep.mubr.bf16.mxu0 0
    %3034 = vmatmul.mubr.bf16.gmra.mrb[0].mxu0 %v2991
    %v3035 = vpop.f32.mrb[0].mxu0
    %v3036 = vadd.f32 0.0, %v3035
    %v3037 = vpop.f32.mrb[0].mxu0
    %v3038 = vpop.f32.mrb[0].mxu0
    %v3039 = vadd.f32 0.0, %v3038
    %v3040 = vpop.f32.mrb[0].mxu0
    %3041 = vdwg.mxu0
    %v3042 = vadd.f32 %v1834, %v3028
    %v3043 = vadd.f32 %v1835, %v3031
    %v3044 = vadd.f32 %v1836, %v3036
    %v3045 = vadd.f32 %v1837, %v3039
    %s3046 = scalar_lea.vmem %s7, 1
    %v3047 = vld [vmem:[%s3046] sm:$0x1]
    %v3049 = vlaneseq
    %v3050 = vshrl.u32 %v3049, 7
    %v3051 = vsub.s32 0, %v3050
    %v3052 = vrot.slane %v3047, %v3051
    %v3054 = vadd.f32 %v3042, %v3052
    %v3055 = vadd.f32 %v3043, %v3052
    %v3056 = vadd.f32 %v3044, %v3052
    %v3057 = vadd.f32 %v3045, %v3052
    %s3058 = scalar_lea.vmem %s8, 1
    %v3059 = vld [vmem:[%s3058] sm:$0x1]
    %s3060 = scalar_lea.vmem %s9, 1
    %v3061 = vld [vmem:[%s3060] sm:$0x1]
    %v3062 = vsel %vm226, %v3054, 0.0
    %3063 = vadd.xlane.f32.xlu0 %v3062
    %v3064 = vpop.xlane.xlu0 %3063
    %v3065 = vsel %vm226, %v3055, 0.0
    %3066 = vadd.xlane.f32.xlu0 %v3065
    %v3067 = vpop.xlane.xlu0 %3066
    %v3068 = vsel %vm226, %v3056, 0.0
    %3069 = vadd.xlane.f32.xlu0 %v3068
    %v3070 = vpop.xlane.xlu0 %3069
    %v3071 = vsel %vm226, %v3057, 0.0
    %3072 = vadd.xlane.f32.xlu0 %v3071
    %v3073 = vpop.xlane.xlu0 %3072
    %v3074 = vmul.f32 %v3064, %v239
    %v3075 = vmul.f32 %v3067, %v239
    %v3076 = vmul.f32 %v3070, %v239
    %v3077 = vmul.f32 %v3073, %v239
    %v3078 = vsub.f32 %v3054, %v3074
    %v3079 = vsub.f32 %v3055, %v3075
    %v3080 = vsub.f32 %v3056, %v3076
    %v3081 = vsub.f32 %v3057, %v3077
    %v3082 = vmul.f32 %v3078, %v3078
    %v3083 = vmul.f32 %v3079, %v3079
    %v3084 = vmul.f32 %v3080, %v3080
    %v3085 = vmul.f32 %v3081, %v3081
    %v3086 = vsel %vm226, %v3082, 0.0
    %3087 = vadd.xlane.f32.xlu0 %v3086
    %v3088 = vpop.xlane.xlu0 %3087
    %v3089 = vsel %vm226, %v3083, 0.0
    %3090 = vadd.xlane.f32.xlu0 %v3089
    %v3091 = vpop.xlane.xlu0 %3090
    %v3092 = vsel %vm226, %v3084, 0.0
    %3093 = vadd.xlane.f32.xlu0 %v3092
    %v3094 = vpop.xlane.xlu0 %3093
    %v3095 = vsel %vm226, %v3085, 0.0
    %3096 = vadd.xlane.f32.xlu0 %v3095
    %v3097 = vpop.xlane.xlu0 %3096
    %v3098 = vmul.f32 %v3088, %v239
    %v3099 = vmul.f32 %v3091, %v239
    %v3100 = vmul.f32 %v3094, %v239
    %v3101 = vmul.f32 %v3097, %v239
    %v3102 = vadd.f32 %v3098, 1e-05
    %v3103 = vadd.f32 %v3099, 1e-05
    %v3104 = vadd.f32 %v3100, 1e-05
    %v3105 = vadd.f32 %v3101, 1e-05
    %v3106 = vrsqrt.pop %v3102
    %v3107 = vrsqrt.pop %v3103
    %v3108 = vrsqrt.pop %v3104
    %v3109 = vrsqrt.pop %v3105
    %v3110 = vmul.f32 %v3078, %v3106
    %v3111 = vmul.f32 %v3079, %v3107
    %v3112 = vmul.f32 %v3080, %v3108
    %v3113 = vmul.f32 %v3081, %v3109
    %v3115 = vlaneseq
    %v3116 = vshrl.u32 %v3115, 7
    %v3117 = vsub.s32 0, %v3116
    %v3118 = vrot.slane %v3059, %v3117
    %v3120 = vmul.f32 %v3110, %v3118
    %v3121 = vmul.f32 %v3111, %v3118
    %v3122 = vmul.f32 %v3112, %v3118
    %v3123 = vmul.f32 %v3113, %v3118
    %v3125 = vlaneseq
    %v3126 = vshrl.u32 %v3125, 7
    %v3127 = vsub.s32 0, %v3126
    %v3128 = vrot.slane %v3061, %v3127
    %v3130 = vadd.f32 %v3120, %v3128
    %v3131 = vadd.f32 %v3121, %v3128
    %v3132 = vadd.f32 %v3122, %v3128
    %v3133 = vadd.f32 %v3123, %v3128
    %v3134 = vpack.c.bf16 %v3131, %v3130
    %v3135 = vpack.c.bf16 %v3133, %v3132
    %s3136 = scalar_lea.vmem %s10, 64
    %v3137 = vld [vmem:[%s3136] sm:$0xff]
    %v3138 = vld [vmem:[%s3136 + $0x8] sm:$0xff]
    %v3139 = vld [vmem:[%s3136 + $0x10] sm:$0xff]
    %v3140 = vld [vmem:[%s3136 + $0x18] sm:$0xff]
    %v3141 = vld [vmem:[%s3136 + $0x20] sm:$0xff]
    %v3142 = vld [vmem:[%s3136 + $0x28] sm:$0xff]
    %v3143 = vld [vmem:[%s3136 + $0x30] sm:$0xff]
    %v3144 = vld [vmem:[%s3136 + $0x38] sm:$0xff]
    %s3145 = scalar_lea.vmem %s11, 2
    %v3146 = vld [vmem:[%s3145] sm:$0x3]
    %v3148 = vlaneseq
    %v3149 = vshrl.u32 %v3148, 7
    %v3150 = vsub.s32 0, %v3149
    %v3151 = vrot.slane %v3146, %v3150
    %v3152 = vlaneseq
    %v3153 = vshrl.u32 %v3152, 7
    %v3154 = vsub.s32 1, %v3153
    %v3155 = vrot.slane %v3146, %v3154
    %v3166 = vunpack.c.l.b16 %v3137
    %v3167 = vunpack.c.h.b16 %v3137
    %v3168 = vunpack.c.l.b16 %v3138
    %v3169 = vunpack.c.h.b16 %v3138
    %v3170 = vunpack.c.l.b16 %v3139
    %v3171 = vunpack.c.h.b16 %v3139
    %v3172 = vunpack.c.l.b16 %v3140
    %v3173 = vunpack.c.h.b16 %v3140
    %v3174 = vunpack.c.l.b16 %v3141
    %v3175 = vunpack.c.h.b16 %v3141
    %v3176 = vunpack.c.l.b16 %v3142
    %v3177 = vunpack.c.h.b16 %v3142
    %v3178 = vunpack.c.l.b16 %v3143
    %v3179 = vunpack.c.h.b16 %v3143
    %v3180 = vunpack.c.l.b16 %v3144
    %v3181 = vunpack.c.h.b16 %v3144
    %v3182 = vpack.c.b16 %v3168, %v3166
    %v3183 = vpack.c.b16 %v3169, %v3167
    %v3184 = vpack.c.b16 %v3172, %v3170
    %v3185 = vpack.c.b16 %v3173, %v3171
    %v3186 = vpack.c.b16 %v3176, %v3174
    %v3187 = vpack.c.b16 %v3177, %v3175
    %v3188 = vpack.c.b16 %v3180, %v3178
    %v3189 = vpack.c.b16 %v3181, %v3179
    %v3199 = vsel %vm226, %v3134, 0
    %v3202 = vsel %vm226, %v3135, 0
    %3204 = vmatprep.subr.bf16.mxu0 %v3183
    %3205 = vmatpush1.bf16.msra.mxu0 %v3182
    %3206 = vmatprep.subr.bf16.mxu0 %v3185
    %3207 = vmatpush1.bf16.msra.mxu0 %v3184
    %3208 = vmatprep.subr.bf16.mxu0 %v3187
    %3209 = vmatpush1.bf16.msra.mxu0 %v3186
    %3210 = vmatprep.subr.bf16.mxu0 %v3189
    %3211 = vmatpush1.bf16.msra.mxu0 %v3188
    %3212 = vmatprep.subr.bf16.mxu0 0
    %3213 = vmatpush1.bf16.msra.mxu0 0
    %3214 = vmatprep.subr.bf16.mxu0 0
    %3215 = vmatpush1.bf16.msra.mxu0 0
    %3216 = vmatprep.subr.bf16.mxu0 0
    %3217 = vmatpush1.bf16.msra.mxu0 0
    %3218 = vmatprep.subr.bf16.mxu0 0
    %3219 = vmatpush1.bf16.msra.mxu0 0
    %3220 = vmatprep.subr.bf16.mxu0 0
    %3221 = vmatpush1.bf16.msra.mxu0 0
    %3222 = vmatprep.subr.bf16.mxu0 0
    %3223 = vmatpush1.bf16.msra.mxu0 0
    %3224 = vmatprep.subr.bf16.mxu0 0
    %3225 = vmatpush1.bf16.msra.mxu0 0
    %3226 = vmatprep.subr.bf16.mxu0 0
    %3227 = vmatpush1.bf16.msra.mxu0 0
    %3228 = vmatprep.subr.bf16.mxu0 0
    %3229 = vmatpush1.bf16.msra.mxu0 0
    %3230 = vmatprep.subr.bf16.mxu0 0
    %3231 = vmatpush1.bf16.msra.mxu0 0
    %3232 = vmatprep.subr.bf16.mxu0 0
    %3233 = vmatpush1.bf16.msra.mxu0 0
    %3234 = vmatprep.subr.bf16.mxu0 0
    %3235 = vmatpush1.bf16.msra.mxu0 0
    %3236 = vmatprep.mubr.bf16.mxu0 0
    %3237 = vmatmul.mubr.bf16.gmra.mrb[0].mxu0 %v3199
    %v3238 = vpop.f32.mrb[0].mxu0
    %v3239 = vadd.f32 %v3151, %v3238
    %v3240 = vpop.f32.mrb[0].mxu0
    %v3241 = vadd.f32 %v3155, %v3240
    %v3242 = vpop.f32.mrb[0].mxu0
    %v3243 = vadd.f32 %v3151, %v3242
    %v3244 = vpop.f32.mrb[0].mxu0
    %v3245 = vadd.f32 %v3155, %v3244
    %3246 = vmatprep.mubr.bf16.mxu0 0
    %3247 = vmatmul.mubr.bf16.gmra.mrb[0].mxu0 %v3202
    %v3248 = vpop.f32.mrb[0].mxu0
    %v3249 = vadd.f32 %v3151, %v3248
    %v3250 = vpop.f32.mrb[0].mxu0
    %v3251 = vadd.f32 %v3155, %v3250
    %v3252 = vpop.f32.mrb[0].mxu0
    %v3253 = vadd.f32 %v3151, %v3252
    %v3254 = vpop.f32.mrb[0].mxu0
    %v3255 = vadd.f32 %v3155, %v3254
    %3256 = vdwg.mxu0
    %v3257 = vmax.f32 %v3239, 0.0
    %v3258 = vmax.f32 %v3241, 0.0
    %v3259 = vmax.f32 %v3243, 0.0
    %v3260 = vmax.f32 %v3245, 0.0
    %v3261 = vmax.f32 %v3249, 0.0
    %v3262 = vmax.f32 %v3251, 0.0
    %v3263 = vmax.f32 %v3253, 0.0
    %v3264 = vmax.f32 %v3255, 0.0
    %v3265 = vpack.c.bf16 %v3259, %v3257
    %v3266 = vpack.c.bf16 %v3260, %v3258
    %v3267 = vpack.c.bf16 %v3263, %v3261
    %v3268 = vpack.c.bf16 %v3264, %v3262
    %s3269 = scalar_lea.vmem %s12, 128
    %v3270 = vld [vmem:[%s3269] sm:$0xf]
    %v3271 = vld [vmem:[%s3269 + $0x4] sm:$0xf]
    %v3272 = vld [vmem:[%s3269 + $0x8] sm:$0xf]
    %v3273 = vld [vmem:[%s3269 + $0xc] sm:$0xf]
    %v3274 = vld [vmem:[%s3269 + $0x10] sm:$0xf]
    %v3275 = vld [vmem:[%s3269 + $0x14] sm:$0xf]
    %v3276 = vld [vmem:[%s3269 + $0x18] sm:$0xf]
    %v3277 = vld [vmem:[%s3269 + $0x1c] sm:$0xf]
    %v3278 = vld [vmem:[%s3269 + $0x20] sm:$0xf]
    %v3279 = vld [vmem:[%s3269 + $0x24] sm:$0xf]
    %v3280 = vld [vmem:[%s3269 + $0x28] sm:$0xf]
    %v3281 = vld [vmem:[%s3269 + $0x2c] sm:$0xf]
    %v3282 = vld [vmem:[%s3269 + $0x30] sm:$0xf]
    %v3283 = vld [vmem:[%s3269 + $0x34] sm:$0xf]
    %v3284 = vld [vmem:[%s3269 + $0x38] sm:$0xf]
    %v3285 = vld [vmem:[%s3269 + $0x3c] sm:$0xf]
    %v3286 = vld [vmem:[%s3269 + $0x40] sm:$0xf]
    %v3287 = vld [vmem:[%s3269 + $0x44] sm:$0xf]
    %v3288 = vld [vmem:[%s3269 + $0x48] sm:$0xf]
    %v3289 = vld [vmem:[%s3269 + $0x4c] sm:$0xf]
    %v3290 = vld [vmem:[%s3269 + $0x50] sm:$0xf]
    %v3291 = vld [vmem:[%s3269 + $0x54] sm:$0xf]
    %v3292 = vld [vmem:[%s3269 + $0x58] sm:$0xf]
    %v3293 = vld [vmem:[%s3269 + $0x5c] sm:$0xf]
    %v3294 = vld [vmem:[%s3269 + $0x60] sm:$0xf]
    %v3295 = vld [vmem:[%s3269 + $0x64] sm:$0xf]
    %v3296 = vld [vmem:[%s3269 + $0x68] sm:$0xf]
    %v3297 = vld [vmem:[%s3269 + $0x6c] sm:$0xf]
    %v3298 = vld [vmem:[%s3269 + $0x70] sm:$0xf]
    %v3299 = vld [vmem:[%s3269 + $0x74] sm:$0xf]
    %v3300 = vld [vmem:[%s3269 + $0x78] sm:$0xf]
    %v3301 = vld [vmem:[%s3269 + $0x7c] sm:$0xf]
    %s3302 = scalar_lea.vmem %s13, 1
    %v3303 = vld [vmem:[%s3302] sm:$0x1]
    %v3305 = vlaneseq
    %v3306 = vshrl.u32 %v3305, 7
    %v3307 = vsub.s32 0, %v3306
    %v3308 = vrot.slane %v3303, %v3307
    %v3342 = vunpack.c.l.b16 %v3270
    %v3343 = vunpack.c.l.b16 %v3271
    %v3344 = vunpack.c.l.b16 %v3272
    %v3345 = vunpack.c.l.b16 %v3273
    %v3346 = vunpack.c.l.b16 %v3274
    %v3347 = vunpack.c.l.b16 %v3275
    %v3348 = vunpack.c.l.b16 %v3276
    %v3349 = vunpack.c.l.b16 %v3277
    %v3350 = vunpack.c.l.b16 %v3278
    %v3351 = vunpack.c.l.b16 %v3279
    %v3352 = vunpack.c.l.b16 %v3280
    %v3353 = vunpack.c.l.b16 %v3281
    %v3354 = vunpack.c.l.b16 %v3282
    %v3355 = vunpack.c.l.b16 %v3283
    %v3356 = vunpack.c.l.b16 %v3284
    %v3357 = vunpack.c.l.b16 %v3285
    %v3358 = vunpack.c.l.b16 %v3286
    %v3359 = vunpack.c.l.b16 %v3287
    %v3360 = vunpack.c.l.b16 %v3288
    %v3361 = vunpack.c.l.b16 %v3289
    %v3362 = vunpack.c.l.b16 %v3290
    %v3363 = vunpack.c.l.b16 %v3291
    %v3364 = vunpack.c.l.b16 %v3292
    %v3365 = vunpack.c.l.b16 %v3293
    %v3366 = vunpack.c.l.b16 %v3294
    %v3367 = vunpack.c.l.b16 %v3295
    %v3368 = vunpack.c.l.b16 %v3296
    %v3369 = vunpack.c.l.b16 %v3297
    %v3370 = vunpack.c.l.b16 %v3298
    %v3371 = vunpack.c.l.b16 %v3299
    %v3372 = vunpack.c.l.b16 %v3300
    %v3373 = vunpack.c.l.b16 %v3301
    %v3374 = vpack.c.b16 %v3343, %v3342
    %v3375 = vpack.c.b16 %v3345, %v3344
    %v3376 = vpack.c.b16 %v3347, %v3346
    %v3377 = vpack.c.b16 %v3349, %v3348
    %v3378 = vpack.c.b16 %v3351, %v3350
    %v3379 = vpack.c.b16 %v3353, %v3352
    %v3380 = vpack.c.b16 %v3355, %v3354
    %v3381 = vpack.c.b16 %v3357, %v3356
    %v3382 = vpack.c.b16 %v3359, %v3358
    %v3383 = vpack.c.b16 %v3361, %v3360
    %v3384 = vpack.c.b16 %v3363, %v3362
    %v3385 = vpack.c.b16 %v3365, %v3364
    %v3386 = vpack.c.b16 %v3367, %v3366
    %v3387 = vpack.c.b16 %v3369, %v3368
    %v3388 = vpack.c.b16 %v3371, %v3370
    %v3389 = vpack.c.b16 %v3373, %v3372
    %3406 = vmatprep.subr.bf16.mxu0 0
    %3407 = vmatpush1.bf16.msra.mxu0 %v3374
    %3408 = vmatprep.subr.bf16.mxu0 0
    %3409 = vmatpush1.bf16.msra.mxu0 %v3375
    %3410 = vmatprep.subr.bf16.mxu0 0
    %3411 = vmatpush1.bf16.msra.mxu0 %v3376
    %3412 = vmatprep.subr.bf16.mxu0 0
    %3413 = vmatpush1.bf16.msra.mxu0 %v3377
    %3414 = vmatprep.subr.bf16.mxu0 0
    %3415 = vmatpush1.bf16.msra.mxu0 %v3378
    %3416 = vmatprep.subr.bf16.mxu0 0
    %3417 = vmatpush1.bf16.msra.mxu0 %v3379
    %3418 = vmatprep.subr.bf16.mxu0 0
    %3419 = vmatpush1.bf16.msra.mxu0 %v3380
    %3420 = vmatprep.subr.bf16.mxu0 0
    %3421 = vmatpush1.bf16.msra.mxu0 %v3381
    %3422 = vmatprep.subr.bf16.mxu0 0
    %3423 = vmatpush1.bf16.msra.mxu0 %v3382
    %3424 = vmatprep.subr.bf16.mxu0 0
    %3425 = vmatpush1.bf16.msra.mxu0 %v3383
    %3426 = vmatprep.subr.bf16.mxu0 0
    %3427 = vmatpush1.bf16.msra.mxu0 %v3384
    %3428 = vmatprep.subr.bf16.mxu0 0
    %3429 = vmatpush1.bf16.msra.mxu0 %v3385
    %3430 = vmatprep.subr.bf16.mxu0 0
    %3431 = vmatpush1.bf16.msra.mxu0 %v3386
    %3432 = vmatprep.subr.bf16.mxu0 0
    %3433 = vmatpush1.bf16.msra.mxu0 %v3387
    %3434 = vmatprep.subr.bf16.mxu0 0
    %3435 = vmatpush1.bf16.msra.mxu0 %v3388
    %3436 = vmatprep.subr.bf16.mxu0 0
    %3437 = vmatpush1.bf16.msra.mxu0 %v3389
    %3438 = vmatprep.mubr.bf16.mxu0 %v3266
    %3439 = vmatmul.mubr.bf16.gmra.mrb[0].mxu0 %v3265
    %v3440 = vpop.f32.mrb[0].mxu0
    %v3441 = vadd.f32 %v3308, %v3440
    %v3442 = vpop.f32.mrb[0].mxu0
    %v3443 = vpop.f32.mrb[0].mxu0
    %v3444 = vadd.f32 %v3308, %v3443
    %v3445 = vpop.f32.mrb[0].mxu0
    %3446 = vmatprep.mubr.bf16.mxu0 %v3268
    %3447 = vmatmul.mubr.bf16.gmra.mrb[0].mxu0 %v3267
    %v3448 = vpop.f32.mrb[0].mxu0
    %v3449 = vadd.f32 %v3308, %v3448
    %v3450 = vpop.f32.mrb[0].mxu0
    %v3451 = vpop.f32.mrb[0].mxu0
    %v3452 = vadd.f32 %v3308, %v3451
    %v3453 = vpop.f32.mrb[0].mxu0
    %3454 = vdwg.mxu0
    %v3455 = vadd.f32 %v3054, %v3441
    %v3456 = vadd.f32 %v3055, %v3444
    %v3457 = vadd.f32 %v3056, %v3449
    %v3458 = vadd.f32 %v3057, %v3452
    %v3459 = vld [vmem:[%s14] sm:$0x1]
    %v3460 = vld [vmem:[%s15] sm:$0x1]
    %v3461 = vsel %vm226, %v3455, 0.0
    %3462 = vadd.xlane.f32.xlu0 %v3461
    %v3463 = vpop.xlane.xlu0 %3462
    %v3464 = vsel %vm226, %v3456, 0.0
    %3465 = vadd.xlane.f32.xlu0 %v3464
    %v3466 = vpop.xlane.xlu0 %3465
    %v3467 = vsel %vm226, %v3457, 0.0
    %3468 = vadd.xlane.f32.xlu0 %v3467
    %v3469 = vpop.xlane.xlu0 %3468
    %v3470 = vsel %vm226, %v3458, 0.0
    %3471 = vadd.xlane.f32.xlu0 %v3470
    %v3472 = vpop.xlane.xlu0 %3471
    %v3473 = vmul.f32 %v3463, %v239
    %v3474 = vmul.f32 %v3466, %v239
    %v3475 = vmul.f32 %v3469, %v239
    %v3476 = vmul.f32 %v3472, %v239
    %v3477 = vsub.f32 %v3455, %v3473
    %v3478 = vsub.f32 %v3456, %v3474
    %v3479 = vsub.f32 %v3457, %v3475
    %v3480 = vsub.f32 %v3458, %v3476
    %v3481 = vmul.f32 %v3477, %v3477
    %v3482 = vmul.f32 %v3478, %v3478
    %v3483 = vmul.f32 %v3479, %v3479
    %v3484 = vmul.f32 %v3480, %v3480
    %v3485 = vsel %vm226, %v3481, 0.0
    %3486 = vadd.xlane.f32.xlu0 %v3485
    %v3487 = vpop.xlane.xlu0 %3486
    %v3488 = vsel %vm226, %v3482, 0.0
    %3489 = vadd.xlane.f32.xlu0 %v3488
    %v3490 = vpop.xlane.xlu0 %3489
    %v3491 = vsel %vm226, %v3483, 0.0
    %3492 = vadd.xlane.f32.xlu0 %v3491
    %v3493 = vpop.xlane.xlu0 %3492
    %v3494 = vsel %vm226, %v3484, 0.0
    %3495 = vadd.xlane.f32.xlu0 %v3494
    %v3496 = vpop.xlane.xlu0 %3495
    %v3497 = vmul.f32 %v3487, %v239
    %v3498 = vmul.f32 %v3490, %v239
    %v3499 = vmul.f32 %v3493, %v239
    %v3500 = vmul.f32 %v3496, %v239
    %v3501 = vadd.f32 %v3497, 1e-05
    %v3502 = vadd.f32 %v3498, 1e-05
    %v3503 = vadd.f32 %v3499, 1e-05
    %v3504 = vadd.f32 %v3500, 1e-05
    %v3505 = vrsqrt.pop %v3501
    %v3506 = vrsqrt.pop %v3502
    %v3507 = vrsqrt.pop %v3503
    %v3508 = vrsqrt.pop %v3504
    %v3509 = vmul.f32 %v3477, %v3505
    %v3510 = vmul.f32 %v3478, %v3506
    %v3511 = vmul.f32 %v3479, %v3507
    %v3512 = vmul.f32 %v3480, %v3508
    %v3514 = vlaneseq
    %v3515 = vshrl.u32 %v3514, 7
    %v3516 = vsub.s32 0, %v3515
    %v3517 = vrot.slane %v3459, %v3516
    %v3519 = vmul.f32 %v3509, %v3517
    %v3520 = vmul.f32 %v3510, %v3517
    %v3521 = vmul.f32 %v3511, %v3517
    %v3522 = vmul.f32 %v3512, %v3517
    %v3524 = vlaneseq
    %v3525 = vshrl.u32 %v3524, 7
    %v3526 = vsub.s32 0, %v3525
    %v3527 = vrot.slane %v3460, %v3526
    %v3529 = vadd.f32 %v3519, %v3527
    %v3530 = vadd.f32 %v3520, %v3527
    %v3531 = vadd.f32 %v3521, %v3527
    %v3532 = vadd.f32 %v3522, %v3527
    %v3533 = vpack.c.bf16 %v3530, %v3529
    %v3534 = vpack.c.bf16 %v3532, %v3531
    %v3535 = vld [vmem:[%s16] sm:$0xf]
    %v3536 = vld [vmem:[%s16 + $0x4] sm:$0xf]
    %v3537 = vld [vmem:[%s16 + $0x8] sm:$0xf]
    %v3538 = vld [vmem:[%s16 + $0xc] sm:$0xf]
    %v3539 = vld [vmem:[%s16 + $0x10] sm:$0xf]
    %v3540 = vld [vmem:[%s16 + $0x14] sm:$0xf]
    %v3541 = vld [vmem:[%s16 + $0x18] sm:$0xf]
    %v3542 = vld [vmem:[%s16 + $0x1c] sm:$0xf]
    %v3543 = vld [vmem:[%s17] sm:$0x1]
    %v3545 = vlaneseq
    %v3546 = vshrl.u32 %v3545, 7
    %v3547 = vsub.s32 0, %v3546
    %v3548 = vrot.slane %v3543, %v3547
    %v3558 = vunpack.c.l.b16 %v3535
    %v3559 = vunpack.c.l.b16 %v3536
    %v3560 = vunpack.c.l.b16 %v3537
    %v3561 = vunpack.c.l.b16 %v3538
    %v3562 = vunpack.c.l.b16 %v3539
    %v3563 = vunpack.c.l.b16 %v3540
    %v3564 = vunpack.c.l.b16 %v3541
    %v3565 = vunpack.c.l.b16 %v3542
    %v3566 = vpack.c.b16 %v3559, %v3558
    %v3567 = vpack.c.b16 %v3561, %v3560
    %v3568 = vpack.c.b16 %v3563, %v3562
    %v3569 = vpack.c.b16 %v3565, %v3564
    %v3575 = vsel %vm226, %v3533, 0
    %v3578 = vsel %vm226, %v3534, 0
    %3580 = vmatprep.subr.bf16.mxu0 0
    %3581 = vmatpush1.bf16.msra.mxu0 %v3566
    %3582 = vmatprep.subr.bf16.mxu0 0
    %3583 = vmatpush1.bf16.msra.mxu0 %v3567
    %3584 = vmatprep.subr.bf16.mxu0 0
    %3585 = vmatpush1.bf16.msra.mxu0 %v3568
    %3586 = vmatprep.subr.bf16.mxu0 0
    %3587 = vmatpush1.bf16.msra.mxu0 %v3569
    %3588 = vmatprep.subr.bf16.mxu0 0
    %3589 = vmatpush1.bf16.msra.mxu0 0
    %3590 = vmatprep.subr.bf16.mxu0 0
    %3591 = vmatpush1.bf16.msra.mxu0 0
    %3592 = vmatprep.subr.bf16.mxu0 0
    %3593 = vmatpush1.bf16.msra.mxu0 0
    %3594 = vmatprep.subr.bf16.mxu0 0
    %3595 = vmatpush1.bf16.msra.mxu0 0
    %3596 = vmatprep.subr.bf16.mxu0 0
    %3597 = vmatpush1.bf16.msra.mxu0 0
    %3598 = vmatprep.subr.bf16.mxu0 0
    %3599 = vmatpush1.bf16.msra.mxu0 0
    %3600 = vmatprep.subr.bf16.mxu0 0
    %3601 = vmatpush1.bf16.msra.mxu0 0
    %3602 = vmatprep.subr.bf16.mxu0 0
    %3603 = vmatpush1.bf16.msra.mxu0 0
    %3604 = vmatprep.subr.bf16.mxu0 0
    %3605 = vmatpush1.bf16.msra.mxu0 0
    %3606 = vmatprep.subr.bf16.mxu0 0
    %3607 = vmatpush1.bf16.msra.mxu0 0
    %3608 = vmatprep.subr.bf16.mxu0 0
    %3609 = vmatpush1.bf16.msra.mxu0 0
    %3610 = vmatprep.subr.bf16.mxu0 0
    %3611 = vmatpush1.bf16.msra.mxu0 0
    %3612 = vmatprep.mubr.bf16.mxu0 0
    %3613 = vmatmul.mubr.bf16.gmra.mrb[0].mxu0 %v3575
    %v3614 = vpop.f32.mrb[0].mxu0
    %v3615 = vadd.f32 %v3548, %v3614
    %v3616 = vpop.f32.mrb[0].mxu0
    %v3617 = vpop.f32.mrb[0].mxu0
    %v3618 = vadd.f32 %v3548, %v3617
    %v3619 = vpop.f32.mrb[0].mxu0
    %3620 = vmatprep.mubr.bf16.mxu0 0
    %3621 = vmatmul.mubr.bf16.gmra.mrb[0].mxu0 %v3578
    %v3622 = vpop.f32.mrb[0].mxu0
    %v3623 = vadd.f32 %v3548, %v3622
    %v3624 = vpop.f32.mrb[0].mxu0
    %v3625 = vpop.f32.mrb[0].mxu0
    %v3626 = vadd.f32 %v3548, %v3625
    %v3627 = vpop.f32.mrb[0].mxu0
    %3628 = vdwg.mxu0
    %3629 = vst [vmem:[#allocation2] sm:$0xff] %v3615
    %3630 = vst [vmem:[#allocation2 + $0x8] sm:$0xff] %v3618
    %3631 = vst [vmem:[#allocation2 + $0x10] sm:$0xff] %v3623
    %3632 = vst [vmem:[#allocation2 + $0x18] sm:$0xff] %v3626
    // Predicated region
    $region74: #{gpt_forward.1} parent=1 // pred_check
      _
    $region75: #{gpt_forward.1} parent=1 // pred_check_branch
      %3634 = sbr.rel (0) target = $region77
    $region76: #{gpt_forward.1} parent=1 // pred_region
      %s3636 = ssub.s32 512, 512
      %3637 = vsyncadd [#allocation3], %s3636
      %s3638 = sshll.u32 [#allocation2], 4
      %s3639 = int_to_ptr.vmem [resolvable:$true] %s3638
      %3644 = dma.vmem_to_hbm [thread:$0]  %s3639, 512, %s18, [#allocation3], 128, 128, 8
    $region77: #{gpt_forward.1} parent=1 // pred_fallthru
      _
    // Predicated region
    $region78: #{gpt_forward.1} parent=1 // pred_check
      _
    $region79: #{gpt_forward.1} parent=1 // pred_check_branch
      %3646 = sbr.rel (0) target = $region81
    $region80: #{gpt_forward.1} parent=1 // pred_region
      %3647 = dma.done [#allocation3], 512
    $region81: #{gpt_forward.1} parent=1 // pred_fallthru
      _
    %3648 = vsyncpa [#allocation3], 1

</llo_original>
